<compile_context>
chip_gen: v7x
topology: tpu7x:2x2x1
jax: 0.10.0
libtpu: 0.0.40
codegen_flags: <defaults>
</compile_context>

<pallas_src>
import functools

import jax
import jax.numpy as jnp
from jax import lax
from jax.experimental import pallas as pl
from jax.experimental.pallas import tpu as pltpu

NUM_CLASSES = 11
C_PAD = 128  # lane-dense padded class dim (unmasked vst; pad lanes get prob 0)


def _lstm_classifier_kernel(
    x_ref,       # (Tb*B, In)   time-major flattened chunk of x
    wih0_ref,    # (In, 4H)     weight_ih_l0^T, PyTorch gate cols [i|f|g|o]
    whh0_ref,    # (H, 4H)      weight_hh_l0^T
    b0_ref,      # (1, 4H)      b_ih_l0 + b_hh_l0
    wih1_ref,    # (H, 4H)
    whh1_ref,    # (H, 4H)
    b1_ref,      # (1, 4H)
    wfc_ref,     # (H, C_PAD)   fc1.weight^T zero-padded to 128 lanes
    bfc_ref,     # (1, C_PAD)   fc1.bias, pad lanes = -1e30
    out_ref,     # (Tb*B, C_PAD)
    h0_sc, c0_sc, h1_sc, c1_sc,   # (B, H) recurrent state, persists across chunks
    xw0_sc,      # (Tb*B, 4H)   hoisted layer-0 input projection for the chunk
    h1_seq_sc,   # (Tb*B, H)    sublane-dense staging for the hoisted fc1
    *, tb, unroll,
):
    B, H = h0_sc.shape

    @pl.when(pl.program_id(0) == 0)
    def _init():
        h0_sc[...] = jnp.zeros_like(h0_sc)
        c0_sc[...] = jnp.zeros_like(c0_sc)
        h1_sc[...] = jnp.zeros_like(h1_sc)
        c1_sc[...] = jnp.zeros_like(c1_sc)

    # Loop-invariant loads / broadcasts hoisted out of the recurrence.
    whh0 = whh0_ref[...]
    wih1 = wih1_ref[...]
    whh1 = whh1_ref[...]
    b1 = jnp.broadcast_to(b1_ref[...], (B, 4 * H))

    # Layer-0 input projection for the whole chunk: one big MXU pass, off the
    # serial per-timestep chain.
    xw0_sc[...] = (
        jnp.dot(x_ref[...].astype(jnp.float32), wih0_ref[...],
                preferred_element_type=jnp.float32)
        + b0_ref[...]
    )

    def activate(gates, c):
        # 4H == 128 lanes: full-vreg EUP ops, then cheap per-gate column picks.
        # PyTorch gate order is [i | f | g | o].
        sg = jax.nn.sigmoid(gates)
        th = jnp.tanh(gates)
        i = sg[:, :H]
        f = sg[:, H:2 * H]
        g = th[:, 2 * H:3 * H]
        o = sg[:, 3 * H:]
        c_new = f * c + i * g
        h_new = o * jnp.tanh(c_new)
        return h_new, c_new

    def step(tt, carry):
        h0, c0, h1, c1 = carry
        row = tt * B
        # W_hh matmuls depend only on the t-1 state: issue them first so the
        # layer-1 hh pass can overlap layer-0's activations.
        hh0 = jnp.dot(h0, whh0, preferred_element_type=jnp.float32)
        hh1 = jnp.dot(h1, whh1, preferred_element_type=jnp.float32) + b1
        gates0 = xw0_sc[pl.ds(row, B), :] + hh0
        h0, c0 = activate(gates0, c0)
        # TODO(synk): dropout(0.5) between layers omitted (eval-mode semantics).
        gates1 = jnp.dot(h0, wih1, preferred_element_type=jnp.float32) + hh1
        h1, c1 = activate(gates1, c1)
        h1_seq_sc[pl.ds(row, B), :] = h1
        return h0, c0, h1, c1

    h0, c0, h1, c1 = lax.fori_loop(
        0, tb, step,
        (h0_sc[...], c0_sc[...], h1_sc[...], c1_sc[...]),
        unroll=unroll,
    )

    # Persist recurrent state for the next time-chunk (if any).
    h0_sc[...] = h0
    c0_sc[...] = c0
    h1_sc[...] = h1
    c1_sc[...] = c1

    # Hoisted fc1 + softmax: one (Tb*B, H) @ (H, 128) matmul, one batched
    # softmax, one lane-dense slab store.  Pad lanes carry bias -1e30 so their
    # probability is exactly 0.  Exact division (not approx reciprocal): runs
    # once per chunk, keeps rows summing to 1 to f32 precision.
    logits = (
        jnp.dot(h1_seq_sc[...], wfc_ref[...], preferred_element_type=jnp.float32)
        + bfc_ref[...]
    )
    m = jnp.max(logits, axis=-1, keepdims=True)
    e = jnp.exp(logits - m)
    out_ref[...] = (e / jnp.sum(e, axis=-1, keepdims=True)).astype(out_ref.dtype)


def _pad_fc(wfc_t, bfc):
    """Pad fc1 to a 128-lane output: weight cols 0, bias cols -1e30."""
    C = wfc_t.shape[1]
    wfc_p = jnp.pad(wfc_t, ((0, 0), (0, C_PAD - C)))
    bfc_p = jnp.pad(bfc, ((0, 0), (0, C_PAD - C)), constant_values=-1e30)
    return wfc_p, bfc_p


@functools.partial(jax.jit, static_argnames=("time_chunk",))
def seq_classifier_forward(x, lengths, params, *, time_chunk=128):
    """x: (T, B, In) float32. `lengths` is unused (matches the PyTorch forward)."""
    del lengths
    T, B, In = x.shape
    wih0_t, whh0_t, b0, wih1_t, whh1_t, b1, wfc_t, bfc = params
    H = whh0_t.shape[0]
    C = wfc_t.shape[1]
    wfc_p, bfc_p = _pad_fc(wfc_t, bfc)

    # Time-chunking: Tb timesteps per grid step (grid=(1,) for small T).
    # NOTE: time_chunk is the knob that blows VMEM first if B/In/H grow
    # (v7x 64 MiB physical, v5e 16 MiB default scoped) -- shrink it before
    # raising vmem_limit_bytes.
    Tb = min(T, time_chunk)
    T_pad = Tb * pl.cdiv(T, Tb)
    if T_pad != T:
        # Padded tail timesteps run after all real ones; outputs are sliced off.
        x = jnp.pad(x, ((0, T_pad - T), (0, 0), (0, 0)))
    num_chunks = T_pad // Tb
    # Wrapper-side flatten: the kernel sees a dense 2-D (Tb*B, In) slab.
    x2d = x.reshape(T_pad * B, In)
    unroll = True if Tb <= 16 else 8

    kernel = functools.partial(_lstm_classifier_kernel, tb=Tb, unroll=unroll)

    const = lambda shape: pl.BlockSpec(shape, lambda c: (0,) * len(shape))
    # TODO(synk): when T > time_chunk, tag the constant weight/bias specs with
    # pipeline_mode=pl.Buffered(1) to drop redundant per-chunk weight DMAs.

    cost = pl.CostEstimate(
        flops=T_pad * B * (2 * In * 4 * H + 3 * (2 * H * 4 * H) + 2 * H * C_PAD),
        transcendentals=T_pad * B * (2 * 9 * H + C_PAD),
        bytes_accessed=4 * (T_pad * B * (In + C_PAD)
                            + (In + 3 * H) * 4 * H + 8 * H
                            + H * C_PAD + C_PAD),
    )

    out2d = pl.pallas_call(
        kernel,
        out_shape=jax.ShapeDtypeStruct((T_pad * B, C_PAD), jnp.float32),
        grid_spec=pltpu.PrefetchScalarGridSpec(
            num_scalar_prefetch=0,
            grid=(num_chunks,),
            in_specs=[
                pl.BlockSpec((Tb * B, In), lambda c: (c, 0)),   # x chunk
                const((In, 4 * H)),      # W_ih0^T
                const((H, 4 * H)),       # W_hh0^T
                const((1, 4 * H)),       # b0
                const((H, 4 * H)),       # W_ih1^T
                const((H, 4 * H)),       # W_hh1^T
                const((1, 4 * H)),       # b1
                const((H, C_PAD)),       # fc1 weight^T (padded)
                const((1, C_PAD)),       # fc1 bias (padded)
            ],
            out_specs=pl.BlockSpec((Tb * B, C_PAD), lambda c: (c, 0)),
            scratch_shapes=[
                pltpu.VMEM((B, H), jnp.float32),            # h layer 0
                pltpu.VMEM((B, H), jnp.float32),            # c layer 0
                pltpu.VMEM((B, H), jnp.float32),            # h layer 1
                pltpu.VMEM((B, H), jnp.float32),            # c layer 1
                pltpu.VMEM((Tb * B, 4 * H), jnp.float32),   # hoisted x @ W_ih0 + b0
                pltpu.VMEM((Tb * B, H), jnp.float32),       # h1 staging for fc1
            ],
        ),
        compiler_params=pltpu.CompilerParams(
            dimension_semantics=("arbitrary",),   # time recurrence is sequential
        ),
        cost_estimate=cost,
    )(x2d, wih0_t, whh0_t, b0, wih1_t, whh1_t, b1, wfc_p, bfc_p)

    out = out2d.reshape(T_pad, B, C_PAD)[:T, :, :C]
    # torch's .squeeze(1): only squeeze if batch dim is 1
    if out.shape[1] == 1:
        out = out[:, 0]
    return out


def init_params(key, input_size, hidden_size, num_classes=NUM_CLASSES):
    """Deterministic init mimicking PyTorch's U(-1/sqrt(H), 1/sqrt(H)); gate order [i|f|g|o]."""
    H = hidden_size
    bound = 1.0 / jnp.sqrt(jnp.float32(H))
    ks = jax.random.split(key, 10)
    u = lambda k, shape: jax.random.uniform(k, shape, jnp.float32, -bound, bound)

    wih0_t = u(ks[0], (input_size, 4 * H))              # weight_ih_l0^T
    whh0_t = u(ks[1], (H, 4 * H))                       # weight_hh_l0^T
    b0 = u(ks[2], (1, 4 * H)) + u(ks[3], (1, 4 * H))    # b_ih_l0 + b_hh_l0
    wih1_t = u(ks[4], (H, 4 * H))
    whh1_t = u(ks[5], (H, 4 * H))
    b1 = u(ks[6], (1, 4 * H)) + u(ks[7], (1, 4 * H))

    wfc_t = jax.random.uniform(ks[8], (H, num_classes), jnp.float32, -bound, bound)
    bfc = jax.random.uniform(ks[9], (1, num_classes), jnp.float32, -bound, bound)
    return (wih0_t, whh0_t, b0, wih1_t, whh1_t, b1, wfc_t, bfc)


def seq_classifier_reference(x, params):
    """Pure-JAX reference with PyTorch LSTM semantics (eval mode)."""
    wih0_t, whh0_t, b0, wih1_t, whh1_t, b1, wfc_t, bfc = params
    H = whh0_t.shape[0]
    T, B, _ = x.shape

    def cell(x_t, h, c, wih, whh, b):
        gates = x_t @ wih + h @ whh + b
        i = jax.nn.sigmoid(gates[:, :H])
        f = jax.nn.sigmoid(gates[:, H:2 * H])
        g = jnp.tanh(gates[:, 2 * H:3 * H])
        o = jax.nn.sigmoid(gates[:, 3 * H:])
        c = f * c + i * g
        h = o * jnp.tanh(c)
        return h, c

    h0 = jnp.zeros((B, H), jnp.float32); c0 = jnp.zeros((B, H), jnp.float32)
    h1 = jnp.zeros((B, H), jnp.float32); c1 = jnp.zeros((B, H), jnp.float32)
    outs = []
    for t in range(T):
        h0, c0 = cell(x[t], h0, c0, wih0_t, whh0_t, b0)
        h1, c1 = cell(h0, h1, c1, wih1_t, whh1_t, b1)
        outs.append(jax.nn.softmax(h1 @ wfc_t + bfc, axis=-1))
    return jnp.stack(outs)


if __name__ == "__main__":
    # Small shapes consistent with the module's forward:
    # x: (seq_len, batch, input_size), seq-first like nn.LSTM default.
    T, B, INPUT_SIZE, HIDDEN = 8, 2, 32, 32

    key = jax.random.PRNGKey(0)
    kx, kp = jax.random.split(key)
    x = jax.random.normal(kx, (T, B, INPUT_SIZE), dtype=jnp.float32)
    lengths = jnp.full((B,), T, dtype=jnp.int32)  # unused, matches torch forward
    params = init_params(kp, INPUT_SIZE, HIDDEN)

    out = seq_classifier_forward(x, lengths, params)
    out = jax.block_until_ready(out)

    assert out.shape == (T, B, NUM_CLASSES), out.shape
    # exact normalization now: each row is a softmax distribution
    assert jnp.allclose(jnp.sum(out, axis=-1), 1.0, atol=1e-4)

    ref = seq_classifier_reference(x, params)
    max_err = float(jnp.max(jnp.abs(out - ref)))
    assert jnp.allclose(out, ref, atol=2e-3, rtol=2e-3), max_err

    print("KERNEL_OK")
</pallas_src>

<mosaic_0001>
module attributes {stable_mosaic.version = 11 : i64} {
  func.func @_lstm_classifier_kernel(%arg0: i32, %arg1: memref<16x32xf32, #tpu.memory_space<vmem>>, %arg2: memref<32x128xf32, #tpu.memory_space<vmem>>, %arg3: memref<32x128xf32, #tpu.memory_space<vmem>>, %arg4: memref<1x128xf32, #tpu.memory_space<vmem>>, %arg5: memref<32x128xf32, #tpu.memory_space<vmem>>, %arg6: memref<32x128xf32, #tpu.memory_space<vmem>>, %arg7: memref<1x128xf32, #tpu.memory_space<vmem>>, %arg8: memref<32x128xf32, #tpu.memory_space<vmem>>, %arg9: memref<1x128xf32, #tpu.memory_space<vmem>>, %arg10: memref<16x128xf32, #tpu.memory_space<vmem>>, %arg11: memref<2x32xf32, #tpu.memory_space<vmem>>, %arg12: memref<2x32xf32, #tpu.memory_space<vmem>>, %arg13: memref<2x32xf32, #tpu.memory_space<vmem>>, %arg14: memref<2x32xf32, #tpu.memory_space<vmem>>, %arg15: memref<16x128xf32, #tpu.memory_space<vmem>>, %arg16: memref<16x32xf32, #tpu.memory_space<vmem>>) attributes {dimension_semantics = [#tpu.dimension_semantics<arbitrary>], iteration_bounds = array<i64: 1>, scalar_prefetch = 0 : i64, scratch_operands = 6 : i64, tpu.core_type = #tpu.core_type<tc>, window_params = [{transform_indices = @transform_0, window_bounds = array<i64: 16, 32>}, {pipeline_mode = #tpu.pipeline_mode<synchronous>, transform_indices = @transform_1, window_bounds = array<i64: 32, 128>}, {pipeline_mode = #tpu.pipeline_mode<synchronous>, transform_indices = @transform_2, window_bounds = array<i64: 32, 128>}, {pipeline_mode = #tpu.pipeline_mode<synchronous>, transform_indices = @transform_3, window_bounds = array<i64: 1, 128>}, {pipeline_mode = #tpu.pipeline_mode<synchronous>, transform_indices = @transform_4, window_bounds = array<i64: 32, 128>}, {pipeline_mode = #tpu.pipeline_mode<synchronous>, transform_indices = @transform_5, window_bounds = array<i64: 32, 128>}, {pipeline_mode = #tpu.pipeline_mode<synchronous>, transform_indices = @transform_6, window_bounds = array<i64: 1, 128>}, {pipeline_mode = #tpu.pipeline_mode<synchronous>, transform_indices = @transform_7, window_bounds = array<i64: 32, 128>}, {pipeline_mode = #tpu.pipeline_mode<synchronous>, transform_indices = @transform_8, window_bounds = array<i64: 1, 128>}, {transform_indices = @transform_9, window_bounds = array<i64: 16, 128>}]} {
    %c0_i32 = arith.constant 0 : i32
    %0 = arith.cmpi eq, %arg0, %c0_i32 : i32
    %1 = arith.extui %0 : i1 to i32
    %c0_i32_0 = arith.constant 0 : i32
    %2 = arith.cmpi ne, %1, %c0_i32_0 : i32
    scf.if %2 {
      %cst_108 = arith.constant 0.000000e+00 : f32
      %368 = vector.broadcast %cst_108 : f32 to vector<2x32xf32>
      %c0_109 = arith.constant 0 : index
      %c0_110 = arith.constant 0 : index
      %369 = vector.load %arg11[%c0_109, %c0_110] : memref<2x32xf32, #tpu.memory_space<vmem>>, vector<2x32xf32>
      tpu.vector_store %arg11[%c0_109, %c0_110], %368 {strides = array<i32>} : memref<2x32xf32, #tpu.memory_space<vmem>>, vector<2x32xf32>,
      %cst_111 = arith.constant 0.000000e+00 : f32
      %370 = vector.broadcast %cst_111 : f32 to vector<2x32xf32>
      %c0_112 = arith.constant 0 : index
      %c0_113 = arith.constant 0 : index
      %371 = vector.load %arg12[%c0_112, %c0_113] : memref<2x32xf32, #tpu.memory_space<vmem>>, vector<2x32xf32>
      tpu.vector_store %arg12[%c0_112, %c0_113], %370 {strides = array<i32>} : memref<2x32xf32, #tpu.memory_space<vmem>>, vector<2x32xf32>,
      %cst_114 = arith.constant 0.000000e+00 : f32
      %372 = vector.broadcast %cst_114 : f32 to vector<2x32xf32>
      %c0_115 = arith.constant 0 : index
      %c0_116 = arith.constant 0 : index
      %373 = vector.load %arg13[%c0_115, %c0_116] : memref<2x32xf32, #tpu.memory_space<vmem>>, vector<2x32xf32>
      tpu.vector_store %arg13[%c0_115, %c0_116], %372 {strides = array<i32>} : memref<2x32xf32, #tpu.memory_space<vmem>>, vector<2x32xf32>,
      %cst_117 = arith.constant 0.000000e+00 : f32
      %374 = vector.broadcast %cst_117 : f32 to vector<2x32xf32>
      %c0_118 = arith.constant 0 : index
      %c0_119 = arith.constant 0 : index
      %375 = vector.load %arg14[%c0_118, %c0_119] : memref<2x32xf32, #tpu.memory_space<vmem>>, vector<2x32xf32>
      tpu.vector_store %arg14[%c0_118, %c0_119], %374 {strides = array<i32>} : memref<2x32xf32, #tpu.memory_space<vmem>>, vector<2x32xf32>,
    } else {
    }
    %c0 = arith.constant 0 : index
    %c0_1 = arith.constant 0 : index
    %3 = vector.load %arg3[%c0, %c0_1] : memref<32x128xf32, #tpu.memory_space<vmem>>, vector<32x128xf32>
    %c0_2 = arith.constant 0 : index
    %c0_3 = arith.constant 0 : index
    %4 = vector.load %arg5[%c0_2, %c0_3] : memref<32x128xf32, #tpu.memory_space<vmem>>, vector<32x128xf32>
    %c0_4 = arith.constant 0 : index
    %c0_5 = arith.constant 0 : index
    %5 = vector.load %arg6[%c0_4, %c0_5] : memref<32x128xf32, #tpu.memory_space<vmem>>, vector<32x128xf32>
    %c0_6 = arith.constant 0 : index
    %c0_7 = arith.constant 0 : index
    %6 = vector.load %arg7[%c0_6, %c0_7] : memref<1x128xf32, #tpu.memory_space<vmem>>, vector<1x128xf32>
    %7 = vector.shape_cast %6 : vector<1x128xf32> to vector<1x128xf32>
    %8 = vector.broadcast %7 : vector<1x128xf32> to vector<2x128xf32>
    %c0_8 = arith.constant 0 : index
    %c0_9 = arith.constant 0 : index
    %9 = vector.load %arg1[%c0_8, %c0_9] : memref<16x32xf32, #tpu.memory_space<vmem>>, vector<16x32xf32>
    %c0_10 = arith.constant 0 : index
    %c0_11 = arith.constant 0 : index
    %10 = vector.load %arg2[%c0_10, %c0_11] : memref<32x128xf32, #tpu.memory_space<vmem>>, vector<32x128xf32>
    %cst = arith.constant dense<0.000000e+00> : vector<16x128xf32>
    %11 = tpu.matmul %9, %10, %cst {dimension_numbers = #tpu.dot_dimension_numbers<[1], [0], [0], [1], [0, 0, 1, 1], [], []>} : vector<16x32xf32>, vector<32x128xf32>, vector<16x128xf32> -> vector<16x128xf32>
    %c0_12 = arith.constant 0 : index
    %c0_13 = arith.constant 0 : index
    %12 = vector.load %arg4[%c0_12, %c0_13] : memref<1x128xf32, #tpu.memory_space<vmem>>, vector<1x128xf32>
    %13 = vector.broadcast %12 : vector<1x128xf32> to vector<16x128xf32>
    %14 = arith.addf %11, %13 : vector<16x128xf32>
    %c0_14 = arith.constant 0 : index
    %c0_15 = arith.constant 0 : index
    %15 = vector.load %arg15[%c0_14, %c0_15] : memref<16x128xf32, #tpu.memory_space<vmem>>, vector<16x128xf32>
    tpu.vector_store %arg15[%c0_14, %c0_15], %14 {strides = array<i32>} : memref<16x128xf32, #tpu.memory_space<vmem>>, vector<16x128xf32>,
    %c0_16 = arith.constant 0 : index
    %c0_17 = arith.constant 0 : index
    %16 = vector.load %arg11[%c0_16, %c0_17] : memref<2x32xf32, #tpu.memory_space<vmem>>, vector<2x32xf32>
    %c0_18 = arith.constant 0 : index
    %c0_19 = arith.constant 0 : index
    %17 = vector.load %arg12[%c0_18, %c0_19] : memref<2x32xf32, #tpu.memory_space<vmem>>, vector<2x32xf32>
    %c0_20 = arith.constant 0 : index
    %c0_21 = arith.constant 0 : index
    %18 = vector.load %arg13[%c0_20, %c0_21] : memref<2x32xf32, #tpu.memory_space<vmem>>, vector<2x32xf32>
    %c0_22 = arith.constant 0 : index
    %c0_23 = arith.constant 0 : index
    %19 = vector.load %arg14[%c0_22, %c0_23] : memref<2x32xf32, #tpu.memory_space<vmem>>, vector<2x32xf32>
    %c0_i32_24 = arith.constant 0 : i32
    %c2_i32 = arith.constant 2 : i32
    %20 = arith.muli %c0_i32_24, %c2_i32 : i32
    %cst_25 = arith.constant dense<0.000000e+00> : vector<2x128xf32>
    %21 = tpu.matmul %16, %3, %cst_25 {dimension_numbers = #tpu.dot_dimension_numbers<[1], [0], [0], [1], [0, 0, 1, 1], [], []>} : vector<2x32xf32>, vector<32x128xf32>, vector<2x128xf32> -> vector<2x128xf32>
    %cst_26 = arith.constant dense<0.000000e+00> : vector<2x128xf32>
    %22 = tpu.matmul %18, %5, %cst_26 {dimension_numbers = #tpu.dot_dimension_numbers<[1], [0], [0], [1], [0, 0, 1, 1], [], []>} : vector<2x32xf32>, vector<32x128xf32>, vector<2x128xf32> -> vector<2x128xf32>
    %23 = arith.addf %22, %8 : vector<2x128xf32>
    %24 = arith.index_cast %20 : i32 to index
    %c0_27 = arith.constant 0 : index
    %25 = vector.load %arg15[%24, %c0_27] : memref<16x128xf32, #tpu.memory_space<vmem>>, vector<2x128xf32>
    %26 = arith.addf %25, %21 : vector<2x128xf32>
    %27 = arith.negf %26 : vector<2x128xf32>
    %28 = math.exp %27 : vector<2x128xf32>
    %cst_28 = arith.constant 1.000000e+00 : f32
    %29 = vector.broadcast %cst_28 : f32 to vector<2x128xf32>
    %30 = arith.addf %29, %28 : vector<2x128xf32>
    %31 = arith.divf %29, %30 : vector<2x128xf32>
    %32 = math.tanh %26 : vector<2x128xf32>
    %33 = vector.extract_strided_slice %31 {offsets = [0, 0], sizes = [2, 32], strides = [1, 1]} : vector<2x128xf32> to vector<2x32xf32>
    %34 = vector.extract_strided_slice %31 {offsets = [0, 32], sizes = [2, 32], strides = [1, 1]} : vector<2x128xf32> to vector<2x32xf32>
    %35 = vector.extract_strided_slice %32 {offsets = [0, 64], sizes = [2, 32], strides = [1, 1]} : vector<2x128xf32> to vector<2x32xf32>
    %36 = vector.extract_strided_slice %31 {offsets = [0, 96], sizes = [2, 32], strides = [1, 1]} : vector<2x128xf32> to vector<2x32xf32>
    %37 = arith.mulf %34, %17 : vector<2x32xf32>
    %38 = arith.mulf %33, %35 : vector<2x32xf32>
    %39 = arith.addf %37, %38 : vector<2x32xf32>
    %40 = math.tanh %39 : vector<2x32xf32>
    %41 = arith.mulf %36, %40 : vector<2x32xf32>
    %cst_29 = arith.constant dense<0.000000e+00> : vector<2x128xf32>
    %42 = tpu.matmul %41, %4, %cst_29 {dimension_numbers = #tpu.dot_dimension_numbers<[1], [0], [0], [1], [0, 0, 1, 1], [], []>} : vector<2x32xf32>, vector<32x128xf32>, vector<2x128xf32> -> vector<2x128xf32>
    %43 = arith.addf %42, %23 : vector<2x128xf32>
    %44 = arith.negf %43 : vector<2x128xf32>
    %45 = math.exp %44 : vector<2x128xf32>
    %cst_30 = arith.constant 1.000000e+00 : f32
    %46 = vector.broadcast %cst_30 : f32 to vector<2x128xf32>
    %47 = arith.addf %46, %45 : vector<2x128xf32>
    %48 = arith.divf %46, %47 : vector<2x128xf32>
    %49 = math.tanh %43 : vector<2x128xf32>
    %50 = vector.extract_strided_slice %48 {offsets = [0, 0], sizes = [2, 32], strides = [1, 1]} : vector<2x128xf32> to vector<2x32xf32>
    %51 = vector.extract_strided_slice %48 {offsets = [0, 32], sizes = [2, 32], strides = [1, 1]} : vector<2x128xf32> to vector<2x32xf32>
    %52 = vector.extract_strided_slice %49 {offsets = [0, 64], sizes = [2, 32], strides = [1, 1]} : vector<2x128xf32> to vector<2x32xf32>
    %53 = vector.extract_strided_slice %48 {offsets = [0, 96], sizes = [2, 32], strides = [1, 1]} : vector<2x128xf32> to vector<2x32xf32>
    %54 = arith.mulf %51, %19 : vector<2x32xf32>
    %55 = arith.mulf %50, %52 : vector<2x32xf32>
    %56 = arith.addf %54, %55 : vector<2x32xf32>
    %57 = math.tanh %56 : vector<2x32xf32>
    %58 = arith.mulf %53, %57 : vector<2x32xf32>
    %59 = arith.index_cast %20 : i32 to index
    %c0_31 = arith.constant 0 : index
    %60 = vector.load %arg16[%59, %c0_31] : memref<16x32xf32, #tpu.memory_space<vmem>>, vector<2x32xf32>
    tpu.vector_store %arg16[%59, %c0_31], %58 {strides = array<i32>} : memref<16x32xf32, #tpu.memory_space<vmem>>, vector<2x32xf32>,
    %c1_i32 = arith.constant 1 : i32
    %c2_i32_32 = arith.constant 2 : i32
    %61 = arith.muli %c1_i32, %c2_i32_32 : i32
    %cst_33 = arith.constant dense<0.000000e+00> : vector<2x128xf32>
    %62 = tpu.matmul %41, %3, %cst_33 {dimension_numbers = #tpu.dot_dimension_numbers<[1], [0], [0], [1], [0, 0, 1, 1], [], []>} : vector<2x32xf32>, vector<32x128xf32>, vector<2x128xf32> -> vector<2x128xf32>
    %cst_34 = arith.constant dense<0.000000e+00> : vector<2x128xf32>
    %63 = tpu.matmul %58, %5, %cst_34 {dimension_numbers = #tpu.dot_dimension_numbers<[1], [0], [0], [1], [0, 0, 1, 1], [], []>} : vector<2x32xf32>, vector<32x128xf32>, vector<2x128xf32> -> vector<2x128xf32>
    %64 = arith.addf %63, %8 : vector<2x128xf32>
    %65 = arith.index_cast %61 : i32 to index
    %c0_35 = arith.constant 0 : index
    %66 = vector.load %arg15[%65, %c0_35] : memref<16x128xf32, #tpu.memory_space<vmem>>, vector<2x128xf32>
    %67 = arith.addf %66, %62 : vector<2x128xf32>
    %68 = arith.negf %67 : vector<2x128xf32>
    %69 = math.exp %68 : vector<2x128xf32>
    %cst_36 = arith.constant 1.000000e+00 : f32
    %70 = vector.broadcast %cst_36 : f32 to vector<2x128xf32>
    %71 = arith.addf %70, %69 : vector<2x128xf32>
    %72 = arith.divf %70, %71 : vector<2x128xf32>
    %73 = math.tanh %67 : vector<2x128xf32>
    %74 = vector.extract_strided_slice %72 {offsets = [0, 0], sizes = [2, 32], strides = [1, 1]} : vector<2x128xf32> to vector<2x32xf32>
    %75 = vector.extract_strided_slice %72 {offsets = [0, 32], sizes = [2, 32], strides = [1, 1]} : vector<2x128xf32> to vector<2x32xf32>
    %76 = vector.extract_strided_slice %73 {offsets = [0, 64], sizes = [2, 32], strides = [1, 1]} : vector<2x128xf32> to vector<2x32xf32>
    %77 = vector.extract_strided_slice %72 {offsets = [0, 96], sizes = [2, 32], strides = [1, 1]} : vector<2x128xf32> to vector<2x32xf32>
    %78 = arith.mulf %75, %39 : vector<2x32xf32>
    %79 = arith.mulf %74, %76 : vector<2x32xf32>
    %80 = arith.addf %78, %79 : vector<2x32xf32>
    %81 = math.tanh %80 : vector<2x32xf32>
    %82 = arith.mulf %77, %81 : vector<2x32xf32>
    %cst_37 = arith.constant dense<0.000000e+00> : vector<2x128xf32>
    %83 = tpu.matmul %82, %4, %cst_37 {dimension_numbers = #tpu.dot_dimension_numbers<[1], [0], [0], [1], [0, 0, 1, 1], [], []>} : vector<2x32xf32>, vector<32x128xf32>, vector<2x128xf32> -> vector<2x128xf32>
    %84 = arith.addf %83, %64 : vector<2x128xf32>
    %85 = arith.negf %84 : vector<2x128xf32>
    %86 = math.exp %85 : vector<2x128xf32>
    %cst_38 = arith.constant 1.000000e+00 : f32
    %87 = vector.broadcast %cst_38 : f32 to vector<2x128xf32>
    %88 = arith.addf %87, %86 : vector<2x128xf32>
    %89 = arith.divf %87, %88 : vector<2x128xf32>
    %90 = math.tanh %84 : vector<2x128xf32>
    %91 = vector.extract_strided_slice %89 {offsets = [0, 0], sizes = [2, 32], strides = [1, 1]} : vector<2x128xf32> to vector<2x32xf32>
    %92 = vector.extract_strided_slice %89 {offsets = [0, 32], sizes = [2, 32], strides = [1, 1]} : vector<2x128xf32> to vector<2x32xf32>
    %93 = vector.extract_strided_slice %90 {offsets = [0, 64], sizes = [2, 32], strides = [1, 1]} : vector<2x128xf32> to vector<2x32xf32>
    %94 = vector.extract_strided_slice %89 {offsets = [0, 96], sizes = [2, 32], strides = [1, 1]} : vector<2x128xf32> to vector<2x32xf32>
    %95 = arith.mulf %92, %56 : vector<2x32xf32>
    %96 = arith.mulf %91, %93 : vector<2x32xf32>
    %97 = arith.addf %95, %96 : vector<2x32xf32>
    %98 = math.tanh %97 : vector<2x32xf32>
    %99 = arith.mulf %94, %98 : vector<2x32xf32>
    %100 = arith.index_cast %61 : i32 to index
    %c0_39 = arith.constant 0 : index
    %101 = vector.load %arg16[%100, %c0_39] : memref<16x32xf32, #tpu.memory_space<vmem>>, vector<2x32xf32>
    tpu.vector_store %arg16[%100, %c0_39], %99 {strides = array<i32>} : memref<16x32xf32, #tpu.memory_space<vmem>>, vector<2x32xf32>,
    %c2_i32_40 = arith.constant 2 : i32
    %c2_i32_41 = arith.constant 2 : i32
    %102 = arith.muli %c2_i32_40, %c2_i32_41 : i32
    %cst_42 = arith.constant dense<0.000000e+00> : vector<2x128xf32>
    %103 = tpu.matmul %82, %3, %cst_42 {dimension_numbers = #tpu.dot_dimension_numbers<[1], [0], [0], [1], [0, 0, 1, 1], [], []>} : vector<2x32xf32>, vector<32x128xf32>, vector<2x128xf32> -> vector<2x128xf32>
    %cst_43 = arith.constant dense<0.000000e+00> : vector<2x128xf32>
    %104 = tpu.matmul %99, %5, %cst_43 {dimension_numbers = #tpu.dot_dimension_numbers<[1], [0], [0], [1], [0, 0, 1, 1], [], []>} : vector<2x32xf32>, vector<32x128xf32>, vector<2x128xf32> -> vector<2x128xf32>
    %105 = arith.addf %104, %8 : vector<2x128xf32>
    %106 = arith.index_cast %102 : i32 to index
    %c0_44 = arith.constant 0 : index
    %107 = vector.load %arg15[%106, %c0_44] : memref<16x128xf32, #tpu.memory_space<vmem>>, vector<2x128xf32>
    %108 = arith.addf %107, %103 : vector<2x128xf32>
    %109 = arith.negf %108 : vector<2x128xf32>
    %110 = math.exp %109 : vector<2x128xf32>
    %cst_45 = arith.constant 1.000000e+00 : f32
    %111 = vector.broadcast %cst_45 : f32 to vector<2x128xf32>
    %112 = arith.addf %111, %110 : vector<2x128xf32>
    %113 = arith.divf %111, %112 : vector<2x128xf32>
    %114 = math.tanh %108 : vector<2x128xf32>
    %115 = vector.extract_strided_slice %113 {offsets = [0, 0], sizes = [2, 32], strides = [1, 1]} : vector<2x128xf32> to vector<2x32xf32>
    %116 = vector.extract_strided_slice %113 {offsets = [0, 32], sizes = [2, 32], strides = [1, 1]} : vector<2x128xf32> to vector<2x32xf32>
    %117 = vector.extract_strided_slice %114 {offsets = [0, 64], sizes = [2, 32], strides = [1, 1]} : vector<2x128xf32> to vector<2x32xf32>
    %118 = vector.extract_strided_slice %113 {offsets = [0, 96], sizes = [2, 32], strides = [1, 1]} : vector<2x128xf32> to vector<2x32xf32>
    %119 = arith.mulf %116, %80 : vector<2x32xf32>
    %120 = arith.mulf %115, %117 : vector<2x32xf32>
    %121 = arith.addf %119, %120 : vector<2x32xf32>
    %122 = math.tanh %121 : vector<2x32xf32>
    %123 = arith.mulf %118, %122 : vector<2x32xf32>
    %cst_46 = arith.constant dense<0.000000e+00> : vector<2x128xf32>
    %124 = tpu.matmul %123, %4, %cst_46 {dimension_numbers = #tpu.dot_dimension_numbers<[1], [0], [0], [1], [0, 0, 1, 1], [], []>} : vector<2x32xf32>, vector<32x128xf32>, vector<2x128xf32> -> vector<2x128xf32>
    %125 = arith.addf %124, %105 : vector<2x128xf32>
    %126 = arith.negf %125 : vector<2x128xf32>
    %127 = math.exp %126 : vector<2x128xf32>
    %cst_47 = arith.constant 1.000000e+00 : f32
    %128 = vector.broadcast %cst_47 : f32 to vector<2x128xf32>
    %129 = arith.addf %128, %127 : vector<2x128xf32>
    %130 = arith.divf %128, %129 : vector<2x128xf32>
    %131 = math.tanh %125 : vector<2x128xf32>
    %132 = vector.extract_strided_slice %130 {offsets = [0, 0], sizes = [2, 32], strides = [1, 1]} : vector<2x128xf32> to vector<2x32xf32>
    %133 = vector.extract_strided_slice %130 {offsets = [0, 32], sizes = [2, 32], strides = [1, 1]} : vector<2x128xf32> to vector<2x32xf32>
    %134 = vector.extract_strided_slice %131 {offsets = [0, 64], sizes = [2, 32], strides = [1, 1]} : vector<2x128xf32> to vector<2x32xf32>
    %135 = vector.extract_strided_slice %130 {offsets = [0, 96], sizes = [2, 32], strides = [1, 1]} : vector<2x128xf32> to vector<2x32xf32>
    %136 = arith.mulf %133, %97 : vector<2x32xf32>
    %137 = arith.mulf %132, %134 : vector<2x32xf32>
    %138 = arith.addf %136, %137 : vector<2x32xf32>
    %139 = math.tanh %138 : vector<2x32xf32>
    %140 = arith.mulf %135, %139 : vector<2x32xf32>
    %141 = arith.index_cast %102 : i32 to index
    %c0_48 = arith.constant 0 : index
    %142 = vector.load %arg16[%141, %c0_48] : memref<16x32xf32, #tpu.memory_space<vmem>>, vector<2x32xf32>
    tpu.vector_store %arg16[%141, %c0_48], %140 {strides = array<i32>} : memref<16x32xf32, #tpu.memory_space<vmem>>, vector<2x32xf32>,
    %c3_i32 = arith.constant 3 : i32
    %c2_i32_49 = arith.constant 2 : i32
    %143 = arith.muli %c3_i32, %c2_i32_49 : i32
    %cst_50 = arith.constant dense<0.000000e+00> : vector<2x128xf32>
    %144 = tpu.matmul %123, %3, %cst_50 {dimension_numbers = #tpu.dot_dimension_numbers<[1], [0], [0], [1], [0, 0, 1, 1], [], []>} : vector<2x32xf32>, vector<32x128xf32>, vector<2x128xf32> -> vector<2x128xf32>
    %cst_51 = arith.constant dense<0.000000e+00> : vector<2x128xf32>
    %145 = tpu.matmul %140, %5, %cst_51 {dimension_numbers = #tpu.dot_dimension_numbers<[1], [0], [0], [1], [0, 0, 1, 1], [], []>} : vector<2x32xf32>, vector<32x128xf32>, vector<2x128xf32> -> vector<2x128xf32>
    %146 = arith.addf %145, %8 : vector<2x128xf32>
    %147 = arith.index_cast %143 : i32 to index
    %c0_52 = arith.constant 0 : index
    %148 = vector.load %arg15[%147, %c0_52] : memref<16x128xf32, #tpu.memory_space<vmem>>, vector<2x128xf32>
    %149 = arith.addf %148, %144 : vector<2x128xf32>
    %150 = arith.negf %149 : vector<2x128xf32>
    %151 = math.exp %150 : vector<2x128xf32>
    %cst_53 = arith.constant 1.000000e+00 : f32
    %152 = vector.broadcast %cst_53 : f32 to vector<2x128xf32>
    %153 = arith.addf %152, %151 : vector<2x128xf32>
    %154 = arith.divf %152, %153 : vector<2x128xf32>
    %155 = math.tanh %149 : vector<2x128xf32>
    %156 = vector.extract_strided_slice %154 {offsets = [0, 0], sizes = [2, 32], strides = [1, 1]} : vector<2x128xf32> to vector<2x32xf32>
    %157 = vector.extract_strided_slice %154 {offsets = [0, 32], sizes = [2, 32], strides = [1, 1]} : vector<2x128xf32> to vector<2x32xf32>
    %158 = vector.extract_strided_slice %155 {offsets = [0, 64], sizes = [2, 32], strides = [1, 1]} : vector<2x128xf32> to vector<2x32xf32>
    %159 = vector.extract_strided_slice %154 {offsets = [0, 96], sizes = [2, 32], strides = [1, 1]} : vector<2x128xf32> to vector<2x32xf32>
    %160 = arith.mulf %157, %121 : vector<2x32xf32>
    %161 = arith.mulf %156, %158 : vector<2x32xf32>
    %162 = arith.addf %160, %161 : vector<2x32xf32>
    %163 = math.tanh %162 : vector<2x32xf32>
    %164 = arith.mulf %159, %163 : vector<2x32xf32>
    %cst_54 = arith.constant dense<0.000000e+00> : vector<2x128xf32>
    %165 = tpu.matmul %164, %4, %cst_54 {dimension_numbers = #tpu.dot_dimension_numbers<[1], [0], [0], [1], [0, 0, 1, 1], [], []>} : vector<2x32xf32>, vector<32x128xf32>, vector<2x128xf32> -> vector<2x128xf32>
    %166 = arith.addf %165, %146 : vector<2x128xf32>
    %167 = arith.negf %166 : vector<2x128xf32>
    %168 = math.exp %167 : vector<2x128xf32>
    %cst_55 = arith.constant 1.000000e+00 : f32
    %169 = vector.broadcast %cst_55 : f32 to vector<2x128xf32>
    %170 = arith.addf %169, %168 : vector<2x128xf32>
    %171 = arith.divf %169, %170 : vector<2x128xf32>
    %172 = math.tanh %166 : vector<2x128xf32>
    %173 = vector.extract_strided_slice %171 {offsets = [0, 0], sizes = [2, 32], strides = [1, 1]} : vector<2x128xf32> to vector<2x32xf32>
    %174 = vector.extract_strided_slice %171 {offsets = [0, 32], sizes = [2, 32], strides = [1, 1]} : vector<2x128xf32> to vector<2x32xf32>
    %175 = vector.extract_strided_slice %172 {offsets = [0, 64], sizes = [2, 32], strides = [1, 1]} : vector<2x128xf32> to vector<2x32xf32>
    %176 = vector.extract_strided_slice %171 {offsets = [0, 96], sizes = [2, 32], strides = [1, 1]} : vector<2x128xf32> to vector<2x32xf32>
    %177 = arith.mulf %174, %138 : vector<2x32xf32>
    %178 = arith.mulf %173, %175 : vector<2x32xf32>
    %179 = arith.addf %177, %178 : vector<2x32xf32>
    %180 = math.tanh %179 : vector<2x32xf32>
    %181 = arith.mulf %176, %180 : vector<2x32xf32>
    %182 = arith.index_cast %143 : i32 to index
    %c0_56 = arith.constant 0 : index
    %183 = vector.load %arg16[%182, %c0_56] : memref<16x32xf32, #tpu.memory_space<vmem>>, vector<2x32xf32>
    tpu.vector_store %arg16[%182, %c0_56], %181 {strides = array<i32>} : memref<16x32xf32, #tpu.memory_space<vmem>>, vector<2x32xf32>,
    %c4_i32 = arith.constant 4 : i32
    %c2_i32_57 = arith.constant 2 : i32
    %184 = arith.muli %c4_i32, %c2_i32_57 : i32
    %cst_58 = arith.constant dense<0.000000e+00> : vector<2x128xf32>
    %185 = tpu.matmul %164, %3, %cst_58 {dimension_numbers = #tpu.dot_dimension_numbers<[1], [0], [0], [1], [0, 0, 1, 1], [], []>} : vector<2x32xf32>, vector<32x128xf32>, vector<2x128xf32> -> vector<2x128xf32>
    %cst_59 = arith.constant dense<0.000000e+00> : vector<2x128xf32>
    %186 = tpu.matmul %181, %5, %cst_59 {dimension_numbers = #tpu.dot_dimension_numbers<[1], [0], [0], [1], [0, 0, 1, 1], [], []>} : vector<2x32xf32>, vector<32x128xf32>, vector<2x128xf32> -> vector<2x128xf32>
    %187 = arith.addf %186, %8 : vector<2x128xf32>
    %188 = arith.index_cast %184 : i32 to index
    %c0_60 = arith.constant 0 : index
    %189 = vector.load %arg15[%188, %c0_60] : memref<16x128xf32, #tpu.memory_space<vmem>>, vector<2x128xf32>
    %190 = arith.addf %189, %185 : vector<2x128xf32>
    %191 = arith.negf %190 : vector<2x128xf32>
    %192 = math.exp %191 : vector<2x128xf32>
    %cst_61 = arith.constant 1.000000e+00 : f32
    %193 = vector.broadcast %cst_61 : f32 to vector<2x128xf32>
    %194 = arith.addf %193, %192 : vector<2x128xf32>
    %195 = arith.divf %193, %194 : vector<2x128xf32>
    %196 = math.tanh %190 : vector<2x128xf32>
    %197 = vector.extract_strided_slice %195 {offsets = [0, 0], sizes = [2, 32], strides = [1, 1]} : vector<2x128xf32> to vector<2x32xf32>
    %198 = vector.extract_strided_slice %195 {offsets = [0, 32], sizes = [2, 32], strides = [1, 1]} : vector<2x128xf32> to vector<2x32xf32>
    %199 = vector.extract_strided_slice %196 {offsets = [0, 64], sizes = [2, 32], strides = [1, 1]} : vector<2x128xf32> to vector<2x32xf32>
    %200 = vector.extract_strided_slice %195 {offsets = [0, 96], sizes = [2, 32], strides = [1, 1]} : vector<2x128xf32> to vector<2x32xf32>
    %201 = arith.mulf %198, %162 : vector<2x32xf32>
    %202 = arith.mulf %197, %199 : vector<2x32xf32>
    %203 = arith.addf %201, %202 : vector<2x32xf32>
    %204 = math.tanh %203 : vector<2x32xf32>
    %205 = arith.mulf %200, %204 : vector<2x32xf32>
    %cst_62 = arith.constant dense<0.000000e+00> : vector<2x128xf32>
    %206 = tpu.matmul %205, %4, %cst_62 {dimension_numbers = #tpu.dot_dimension_numbers<[1], [0], [0], [1], [0, 0, 1, 1], [], []>} : vector<2x32xf32>, vector<32x128xf32>, vector<2x128xf32> -> vector<2x128xf32>
    %207 = arith.addf %206, %187 : vector<2x128xf32>
    %208 = arith.negf %207 : vector<2x128xf32>
    %209 = math.exp %208 : vector<2x128xf32>
    %cst_63 = arith.constant 1.000000e+00 : f32
    %210 = vector.broadcast %cst_63 : f32 to vector<2x128xf32>
    %211 = arith.addf %210, %209 : vector<2x128xf32>
    %212 = arith.divf %210, %211 : vector<2x128xf32>
    %213 = math.tanh %207 : vector<2x128xf32>
    %214 = vector.extract_strided_slice %212 {offsets = [0, 0], sizes = [2, 32], strides = [1, 1]} : vector<2x128xf32> to vector<2x32xf32>
    %215 = vector.extract_strided_slice %212 {offsets = [0, 32], sizes = [2, 32], strides = [1, 1]} : vector<2x128xf32> to vector<2x32xf32>
    %216 = vector.extract_strided_slice %213 {offsets = [0, 64], sizes = [2, 32], strides = [1, 1]} : vector<2x128xf32> to vector<2x32xf32>
    %217 = vector.extract_strided_slice %212 {offsets = [0, 96], sizes = [2, 32], strides = [1, 1]} : vector<2x128xf32> to vector<2x32xf32>
    %218 = arith.mulf %215, %179 : vector<2x32xf32>
    %219 = arith.mulf %214, %216 : vector<2x32xf32>
    %220 = arith.addf %218, %219 : vector<2x32xf32>
    %221 = math.tanh %220 : vector<2x32xf32>
    %222 = arith.mulf %217, %221 : vector<2x32xf32>
    %223 = arith.index_cast %184 : i32 to index
    %c0_64 = arith.constant 0 : index
    %224 = vector.load %arg16[%223, %c0_64] : memref<16x32xf32, #tpu.memory_space<vmem>>, vector<2x32xf32>
    tpu.vector_store %arg16[%223, %c0_64], %222 {strides = array<i32>} : memref<16x32xf32, #tpu.memory_space<vmem>>, vector<2x32xf32>,
    %c5_i32 = arith.constant 5 : i32
    %c2_i32_65 = arith.constant 2 : i32
    %225 = arith.muli %c5_i32, %c2_i32_65 : i32
    %cst_66 = arith.constant dense<0.000000e+00> : vector<2x128xf32>
    %226 = tpu.matmul %205, %3, %cst_66 {dimension_numbers = #tpu.dot_dimension_numbers<[1], [0], [0], [1], [0, 0, 1, 1], [], []>} : vector<2x32xf32>, vector<32x128xf32>, vector<2x128xf32> -> vector<2x128xf32>
    %cst_67 = arith.constant dense<0.000000e+00> : vector<2x128xf32>
    %227 = tpu.matmul %222, %5, %cst_67 {dimension_numbers = #tpu.dot_dimension_numbers<[1], [0], [0], [1], [0, 0, 1, 1], [], []>} : vector<2x32xf32>, vector<32x128xf32>, vector<2x128xf32> -> vector<2x128xf32>
    %228 = arith.addf %227, %8 : vector<2x128xf32>
    %229 = arith.index_cast %225 : i32 to index
    %c0_68 = arith.constant 0 : index
    %230 = vector.load %arg15[%229, %c0_68] : memref<16x128xf32, #tpu.memory_space<vmem>>, vector<2x128xf32>
    %231 = arith.addf %230, %226 : vector<2x128xf32>
    %232 = arith.negf %231 : vector<2x128xf32>
    %233 = math.exp %232 : vector<2x128xf32>
    %cst_69 = arith.constant 1.000000e+00 : f32
    %234 = vector.broadcast %cst_69 : f32 to vector<2x128xf32>
    %235 = arith.addf %234, %233 : vector<2x128xf32>
    %236 = arith.divf %234, %235 : vector<2x128xf32>
    %237 = math.tanh %231 : vector<2x128xf32>
    %238 = vector.extract_strided_slice %236 {offsets = [0, 0], sizes = [2, 32], strides = [1, 1]} : vector<2x128xf32> to vector<2x32xf32>
    %239 = vector.extract_strided_slice %236 {offsets = [0, 32], sizes = [2, 32], strides = [1, 1]} : vector<2x128xf32> to vector<2x32xf32>
    %240 = vector.extract_strided_slice %237 {offsets = [0, 64], sizes = [2, 32], strides = [1, 1]} : vector<2x128xf32> to vector<2x32xf32>
    %241 = vector.extract_strided_slice %236 {offsets = [0, 96], sizes = [2, 32], strides = [1, 1]} : vector<2x128xf32> to vector<2x32xf32>
    %242 = arith.mulf %239, %203 : vector<2x32xf32>
    %243 = arith.mulf %238, %240 : vector<2x32xf32>
    %244 = arith.addf %242, %243 : vector<2x32xf32>
    %245 = math.tanh %244 : vector<2x32xf32>
    %246 = arith.mulf %241, %245 : vector<2x32xf32>
    %cst_70 = arith.constant dense<0.000000e+00> : vector<2x128xf32>
    %247 = tpu.matmul %246, %4, %cst_70 {dimension_numbers = #tpu.dot_dimension_numbers<[1], [0], [0], [1], [0, 0, 1, 1], [], []>} : vector<2x32xf32>, vector<32x128xf32>, vector<2x128xf32> -> vector<2x128xf32>
    %248 = arith.addf %247, %228 : vector<2x128xf32>
    %249 = arith.negf %248 : vector<2x128xf32>
    %250 = math.exp %249 : vector<2x128xf32>
    %cst_71 = arith.constant 1.000000e+00 : f32
    %251 = vector.broadcast %cst_71 : f32 to vector<2x128xf32>
    %252 = arith.addf %251, %250 : vector<2x128xf32>
    %253 = arith.divf %251, %252 : vector<2x128xf32>
    %254 = math.tanh %248 : vector<2x128xf32>
    %255 = vector.extract_strided_slice %253 {offsets = [0, 0], sizes = [2, 32], strides = [1, 1]} : vector<2x128xf32> to vector<2x32xf32>
    %256 = vector.extract_strided_slice %253 {offsets = [0, 32], sizes = [2, 32], strides = [1, 1]} : vector<2x128xf32> to vector<2x32xf32>
    %257 = vector.extract_strided_slice %254 {offsets = [0, 64], sizes = [2, 32], strides = [1, 1]} : vector<2x128xf32> to vector<2x32xf32>
    %258 = vector.extract_strided_slice %253 {offsets = [0, 96], sizes = [2, 32], strides = [1, 1]} : vector<2x128xf32> to vector<2x32xf32>
    %259 = arith.mulf %256, %220 : vector<2x32xf32>
    %260 = arith.mulf %255, %257 : vector<2x32xf32>
    %261 = arith.addf %259, %260 : vector<2x32xf32>
    %262 = math.tanh %261 : vector<2x32xf32>
    %263 = arith.mulf %258, %262 : vector<2x32xf32>
    %264 = arith.index_cast %225 : i32 to index
    %c0_72 = arith.constant 0 : index
    %265 = vector.load %arg16[%264, %c0_72] : memref<16x32xf32, #tpu.memory_space<vmem>>, vector<2x32xf32>
    tpu.vector_store %arg16[%264, %c0_72], %263 {strides = array<i32>} : memref<16x32xf32, #tpu.memory_space<vmem>>, vector<2x32xf32>,
    %c6_i32 = arith.constant 6 : i32
    %c2_i32_73 = arith.constant 2 : i32
    %266 = arith.muli %c6_i32, %c2_i32_73 : i32
    %cst_74 = arith.constant dense<0.000000e+00> : vector<2x128xf32>
    %267 = tpu.matmul %246, %3, %cst_74 {dimension_numbers = #tpu.dot_dimension_numbers<[1], [0], [0], [1], [0, 0, 1, 1], [], []>} : vector<2x32xf32>, vector<32x128xf32>, vector<2x128xf32> -> vector<2x128xf32>
    %cst_75 = arith.constant dense<0.000000e+00> : vector<2x128xf32>
    %268 = tpu.matmul %263, %5, %cst_75 {dimension_numbers = #tpu.dot_dimension_numbers<[1], [0], [0], [1], [0, 0, 1, 1], [], []>} : vector<2x32xf32>, vector<32x128xf32>, vector<2x128xf32> -> vector<2x128xf32>
    %269 = arith.addf %268, %8 : vector<2x128xf32>
    %270 = arith.index_cast %266 : i32 to index
    %c0_76 = arith.constant 0 : index
    %271 = vector.load %arg15[%270, %c0_76] : memref<16x128xf32, #tpu.memory_space<vmem>>, vector<2x128xf32>
    %272 = arith.addf %271, %267 : vector<2x128xf32>
    %273 = arith.negf %272 : vector<2x128xf32>
    %274 = math.exp %273 : vector<2x128xf32>
    %cst_77 = arith.constant 1.000000e+00 : f32
    %275 = vector.broadcast %cst_77 : f32 to vector<2x128xf32>
    %276 = arith.addf %275, %274 : vector<2x128xf32>
    %277 = arith.divf %275, %276 : vector<2x128xf32>
    %278 = math.tanh %272 : vector<2x128xf32>
    %279 = vector.extract_strided_slice %277 {offsets = [0, 0], sizes = [2, 32], strides = [1, 1]} : vector<2x128xf32> to vector<2x32xf32>
    %280 = vector.extract_strided_slice %277 {offsets = [0, 32], sizes = [2, 32], strides = [1, 1]} : vector<2x128xf32> to vector<2x32xf32>
    %281 = vector.extract_strided_slice %278 {offsets = [0, 64], sizes = [2, 32], strides = [1, 1]} : vector<2x128xf32> to vector<2x32xf32>
    %282 = vector.extract_strided_slice %277 {offsets = [0, 96], sizes = [2, 32], strides = [1, 1]} : vector<2x128xf32> to vector<2x32xf32>
    %283 = arith.mulf %280, %244 : vector<2x32xf32>
    %284 = arith.mulf %279, %281 : vector<2x32xf32>
    %285 = arith.addf %283, %284 : vector<2x32xf32>
    %286 = math.tanh %285 : vector<2x32xf32>
    %287 = arith.mulf %282, %286 : vector<2x32xf32>
    %cst_78 = arith.constant dense<0.000000e+00> : vector<2x128xf32>
    %288 = tpu.matmul %287, %4, %cst_78 {dimension_numbers = #tpu.dot_dimension_numbers<[1], [0], [0], [1], [0, 0, 1, 1], [], []>} : vector<2x32xf32>, vector<32x128xf32>, vector<2x128xf32> -> vector<2x128xf32>
    %289 = arith.addf %288, %269 : vector<2x128xf32>
    %290 = arith.negf %289 : vector<2x128xf32>
    %291 = math.exp %290 : vector<2x128xf32>
    %cst_79 = arith.constant 1.000000e+00 : f32
    %292 = vector.broadcast %cst_79 : f32 to vector<2x128xf32>
    %293 = arith.addf %292, %291 : vector<2x128xf32>
    %294 = arith.divf %292, %293 : vector<2x128xf32>
    %295 = math.tanh %289 : vector<2x128xf32>
    %296 = vector.extract_strided_slice %294 {offsets = [0, 0], sizes = [2, 32], strides = [1, 1]} : vector<2x128xf32> to vector<2x32xf32>
    %297 = vector.extract_strided_slice %294 {offsets = [0, 32], sizes = [2, 32], strides = [1, 1]} : vector<2x128xf32> to vector<2x32xf32>
    %298 = vector.extract_strided_slice %295 {offsets = [0, 64], sizes = [2, 32], strides = [1, 1]} : vector<2x128xf32> to vector<2x32xf32>
    %299 = vector.extract_strided_slice %294 {offsets = [0, 96], sizes = [2, 32], strides = [1, 1]} : vector<2x128xf32> to vector<2x32xf32>
    %300 = arith.mulf %297, %261 : vector<2x32xf32>
    %301 = arith.mulf %296, %298 : vector<2x32xf32>
    %302 = arith.addf %300, %301 : vector<2x32xf32>
    %303 = math.tanh %302 : vector<2x32xf32>
    %304 = arith.mulf %299, %303 : vector<2x32xf32>
    %305 = arith.index_cast %266 : i32 to index
    %c0_80 = arith.constant 0 : index
    %306 = vector.load %arg16[%305, %c0_80] : memref<16x32xf32, #tpu.memory_space<vmem>>, vector<2x32xf32>
    tpu.vector_store %arg16[%305, %c0_80], %304 {strides = array<i32>} : memref<16x32xf32, #tpu.memory_space<vmem>>, vector<2x32xf32>,
    %c7_i32 = arith.constant 7 : i32
    %c2_i32_81 = arith.constant 2 : i32
    %307 = arith.muli %c7_i32, %c2_i32_81 : i32
    %cst_82 = arith.constant dense<0.000000e+00> : vector<2x128xf32>
    %308 = tpu.matmul %287, %3, %cst_82 {dimension_numbers = #tpu.dot_dimension_numbers<[1], [0], [0], [1], [0, 0, 1, 1], [], []>} : vector<2x32xf32>, vector<32x128xf32>, vector<2x128xf32> -> vector<2x128xf32>
    %cst_83 = arith.constant dense<0.000000e+00> : vector<2x128xf32>
    %309 = tpu.matmul %304, %5, %cst_83 {dimension_numbers = #tpu.dot_dimension_numbers<[1], [0], [0], [1], [0, 0, 1, 1], [], []>} : vector<2x32xf32>, vector<32x128xf32>, vector<2x128xf32> -> vector<2x128xf32>
    %310 = arith.addf %309, %8 : vector<2x128xf32>
    %311 = arith.index_cast %307 : i32 to index
    %c0_84 = arith.constant 0 : index
    %312 = vector.load %arg15[%311, %c0_84] : memref<16x128xf32, #tpu.memory_space<vmem>>, vector<2x128xf32>
    %313 = arith.addf %312, %308 : vector<2x128xf32>
    %314 = arith.negf %313 : vector<2x128xf32>
    %315 = math.exp %314 : vector<2x128xf32>
    %cst_85 = arith.constant 1.000000e+00 : f32
    %316 = vector.broadcast %cst_85 : f32 to vector<2x128xf32>
    %317 = arith.addf %316, %315 : vector<2x128xf32>
    %318 = arith.divf %316, %317 : vector<2x128xf32>
    %319 = math.tanh %313 : vector<2x128xf32>
    %320 = vector.extract_strided_slice %318 {offsets = [0, 0], sizes = [2, 32], strides = [1, 1]} : vector<2x128xf32> to vector<2x32xf32>
    %321 = vector.extract_strided_slice %318 {offsets = [0, 32], sizes = [2, 32], strides = [1, 1]} : vector<2x128xf32> to vector<2x32xf32>
    %322 = vector.extract_strided_slice %319 {offsets = [0, 64], sizes = [2, 32], strides = [1, 1]} : vector<2x128xf32> to vector<2x32xf32>
    %323 = vector.extract_strided_slice %318 {offsets = [0, 96], sizes = [2, 32], strides = [1, 1]} : vector<2x128xf32> to vector<2x32xf32>
    %324 = arith.mulf %321, %285 : vector<2x32xf32>
    %325 = arith.mulf %320, %322 : vector<2x32xf32>
    %326 = arith.addf %324, %325 : vector<2x32xf32>
    %327 = math.tanh %326 : vector<2x32xf32>
    %328 = arith.mulf %323, %327 : vector<2x32xf32>
    %cst_86 = arith.constant dense<0.000000e+00> : vector<2x128xf32>
    %329 = tpu.matmul %328, %4, %cst_86 {dimension_numbers = #tpu.dot_dimension_numbers<[1], [0], [0], [1], [0, 0, 1, 1], [], []>} : vector<2x32xf32>, vector<32x128xf32>, vector<2x128xf32> -> vector<2x128xf32>
    %330 = arith.addf %329, %310 : vector<2x128xf32>
    %331 = arith.negf %330 : vector<2x128xf32>
    %332 = math.exp %331 : vector<2x128xf32>
    %cst_87 = arith.constant 1.000000e+00 : f32
    %333 = vector.broadcast %cst_87 : f32 to vector<2x128xf32>
    %334 = arith.addf %333, %332 : vector<2x128xf32>
    %335 = arith.divf %333, %334 : vector<2x128xf32>
    %336 = math.tanh %330 : vector<2x128xf32>
    %337 = vector.extract_strided_slice %335 {offsets = [0, 0], sizes = [2, 32], strides = [1, 1]} : vector<2x128xf32> to vector<2x32xf32>
    %338 = vector.extract_strided_slice %335 {offsets = [0, 32], sizes = [2, 32], strides = [1, 1]} : vector<2x128xf32> to vector<2x32xf32>
    %339 = vector.extract_strided_slice %336 {offsets = [0, 64], sizes = [2, 32], strides = [1, 1]} : vector<2x128xf32> to vector<2x32xf32>
    %340 = vector.extract_strided_slice %335 {offsets = [0, 96], sizes = [2, 32], strides = [1, 1]} : vector<2x128xf32> to vector<2x32xf32>
    %341 = arith.mulf %338, %302 : vector<2x32xf32>
    %342 = arith.mulf %337, %339 : vector<2x32xf32>
    %343 = arith.addf %341, %342 : vector<2x32xf32>
    %344 = math.tanh %343 : vector<2x32xf32>
    %345 = arith.mulf %340, %344 : vector<2x32xf32>
    %346 = arith.index_cast %307 : i32 to index
    %c0_88 = arith.constant 0 : index
    %347 = vector.load %arg16[%346, %c0_88] : memref<16x32xf32, #tpu.memory_space<vmem>>, vector<2x32xf32>
    tpu.vector_store %arg16[%346, %c0_88], %345 {strides = array<i32>} : memref<16x32xf32, #tpu.memory_space<vmem>>, vector<2x32xf32>,
    %c8_i32 = arith.constant 8 : i32
    %c0_89 = arith.constant 0 : index
    %c0_90 = arith.constant 0 : index
    %348 = vector.load %arg11[%c0_89, %c0_90] : memref<2x32xf32, #tpu.memory_space<vmem>>, vector<2x32xf32>
    tpu.vector_store %arg11[%c0_89, %c0_90], %328 {strides = array<i32>} : memref<2x32xf32, #tpu.memory_space<vmem>>, vector<2x32xf32>,
    %c0_91 = arith.constant 0 : index
    %c0_92 = arith.constant 0 : index
    %349 = vector.load %arg12[%c0_91, %c0_92] : memref<2x32xf32, #tpu.memory_space<vmem>>, vector<2x32xf32>
    tpu.vector_store %arg12[%c0_91, %c0_92], %326 {strides = array<i32>} : memref<2x32xf32, #tpu.memory_space<vmem>>, vector<2x32xf32>,
    %c0_93 = arith.constant 0 : index
    %c0_94 = arith.constant 0 : index
    %350 = vector.load %arg13[%c0_93, %c0_94] : memref<2x32xf32, #tpu.memory_space<vmem>>, vector<2x32xf32>
    tpu.vector_store %arg13[%c0_93, %c0_94], %345 {strides = array<i32>} : memref<2x32xf32, #tpu.memory_space<vmem>>, vector<2x32xf32>,
    %c0_95 = arith.constant 0 : index
    %c0_96 = arith.constant 0 : index
    %351 = vector.load %arg14[%c0_95, %c0_96] : memref<2x32xf32, #tpu.memory_space<vmem>>, vector<2x32xf32>
    tpu.vector_store %arg14[%c0_95, %c0_96], %343 {strides = array<i32>} : memref<2x32xf32, #tpu.memory_space<vmem>>, vector<2x32xf32>,
    %c0_97 = arith.constant 0 : index
    %c0_98 = arith.constant 0 : index
    %352 = vector.load %arg16[%c0_97, %c0_98] : memref<16x32xf32, #tpu.memory_space<vmem>>, vector<16x32xf32>
    %c0_99 = arith.constant 0 : index
    %c0_100 = arith.constant 0 : index
    %353 = vector.load %arg8[%c0_99, %c0_100] : memref<32x128xf32, #tpu.memory_space<vmem>>, vector<32x128xf32>
    %cst_101 = arith.constant dense<0.000000e+00> : vector<16x128xf32>
    %354 = tpu.matmul %352, %353, %cst_101 {dimension_numbers = #tpu.dot_dimension_numbers<[1], [0], [0], [1], [0, 0, 1, 1], [], []>} : vector<16x32xf32>, vector<32x128xf32>, vector<16x128xf32> -> vector<16x128xf32>
    %c0_102 = arith.constant 0 : index
    %c0_103 = arith.constant 0 : index
    %355 = vector.load %arg9[%c0_102, %c0_103] : memref<1x128xf32, #tpu.memory_space<vmem>>, vector<1x128xf32>
    %356 = vector.broadcast %355 : vector<1x128xf32> to vector<16x128xf32>
    %357 = arith.addf %354, %356 : vector<16x128xf32>
    %cst_104 = arith.constant dense<0xFF800000> : vector<16xf32>
    %358 = vector.multi_reduction <maximumf>, %357, %cst_104 [1] : vector<16x128xf32> to vector<16xf32>
    %359 = vector.shape_cast %358 : vector<16xf32> to vector<16x1xf32>
    %360 = vector.broadcast %359 : vector<16x1xf32> to vector<16x128xf32>
    %361 = arith.subf %357, %360 : vector<16x128xf32>
    %362 = math.exp %361 : vector<16x128xf32>
    %cst_105 = arith.constant dense<0.000000e+00> : vector<16xf32>
    %363 = vector.multi_reduction <add>, %362, %cst_105 [1] : vector<16x128xf32> to vector<16xf32>
    %364 = vector.shape_cast %363 : vector<16xf32> to vector<16x1xf32>
    %365 = vector.broadcast %364 : vector<16x1xf32> to vector<16x128xf32>
    %366 = arith.divf %362, %365 : vector<16x128xf32>
    %c0_106 = arith.constant 0 : index
    %c0_107 = arith.constant 0 : index
    %367 = vector.load %arg10[%c0_106, %c0_107] : memref<16x128xf32, #tpu.memory_space<vmem>>, vector<16x128xf32>
    tpu.vector_store %arg10[%c0_106, %c0_107], %366 {strides = array<i32>} : memref<16x128xf32, #tpu.memory_space<vmem>>, vector<16x128xf32>,
    return
  }
  func.func @transform_0(%arg0: i32) -> (i32, i32) {
    %c0_i32 = arith.constant 0 : i32
    %c0_i32_0 = arith.constant 0 : i32
    return %arg0, %c0_i32 : i32, i32
  }
  func.func @transform_1(%arg0: i32) -> (i32, i32) {
    %c0_i32 = arith.constant 0 : i32
    %c0_i32_0 = arith.constant 0 : i32
    %c0_i32_1 = arith.constant 0 : i32
    return %c0_i32, %c0_i32_0 : i32, i32
  }
  func.func @transform_2(%arg0: i32) -> (i32, i32) {
    %c0_i32 = arith.constant 0 : i32
    %c0_i32_0 = arith.constant 0 : i32
    %c0_i32_1 = arith.constant 0 : i32
    return %c0_i32, %c0_i32_0 : i32, i32
  }
  func.func @transform_3(%arg0: i32) -> (i32, i32) {
    %c0_i32 = arith.constant 0 : i32
    %c0_i32_0 = arith.constant 0 : i32
    %c0_i32_1 = arith.constant 0 : i32
    return %c0_i32, %c0_i32_0 : i32, i32
  }
  func.func @transform_4(%arg0: i32) -> (i32, i32) {
    %c0_i32 = arith.constant 0 : i32
    %c0_i32_0 = arith.constant 0 : i32
    %c0_i32_1 = arith.constant 0 : i32
    return %c0_i32, %c0_i32_0 : i32, i32
  }
  func.func @transform_5(%arg0: i32) -> (i32, i32) {
    %c0_i32 = arith.constant 0 : i32
    %c0_i32_0 = arith.constant 0 : i32
    %c0_i32_1 = arith.constant 0 : i32
    return %c0_i32, %c0_i32_0 : i32, i32
  }
  func.func @transform_6(%arg0: i32) -> (i32, i32) {
    %c0_i32 = arith.constant 0 : i32
    %c0_i32_0 = arith.constant 0 : i32
    %c0_i32_1 = arith.constant 0 : i32
    return %c0_i32, %c0_i32_0 : i32, i32
  }
  func.func @transform_7(%arg0: i32) -> (i32, i32) {
    %c0_i32 = arith.constant 0 : i32
    %c0_i32_0 = arith.constant 0 : i32
    %c0_i32_1 = arith.constant 0 : i32
    return %c0_i32, %c0_i32_0 : i32, i32
  }
  func.func @transform_8(%arg0: i32) -> (i32, i32) {
    %c0_i32 = arith.constant 0 : i32
    %c0_i32_0 = arith.constant 0 : i32
    %c0_i32_1 = arith.constant 0 : i32
    return %c0_i32, %c0_i32_0 : i32, i32
  }
  func.func @transform_9(%arg0: i32) -> (i32, i32) {
    %c0_i32 = arith.constant 0 : i32
    %c0_i32_0 = arith.constant 0 : i32
    return %arg0, %c0_i32 : i32, i32
  }
}

</mosaic_0001>

<llo_original>
// kernel: seq_classifier_forward.1
$region0: #{seq_classifier_forward.1}
  #allocation0 [shape = 'u32[]', space=smem, size = 0x4, offset = 0x4, fixed_abs, tag = 'smem constant byte address 0x4 - core index']
  #allocation1 [shape = 'u32[144,128]{1,0:T(1,128)}', space=vmem, size = 0x12000, scoped, tag = 'internal scratch']
  #allocation2 [shape = 'f32[2,32]{1,0:T(2,128)}', space=vmem, size = 0x400, scoped, tag = 'scratch operand']
  #allocation3 [shape = 'f32[2,32]{1,0:T(2,128)}', space=vmem, size = 0x400, scoped, tag = 'scratch operand']
  #allocation4 [shape = 'f32[2,32]{1,0:T(2,128)}', space=vmem, size = 0x400, scoped, tag = 'scratch operand']
  #allocation5 [shape = 'f32[2,32]{1,0:T(2,128)}', space=vmem, size = 0x400, scoped, tag = 'scratch operand']
  #allocation6 [shape = 'f32[16,128]{1,0:T(8,128)}', space=vmem, size = 0x2000, scoped, tag = 'scratch operand']
  #allocation7 [shape = 'f32[16,32]{1,0:T(8,128)}', space=vmem, size = 0x2000, scoped, tag = 'scratch operand']
  %s0 = inlined_call_operand.vmem [shape: f32[16,32], index: 0, kind: input, shape index: {}]
  %s1 = inlined_call_operand.vmem [shape: f32[32,128], index: 1, kind: input, shape index: {}]
  %s2 = inlined_call_operand.vmem [shape: f32[32,128], index: 2, kind: input, shape index: {}]
  %s3 = inlined_call_operand.vmem [shape: f32[1,128], index: 3, kind: input, shape index: {}]
  %s4 = inlined_call_operand.vmem [shape: f32[32,128], index: 4, kind: input, shape index: {}]
  %s5 = inlined_call_operand.hbm [shape: f32[32,128], index: 5, kind: input, shape index: {}]
  %s6 = inlined_call_operand.vmem [shape: f32[1,128], index: 6, kind: input, shape index: {}]
  %s7 = inlined_call_operand.vmem [shape: f32[32,128], index: 7, kind: input, shape index: {}]
  %s8 = inlined_call_operand.vmem [shape: f32[1,128], index: 8, kind: input, shape index: {}]
  %s9 = inlined_call_operand.hbm [shape: f32[16,128], index: 9, kind: output, shape index: {}]
  %s10 = sld [smem:[#allocation0]]
  $region54: #{seq_classifier_forward.1} parent=0
    _
  %s12 = ssub.s32 1, %s10
  %s13 = scalar_select 0, %s12, %s10
  $region1: #{seq_classifier_forward.1} parent=0
    #allocation8 [shape = 'u8[16384]{0}', space=vmem, size = 0x4000, scoped, tag = 'input window, operand 5, single buffered']
    #allocation9 [shape = 's32[1]{0}', space=sflag, size = 0x4, scoped, tag = 'scoped memory for seq_classifier_forward.1']
    #allocation10 [shape = 's32[1]{0}', space=sflag, size = 0x4, scoped, tag = 'scoped memory for seq_classifier_forward.1']
    #allocation11 [shape = 'u8[8192]{0}', space=vmem, size = 0x2000, scoped, tag = 'output window, operand 0, single buffered']
    %14 = vsyncpa [#allocation9], 0
    %15 = vsyncpa [#allocation10], 0
    // Predicated region
    $region2: #{seq_classifier_forward.1} parent=1 // pred_check
      _
    $region3: #{seq_classifier_forward.1} parent=1 // pred_check_branch
      %17 = sbr.rel (0) target = $region5
    $region4: #{seq_classifier_forward.1} parent=1 // pred_region
      _
    $region5: #{seq_classifier_forward.1} parent=1 // pred_fallthru
      _
    // Predicated region
    $region6: #{seq_classifier_forward.1} parent=1 // pred_check
      _
    $region7: #{seq_classifier_forward.1} parent=1 // pred_check_branch
      %19 = sbr.rel (0) target = $region9
    $region8: #{seq_classifier_forward.1} parent=1 // pred_region
      _
    $region9: #{seq_classifier_forward.1} parent=1 // pred_fallthru
      _
    // Predicated region
    $region10: #{seq_classifier_forward.1} parent=1 // pred_check
      _
    $region11: #{seq_classifier_forward.1} parent=1 // pred_check_branch
      %21 = sbr.rel (0) target = $region13
    $region12: #{seq_classifier_forward.1} parent=1 // pred_region
      _
    $region13: #{seq_classifier_forward.1} parent=1 // pred_fallthru
      _
    // Predicated region
    $region14: #{seq_classifier_forward.1} parent=1 // pred_check
      _
    $region15: #{seq_classifier_forward.1} parent=1 // pred_check_branch
      %23 = sbr.rel (0) target = $region17
    $region16: #{seq_classifier_forward.1} parent=1 // pred_region
      _
    $region17: #{seq_classifier_forward.1} parent=1 // pred_fallthru
      _
    // Predicated region
    $region18: #{seq_classifier_forward.1} parent=1 // pred_check
      _
    $region19: #{seq_classifier_forward.1} parent=1 // pred_check_branch
      %25 = sbr.rel (0) target = $region21
    $region20: #{seq_classifier_forward.1} parent=1 // pred_region
      _
    $region21: #{seq_classifier_forward.1} parent=1 // pred_fallthru
      _
    // Predicated region
    $region22: #{seq_classifier_forward.1} parent=1 // pred_check
      _
    $region23: #{seq_classifier_forward.1} parent=1 // pred_check_branch
      %27 = sbr.rel (0) target = $region25
    $region24: #{seq_classifier_forward.1} parent=1 // pred_region
      %s29 = ssub.s32 512, 512
      %30 = vsyncadd [#allocation9], %s29
      %s31 = sshll.u32 [#allocation8], 4
      %s32 = int_to_ptr.vmem [resolvable:$true] %s31
      %37 = dma.hbm_to_vmem [thread:$0]  %s5, 512, %s32, [#allocation9], 128, 128, 8
    $region25: #{seq_classifier_forward.1} parent=1 // pred_fallthru
      _
    // Predicated region
    $region26: #{seq_classifier_forward.1} parent=1 // pred_check
      _
    $region27: #{seq_classifier_forward.1} parent=1 // pred_check_branch
      %39 = sbr.rel (0) target = $region29
    $region28: #{seq_classifier_forward.1} parent=1 // pred_region
      _
    $region29: #{seq_classifier_forward.1} parent=1 // pred_fallthru
      _
    // Predicated region
    $region30: #{seq_classifier_forward.1} parent=1 // pred_check
      _
    $region31: #{seq_classifier_forward.1} parent=1 // pred_check_branch
      %41 = sbr.rel (0) target = $region33
    $region32: #{seq_classifier_forward.1} parent=1 // pred_region
      _
    $region33: #{seq_classifier_forward.1} parent=1 // pred_fallthru
      _
    // Predicated region
    $region34: #{seq_classifier_forward.1} parent=1 // pred_check
      _
    $region35: #{seq_classifier_forward.1} parent=1 // pred_check_branch
      %43 = sbr.rel (0) target = $region37
    $region36: #{seq_classifier_forward.1} parent=1 // pred_region
      _
    $region37: #{seq_classifier_forward.1} parent=1 // pred_fallthru
      _
    // Predicated region
    $region38: #{seq_classifier_forward.1} parent=1 // pred_check
      _
    $region39: #{seq_classifier_forward.1} parent=1 // pred_check_branch
      %45 = sbr.rel (0) target = $region41
    $region40: #{seq_classifier_forward.1} parent=1 // pred_region
      %46 = dma.done [#allocation9], 512
    $region41: #{seq_classifier_forward.1} parent=1 // pred_fallthru
      _
    %p47 = scmp.eq.s32.totalorder 0, 0
    // Predicated region
    $region42: #{seq_classifier_forward.1} parent=1 // pred_check
      %p48 = pneg %p47
    $region43: #{seq_classifier_forward.1} parent=1 // pred_check_branch
      %50 = sbr.rel (%p48) target = $region45
    $region44: #{seq_classifier_forward.1} parent=1 // pred_region
      %vm51 = vcmask 254976
      %52 = vst.msk [vmem:[#allocation2] sm:$0x3] %vm51, 0.0
      %53 = vst.msk [vmem:[#allocation3] sm:$0x3] %vm51, 0.0
      %54 = vst.msk [vmem:[#allocation4] sm:$0x3] %vm51, 0.0
      %55 = vst.msk [vmem:[#allocation5] sm:$0x3] %vm51, 0.0
    $region45: #{seq_classifier_forward.1} parent=1 // pred_fallthru
      _
    %v56 = vld [vmem:[%s2] sm:$0xff]
    %v57 = vld [vmem:[%s2 + $0x8] sm:$0xff]
    %v58 = vld [vmem:[%s2 + $0x10] sm:$0xff]
    %v59 = vld [vmem:[%s2 + $0x18] sm:$0xff]
    %v60 = vld [vmem:[%s4] sm:$0xff]
    %v61 = vld [vmem:[%s4 + $0x8] sm:$0xff]
    %v62 = vld [vmem:[%s4 + $0x10] sm:$0xff]
    %v63 = vld [vmem:[%s4 + $0x18] sm:$0xff]
    %v64 = vld [vmem:[#allocation8] sm:$0xff]
    %v65 = vld [vmem:[#allocation8 + $0x8] sm:$0xff]
    %v66 = vld [vmem:[#allocation8 + $0x10] sm:$0xff]
    %v67 = vld [vmem:[#allocation8 + $0x18] sm:$0xff]
    %v68 = vld [vmem:[%s6] sm:$0x1]
    %v70 = vlaneseq
    %v71 = vshrl.u32 %v70, 7
    %v72 = vsub.s32 0, %v71
    %v73 = vrot.slane %v68, %v72
    %v75 = vld [vmem:[%s0] sm:$0xff]
    %v76 = vld [vmem:[%s0 + $0x8] sm:$0xff]
    %v77 = vld [vmem:[%s1] sm:$0xff]
    %v78 = vld [vmem:[%s1 + $0x8] sm:$0xff]
    %v79 = vld [vmem:[%s1 + $0x10] sm:$0xff]
    %v80 = vld [vmem:[%s1 + $0x18] sm:$0xff]
    %v81 = vld [vmem:[%s3] sm:$0x1]
    %v83 = vlaneseq
    %v84 = vshrl.u32 %v83, 7
    %v85 = vsub.s32 0, %v84
    %v86 = vrot.slane %v81, %v85
    %vm88 = vcmask 261120
    %v90 = vsel %vm88, %v75, 0
    %v93 = vsel %vm88, %v76, 0
    %95 = vmatprep.subr.mxu0 0.0
    %96 = vmatpush1.msra.mxu0 %v77
    %97 = vmatprep.subr.mxu0 0.0
    %98 = vmatpush1.msra.mxu0 %v78
    %99 = vmatprep.subr.mxu0 0.0
    %100 = vmatpush1.msra.mxu0 %v79
    %101 = vmatprep.subr.mxu0 0.0
    %102 = vmatpush1.msra.mxu0 %v80
    %103 = vmatprep.subr.mxu0 0.0
    %104 = vmatpush1.msra.mxu0 0.0
    %105 = vmatprep.subr.mxu0 0.0
    %106 = vmatpush1.msra.mxu0 0.0
    %107 = vmatprep.subr.mxu0 0.0
    %108 = vmatpush1.msra.mxu0 0.0
    %109 = vmatprep.subr.mxu0 0.0
    %110 = vmatpush1.msra.mxu0 0.0
    %111 = vmatprep.subr.mxu0 0.0
    %112 = vmatpush1.msra.mxu0 0.0
    %113 = vmatprep.subr.mxu0 0.0
    %114 = vmatpush1.msra.mxu0 0.0
    %115 = vmatprep.subr.mxu0 0.0
    %116 = vmatpush1.msra.mxu0 0.0
    %117 = vmatprep.subr.mxu0 0.0
    %118 = vmatpush1.msra.mxu0 0.0
    %119 = vmatprep.subr.mxu0 0.0
    %120 = vmatpush1.msra.mxu0 0.0
    %121 = vmatprep.subr.mxu0 0.0
    %122 = vmatpush1.msra.mxu0 0.0
    %123 = vmatprep.subr.mxu0 0.0
    %124 = vmatpush1.msra.mxu0 0.0
    %125 = vmatprep.subr.mxu0 0.0
    %126 = vmatpush1.msra.mxu0 0.0
    %127 = vmatprep.subr.mxu0 0.0
    %128 = vmatpush1.msra.mxu0 0.0
    %129 = vmatprep.subr.mxu0 0.0
    %130 = vmatpush1.msra.mxu0 0.0
    %131 = vmatprep.subr.mxu0 0.0
    %132 = vmatpush1.msra.mxu0 0.0
    %133 = vmatprep.subr.mxu0 0.0
    %134 = vmatpush1.msra.mxu0 0.0
    %135 = vmatprep.subr.mxu0 0.0
    %136 = vmatpush1.msra.mxu0 0.0
    %137 = vmatprep.subr.mxu0 0.0
    %138 = vmatpush1.msra.mxu0 0.0
    %139 = vmatprep.subr.mxu0 0.0
    %140 = vmatpush1.msra.mxu0 0.0
    %141 = vmatprep.subr.mxu0 0.0
    %142 = vmatpush1.msra.mxu0 0.0
    %143 = vmatprep.subr.mxu0 0.0
    %144 = vmatpush1.msra.mxu0 0.0
    %145 = vmatprep.subr.mxu0 0.0
    %146 = vmatpush1.msra.mxu0 0.0
    %147 = vmatprep.subr.mxu0 0.0
    %148 = vmatpush1.msra.mxu0 0.0
    %149 = vmatprep.subr.mxu0 0.0
    %150 = vmatpush1.msra.mxu0 0.0
    %151 = vmatprep.subr.mxu0 0.0
    %152 = vmatpush1.msra.mxu0 0.0
    %153 = vmatprep.subr.mxu0 0.0
    %154 = vmatpush1.msra.mxu0 0.0
    %155 = vmatprep.subr.mxu0 0.0
    %156 = vmatpush1.msra.mxu0 0.0
    %157 = vmatprep.subr.mxu0 0.0
    %158 = vmatpush1.msra.mxu0 0.0
    %159 = vmatprep.mubr.f32.mxu0 0.0
    %160 = vmatmul.mubr.f32.gmra.mrb[0].mxu0 %v90
    %v161 = vpop.f32.mrb[0].mxu0
    %v162 = vadd.f32 %v86, %v161
    %v163 = vpop.f32.mrb[0].mxu0
    %164 = vmatprep.mubr.f32.mxu0 0.0
    %165 = vmatmul.mubr.f32.gmra.mrb[0].mxu0 %v93
    %v166 = vpop.f32.mrb[0].mxu0
    %v167 = vadd.f32 %v86, %v166
    %v168 = vpop.f32.mrb[0].mxu0
    %169 = vdwg.mxu0
    %170 = vst [vmem:[#allocation6] sm:$0xff] %v162
    %171 = vst [vmem:[#allocation6 + $0x8] sm:$0xff] %v167
    %v172 = vld [vmem:[#allocation2] sm:$0x3]
    %v173 = vld [vmem:[#allocation3] sm:$0x3]
    %v174 = vld [vmem:[#allocation4] sm:$0x3]
    %v175 = vld [vmem:[#allocation5] sm:$0x3]
    %v177 = vsel %vm88, %v172, 0
    %179 = vmatprep.subr.mxu0 0.0
    %180 = vmatpush1.msra.mxu0 %v56
    %181 = vmatprep.subr.mxu0 0.0
    %182 = vmatpush1.msra.mxu0 %v57
    %183 = vmatprep.subr.mxu0 0.0
    %184 = vmatpush1.msra.mxu0 %v58
    %185 = vmatprep.subr.mxu0 0.0
    %186 = vmatpush1.msra.mxu0 %v59
    %187 = vmatprep.subr.mxu0 0.0
    %188 = vmatpush1.msra.mxu0 0.0
    %189 = vmatprep.subr.mxu0 0.0
    %190 = vmatpush1.msra.mxu0 0.0
    %191 = vmatprep.subr.mxu0 0.0
    %192 = vmatpush1.msra.mxu0 0.0
    %193 = vmatprep.subr.mxu0 0.0
    %194 = vmatpush1.msra.mxu0 0.0
    %195 = vmatprep.subr.mxu0 0.0
    %196 = vmatpush1.msra.mxu0 0.0
    %197 = vmatprep.subr.mxu0 0.0
    %198 = vmatpush1.msra.mxu0 0.0
    %199 = vmatprep.subr.mxu0 0.0
    %200 = vmatpush1.msra.mxu0 0.0
    %201 = vmatprep.subr.mxu0 0.0
    %202 = vmatpush1.msra.mxu0 0.0
    %203 = vmatprep.subr.mxu0 0.0
    %204 = vmatpush1.msra.mxu0 0.0
    %205 = vmatprep.subr.mxu0 0.0
    %206 = vmatpush1.msra.mxu0 0.0
    %207 = vmatprep.subr.mxu0 0.0
    %208 = vmatpush1.msra.mxu0 0.0
    %209 = vmatprep.subr.mxu0 0.0
    %210 = vmatpush1.msra.mxu0 0.0
    %211 = vmatprep.subr.mxu0 0.0
    %212 = vmatpush1.msra.mxu0 0.0
    %213 = vmatprep.subr.mxu0 0.0
    %214 = vmatpush1.msra.mxu0 0.0
    %215 = vmatprep.subr.mxu0 0.0
    %216 = vmatpush1.msra.mxu0 0.0
    %217 = vmatprep.subr.mxu0 0.0
    %218 = vmatpush1.msra.mxu0 0.0
    %219 = vmatprep.subr.mxu0 0.0
    %220 = vmatpush1.msra.mxu0 0.0
    %221 = vmatprep.subr.mxu0 0.0
    %222 = vmatpush1.msra.mxu0 0.0
    %223 = vmatprep.subr.mxu0 0.0
    %224 = vmatpush1.msra.mxu0 0.0
    %225 = vmatprep.subr.mxu0 0.0
    %226 = vmatpush1.msra.mxu0 0.0
    %227 = vmatprep.subr.mxu0 0.0
    %228 = vmatpush1.msra.mxu0 0.0
    %229 = vmatprep.subr.mxu0 0.0
    %230 = vmatpush1.msra.mxu0 0.0
    %231 = vmatprep.subr.mxu0 0.0
    %232 = vmatpush1.msra.mxu0 0.0
    %233 = vmatprep.subr.mxu0 0.0
    %234 = vmatpush1.msra.mxu0 0.0
    %235 = vmatprep.subr.mxu0 0.0
    %236 = vmatpush1.msra.mxu0 0.0
    %237 = vmatprep.subr.mxu0 0.0
    %238 = vmatpush1.msra.mxu0 0.0
    %239 = vmatprep.subr.mxu0 0.0
    %240 = vmatpush1.msra.mxu0 0.0
    %241 = vmatprep.subr.mxu0 0.0
    %242 = vmatpush1.msra.mxu0 0.0
    %243 = vmatprep.mubr.f32.mxu0 0.0
    %244 = vmatmul.mubr.f32.gmra.mrb[0].mxu0 %v177
    %v245 = vpop.f32.mrb[0].mxu0
    %v246 = vadd.f32 0.0, %v245
    %v247 = vpop.f32.mrb[0].mxu0
    %248 = vdwg.mxu0
    %v250 = vsel %vm88, %v174, 0
    %252 = vmatprep.subr.mxu0 0.0
    %253 = vmatpush1.msra.mxu0 %v64
    %254 = vmatprep.subr.mxu0 0.0
    %255 = vmatpush1.msra.mxu0 %v65
    %256 = vmatprep.subr.mxu0 0.0
    %257 = vmatpush1.msra.mxu0 %v66
    %258 = vmatprep.subr.mxu0 0.0
    %259 = vmatpush1.msra.mxu0 %v67
    %260 = vmatprep.subr.mxu0 0.0
    %261 = vmatpush1.msra.mxu0 0.0
    %262 = vmatprep.subr.mxu0 0.0
    %263 = vmatpush1.msra.mxu0 0.0
    %264 = vmatprep.subr.mxu0 0.0
    %265 = vmatpush1.msra.mxu0 0.0
    %266 = vmatprep.subr.mxu0 0.0
    %267 = vmatpush1.msra.mxu0 0.0
    %268 = vmatprep.subr.mxu0 0.0
    %269 = vmatpush1.msra.mxu0 0.0
    %270 = vmatprep.subr.mxu0 0.0
    %271 = vmatpush1.msra.mxu0 0.0
    %272 = vmatprep.subr.mxu0 0.0
    %273 = vmatpush1.msra.mxu0 0.0
    %274 = vmatprep.subr.mxu0 0.0
    %275 = vmatpush1.msra.mxu0 0.0
    %276 = vmatprep.subr.mxu0 0.0
    %277 = vmatpush1.msra.mxu0 0.0
    %278 = vmatprep.subr.mxu0 0.0
    %279 = vmatpush1.msra.mxu0 0.0
    %280 = vmatprep.subr.mxu0 0.0
    %281 = vmatpush1.msra.mxu0 0.0
    %282 = vmatprep.subr.mxu0 0.0
    %283 = vmatpush1.msra.mxu0 0.0
    %284 = vmatprep.subr.mxu0 0.0
    %285 = vmatpush1.msra.mxu0 0.0
    %286 = vmatprep.subr.mxu0 0.0
    %287 = vmatpush1.msra.mxu0 0.0
    %288 = vmatprep.subr.mxu0 0.0
    %289 = vmatpush1.msra.mxu0 0.0
    %290 = vmatprep.subr.mxu0 0.0
    %291 = vmatpush1.msra.mxu0 0.0
    %292 = vmatprep.subr.mxu0 0.0
    %293 = vmatpush1.msra.mxu0 0.0
    %294 = vmatprep.subr.mxu0 0.0
    %295 = vmatpush1.msra.mxu0 0.0
    %296 = vmatprep.subr.mxu0 0.0
    %297 = vmatpush1.msra.mxu0 0.0
    %298 = vmatprep.subr.mxu0 0.0
    %299 = vmatpush1.msra.mxu0 0.0
    %300 = vmatprep.subr.mxu0 0.0
    %301 = vmatpush1.msra.mxu0 0.0
    %302 = vmatprep.subr.mxu0 0.0
    %303 = vmatpush1.msra.mxu0 0.0
    %304 = vmatprep.subr.mxu0 0.0
    %305 = vmatpush1.msra.mxu0 0.0
    %306 = vmatprep.subr.mxu0 0.0
    %307 = vmatpush1.msra.mxu0 0.0
    %308 = vmatprep.subr.mxu0 0.0
    %309 = vmatpush1.msra.mxu0 0.0
    %310 = vmatprep.subr.mxu0 0.0
    %311 = vmatpush1.msra.mxu0 0.0
    %312 = vmatprep.subr.mxu0 0.0
    %313 = vmatpush1.msra.mxu0 0.0
    %314 = vmatprep.subr.mxu0 0.0
    %315 = vmatpush1.msra.mxu0 0.0
    %316 = vmatprep.mubr.f32.mxu0 0.0
    %317 = vmatmul.mubr.f32.gmra.mrb[0].mxu0 %v250
    %v318 = vpop.f32.mrb[0].mxu0
    %v319 = vadd.f32 %v73, %v318
    %v320 = vpop.f32.mrb[0].mxu0
    %321 = vdwg.mxu0
    %v322 = vld [vmem:[#allocation6] sm:$0x3]
    %v323 = vadd.f32 %v322, %v246
    %v324 = vxor.u32 %v323, 2147483648
    %v325 = vmul.f32 %v324, 1.442695
    %v326 = vpow.pop %v325
    %v327 = vadd.f32 %v326, 1.0
    %v328 = vrcp.pop %v327
    %v329 = vmul.f32 1.0, %v328
    %v330 = vtanh.pop %v323
    %332 = vrot.lane.b32.xlu0 %v173, 32
    %v333 = vpop.permute.xlu0 %332
    %v335 = vmul.f32 %v329, %v333
    %337 = vrot.lane.b32.xlu0 %v330, 64
    %v338 = vpop.permute.xlu0 %337
    %v340 = vmul.f32 %v329, %v338
    %342 = vrot.lane.b32.xlu0 %v340, 32
    %v343 = vpop.permute.xlu0 %342
    %v345 = vadd.f32 %v335, %v343
    %v346 = vtanh.pop %v345
    %348 = vrot.lane.b32.xlu0 %v346, 64
    %v349 = vpop.permute.xlu0 %348
    %v351 = vmul.f32 %v329, %v349
    %353 = vrot.lane.b32.xlu0 %v351, 32
    %v354 = vpop.permute.xlu0 %353
    %v355 = vsel %vm88, %v354, 0
    %357 = vmatprep.subr.mxu0 0.0
    %358 = vmatpush1.msra.mxu0 %v60
    %359 = vmatprep.subr.mxu0 0.0
    %360 = vmatpush1.msra.mxu0 %v61
    %361 = vmatprep.subr.mxu0 0.0
    %362 = vmatpush1.msra.mxu0 %v62
    %363 = vmatprep.subr.mxu0 0.0
    %364 = vmatpush1.msra.mxu0 %v63
    %365 = vmatprep.subr.mxu0 0.0
    %366 = vmatpush1.msra.mxu0 0.0
    %367 = vmatprep.subr.mxu0 0.0
    %368 = vmatpush1.msra.mxu0 0.0
    %369 = vmatprep.subr.mxu0 0.0
    %370 = vmatpush1.msra.mxu0 0.0
    %371 = vmatprep.subr.mxu0 0.0
    %372 = vmatpush1.msra.mxu0 0.0
    %373 = vmatprep.subr.mxu0 0.0
    %374 = vmatpush1.msra.mxu0 0.0
    %375 = vmatprep.subr.mxu0 0.0
    %376 = vmatpush1.msra.mxu0 0.0
    %377 = vmatprep.subr.mxu0 0.0
    %378 = vmatpush1.msra.mxu0 0.0
    %379 = vmatprep.subr.mxu0 0.0
    %380 = vmatpush1.msra.mxu0 0.0
    %381 = vmatprep.subr.mxu0 0.0
    %382 = vmatpush1.msra.mxu0 0.0
    %383 = vmatprep.subr.mxu0 0.0
    %384 = vmatpush1.msra.mxu0 0.0
    %385 = vmatprep.subr.mxu0 0.0
    %386 = vmatpush1.msra.mxu0 0.0
    %387 = vmatprep.subr.mxu0 0.0
    %388 = vmatpush1.msra.mxu0 0.0
    %389 = vmatprep.subr.mxu0 0.0
    %390 = vmatpush1.msra.mxu0 0.0
    %391 = vmatprep.subr.mxu0 0.0
    %392 = vmatpush1.msra.mxu0 0.0
    %393 = vmatprep.subr.mxu0 0.0
    %394 = vmatpush1.msra.mxu0 0.0
    %395 = vmatprep.subr.mxu0 0.0
    %396 = vmatpush1.msra.mxu0 0.0
    %397 = vmatprep.subr.mxu0 0.0
    %398 = vmatpush1.msra.mxu0 0.0
    %399 = vmatprep.subr.mxu0 0.0
    %400 = vmatpush1.msra.mxu0 0.0
    %401 = vmatprep.subr.mxu0 0.0
    %402 = vmatpush1.msra.mxu0 0.0
    %403 = vmatprep.subr.mxu0 0.0
    %404 = vmatpush1.msra.mxu0 0.0
    %405 = vmatprep.subr.mxu0 0.0
    %406 = vmatpush1.msra.mxu0 0.0
    %407 = vmatprep.subr.mxu0 0.0
    %408 = vmatpush1.msra.mxu0 0.0
    %409 = vmatprep.subr.mxu0 0.0
    %410 = vmatpush1.msra.mxu0 0.0
    %411 = vmatprep.subr.mxu0 0.0
    %412 = vmatpush1.msra.mxu0 0.0
    %413 = vmatprep.subr.mxu0 0.0
    %414 = vmatpush1.msra.mxu0 0.0
    %415 = vmatprep.subr.mxu0 0.0
    %416 = vmatpush1.msra.mxu0 0.0
    %417 = vmatprep.subr.mxu0 0.0
    %418 = vmatpush1.msra.mxu0 0.0
    %419 = vmatprep.subr.mxu0 0.0
    %420 = vmatpush1.msra.mxu0 0.0
    %421 = vmatprep.mubr.f32.mxu0 0.0
    %422 = vmatmul.mubr.f32.gmra.mrb[0].mxu0 %v355
    %v423 = vpop.f32.mrb[0].mxu0
    %v424 = vadd.f32 %v319, %v423
    %v425 = vpop.f32.mrb[0].mxu0
    %426 = vdwg.mxu0
    %v427 = vxor.u32 %v424, 2147483648
    %v428 = vmul.f32 %v427, 1.442695
    %v429 = vpow.pop %v428
    %v430 = vadd.f32 %v429, 1.0
    %v431 = vrcp.pop %v430
    %v432 = vmul.f32 1.0, %v431
    %v433 = vtanh.pop %v424
    %435 = vrot.lane.b32.xlu0 %v175, 32
    %v436 = vpop.permute.xlu0 %435
    %v438 = vmul.f32 %v432, %v436
    %440 = vrot.lane.b32.xlu0 %v433, 64
    %v441 = vpop.permute.xlu0 %440
    %v443 = vmul.f32 %v432, %v441
    %445 = vrot.lane.b32.xlu0 %v443, 32
    %v446 = vpop.permute.xlu0 %445
    %v448 = vadd.f32 %v438, %v446
    %v449 = vtanh.pop %v448
    %451 = vrot.lane.b32.xlu0 %v449, 64
    %v452 = vpop.permute.xlu0 %451
    %v454 = vmul.f32 %v432, %v452
    %456 = vrot.lane.b32.xlu0 %v454, 32
    %v457 = vpop.permute.xlu0 %456
    %vm459 = vcmask 254976
    %460 = vst.msk [vmem:[#allocation7] sm:$0x3] %vm459, %v457
    %461 = vmatprep.subr.mxu0 0.0
    %462 = vmatpush1.msra.mxu0 %v56
    %463 = vmatprep.subr.mxu0 0.0
    %464 = vmatpush1.msra.mxu0 %v57
    %465 = vmatprep.subr.mxu0 0.0
    %466 = vmatpush1.msra.mxu0 %v58
    %467 = vmatprep.subr.mxu0 0.0
    %468 = vmatpush1.msra.mxu0 %v59
    %469 = vmatprep.subr.mxu0 0.0
    %470 = vmatpush1.msra.mxu0 0.0
    %471 = vmatprep.subr.mxu0 0.0
    %472 = vmatpush1.msra.mxu0 0.0
    %473 = vmatprep.subr.mxu0 0.0
    %474 = vmatpush1.msra.mxu0 0.0
    %475 = vmatprep.subr.mxu0 0.0
    %476 = vmatpush1.msra.mxu0 0.0
    %477 = vmatprep.subr.mxu0 0.0
    %478 = vmatpush1.msra.mxu0 0.0
    %479 = vmatprep.subr.mxu0 0.0
    %480 = vmatpush1.msra.mxu0 0.0
    %481 = vmatprep.subr.mxu0 0.0
    %482 = vmatpush1.msra.mxu0 0.0
    %483 = vmatprep.subr.mxu0 0.0
    %484 = vmatpush1.msra.mxu0 0.0
    %485 = vmatprep.subr.mxu0 0.0
    %486 = vmatpush1.msra.mxu0 0.0
    %487 = vmatprep.subr.mxu0 0.0
    %488 = vmatpush1.msra.mxu0 0.0
    %489 = vmatprep.subr.mxu0 0.0
    %490 = vmatpush1.msra.mxu0 0.0
    %491 = vmatprep.subr.mxu0 0.0
    %492 = vmatpush1.msra.mxu0 0.0
    %493 = vmatprep.subr.mxu0 0.0
    %494 = vmatpush1.msra.mxu0 0.0
    %495 = vmatprep.subr.mxu0 0.0
    %496 = vmatpush1.msra.mxu0 0.0
    %497 = vmatprep.subr.mxu0 0.0
    %498 = vmatpush1.msra.mxu0 0.0
    %499 = vmatprep.subr.mxu0 0.0
    %500 = vmatpush1.msra.mxu0 0.0
    %501 = vmatprep.subr.mxu0 0.0
    %502 = vmatpush1.msra.mxu0 0.0
    %503 = vmatprep.subr.mxu0 0.0
    %504 = vmatpush1.msra.mxu0 0.0
    %505 = vmatprep.subr.mxu0 0.0
    %506 = vmatpush1.msra.mxu0 0.0
    %507 = vmatprep.subr.mxu0 0.0
    %508 = vmatpush1.msra.mxu0 0.0
    %509 = vmatprep.subr.mxu0 0.0
    %510 = vmatpush1.msra.mxu0 0.0
    %511 = vmatprep.subr.mxu0 0.0
    %512 = vmatpush1.msra.mxu0 0.0
    %513 = vmatprep.subr.mxu0 0.0
    %514 = vmatpush1.msra.mxu0 0.0
    %515 = vmatprep.subr.mxu0 0.0
    %516 = vmatpush1.msra.mxu0 0.0
    %517 = vmatprep.subr.mxu0 0.0
    %518 = vmatpush1.msra.mxu0 0.0
    %519 = vmatprep.subr.mxu0 0.0
    %520 = vmatpush1.msra.mxu0 0.0
    %521 = vmatprep.subr.mxu0 0.0
    %522 = vmatpush1.msra.mxu0 0.0
    %523 = vmatprep.subr.mxu0 0.0
    %524 = vmatpush1.msra.mxu0 0.0
    %525 = vmatprep.mubr.f32.mxu0 0.0
    %526 = vmatmul.mubr.f32.gmra.mrb[0].mxu0 %v355
    %v527 = vpop.f32.mrb[0].mxu0
    %v528 = vadd.f32 0.0, %v527
    %v529 = vpop.f32.mrb[0].mxu0
    %530 = vdwg.mxu0
    %v531 = vsel %vm88, %v457, 0
    %533 = vmatprep.subr.mxu0 0.0
    %534 = vmatpush1.msra.mxu0 %v64
    %535 = vmatprep.subr.mxu0 0.0
    %536 = vmatpush1.msra.mxu0 %v65
    %537 = vmatprep.subr.mxu0 0.0
    %538 = vmatpush1.msra.mxu0 %v66
    %539 = vmatprep.subr.mxu0 0.0
    %540 = vmatpush1.msra.mxu0 %v67
    %541 = vmatprep.subr.mxu0 0.0
    %542 = vmatpush1.msra.mxu0 0.0
    %543 = vmatprep.subr.mxu0 0.0
    %544 = vmatpush1.msra.mxu0 0.0
    %545 = vmatprep.subr.mxu0 0.0
    %546 = vmatpush1.msra.mxu0 0.0
    %547 = vmatprep.subr.mxu0 0.0
    %548 = vmatpush1.msra.mxu0 0.0
    %549 = vmatprep.subr.mxu0 0.0
    %550 = vmatpush1.msra.mxu0 0.0
    %551 = vmatprep.subr.mxu0 0.0
    %552 = vmatpush1.msra.mxu0 0.0
    %553 = vmatprep.subr.mxu0 0.0
    %554 = vmatpush1.msra.mxu0 0.0
    %555 = vmatprep.subr.mxu0 0.0
    %556 = vmatpush1.msra.mxu0 0.0
    %557 = vmatprep.subr.mxu0 0.0
    %558 = vmatpush1.msra.mxu0 0.0
    %559 = vmatprep.subr.mxu0 0.0
    %560 = vmatpush1.msra.mxu0 0.0
    %561 = vmatprep.subr.mxu0 0.0
    %562 = vmatpush1.msra.mxu0 0.0
    %563 = vmatprep.subr.mxu0 0.0
    %564 = vmatpush1.msra.mxu0 0.0
    %565 = vmatprep.subr.mxu0 0.0
    %566 = vmatpush1.msra.mxu0 0.0
    %567 = vmatprep.subr.mxu0 0.0
    %568 = vmatpush1.msra.mxu0 0.0
    %569 = vmatprep.subr.mxu0 0.0
    %570 = vmatpush1.msra.mxu0 0.0
    %571 = vmatprep.subr.mxu0 0.0
    %572 = vmatpush1.msra.mxu0 0.0
    %573 = vmatprep.subr.mxu0 0.0
    %574 = vmatpush1.msra.mxu0 0.0
    %575 = vmatprep.subr.mxu0 0.0
    %576 = vmatpush1.msra.mxu0 0.0
    %577 = vmatprep.subr.mxu0 0.0
    %578 = vmatpush1.msra.mxu0 0.0
    %579 = vmatprep.subr.mxu0 0.0
    %580 = vmatpush1.msra.mxu0 0.0
    %581 = vmatprep.subr.mxu0 0.0
    %582 = vmatpush1.msra.mxu0 0.0
    %583 = vmatprep.subr.mxu0 0.0
    %584 = vmatpush1.msra.mxu0 0.0
    %585 = vmatprep.subr.mxu0 0.0
    %586 = vmatpush1.msra.mxu0 0.0
    %587 = vmatprep.subr.mxu0 0.0
    %588 = vmatpush1.msra.mxu0 0.0
    %589 = vmatprep.subr.mxu0 0.0
    %590 = vmatpush1.msra.mxu0 0.0
    %591 = vmatprep.subr.mxu0 0.0
    %592 = vmatpush1.msra.mxu0 0.0
    %593 = vmatprep.subr.mxu0 0.0
    %594 = vmatpush1.msra.mxu0 0.0
    %595 = vmatprep.subr.mxu0 0.0
    %596 = vmatpush1.msra.mxu0 0.0
    %597 = vmatprep.mubr.f32.mxu0 0.0
    %598 = vmatmul.mubr.f32.gmra.mrb[0].mxu0 %v531
    %v599 = vpop.f32.mrb[0].mxu0
    %v600 = vadd.f32 %v73, %v599
    %v601 = vpop.f32.mrb[0].mxu0
    %602 = vdwg.mxu0
    %v603 = vld [vmem:[#allocation6 + $0x2] sm:$0x3]
    %v604 = vadd.f32 %v603, %v528
    %v605 = vxor.u32 %v604, 2147483648
    %v606 = vmul.f32 %v605, 1.442695
    %v607 = vpow.pop %v606
    %v608 = vadd.f32 %v607, 1.0
    %v609 = vrcp.pop %v608
    %v610 = vmul.f32 1.0, %v609
    %v611 = vtanh.pop %v604
    %v612 = vmul.f32 %v610, %v345
    %614 = vrot.lane.b32.xlu0 %v611, 64
    %v615 = vpop.permute.xlu0 %614
    %v617 = vmul.f32 %v610, %v615
    %619 = vrot.lane.b32.xlu0 %v617, 32
    %v620 = vpop.permute.xlu0 %619
    %v622 = vadd.f32 %v612, %v620
    %v623 = vtanh.pop %v622
    %625 = vrot.lane.b32.xlu0 %v623, 64
    %v626 = vpop.permute.xlu0 %625
    %v628 = vmul.f32 %v610, %v626
    %630 = vrot.lane.b32.xlu0 %v628, 32
    %v631 = vpop.permute.xlu0 %630
    %v632 = vsel %vm88, %v631, 0
    %634 = vmatprep.subr.mxu0 0.0
    %635 = vmatpush1.msra.mxu0 %v60
    %636 = vmatprep.subr.mxu0 0.0
    %637 = vmatpush1.msra.mxu0 %v61
    %638 = vmatprep.subr.mxu0 0.0
    %639 = vmatpush1.msra.mxu0 %v62
    %640 = vmatprep.subr.mxu0 0.0
    %641 = vmatpush1.msra.mxu0 %v63
    %642 = vmatprep.subr.mxu0 0.0
    %643 = vmatpush1.msra.mxu0 0.0
    %644 = vmatprep.subr.mxu0 0.0
    %645 = vmatpush1.msra.mxu0 0.0
    %646 = vmatprep.subr.mxu0 0.0
    %647 = vmatpush1.msra.mxu0 0.0
    %648 = vmatprep.subr.mxu0 0.0
    %649 = vmatpush1.msra.mxu0 0.0
    %650 = vmatprep.subr.mxu0 0.0
    %651 = vmatpush1.msra.mxu0 0.0
    %652 = vmatprep.subr.mxu0 0.0
    %653 = vmatpush1.msra.mxu0 0.0
    %654 = vmatprep.subr.mxu0 0.0
    %655 = vmatpush1.msra.mxu0 0.0
    %656 = vmatprep.subr.mxu0 0.0
    %657 = vmatpush1.msra.mxu0 0.0
    %658 = vmatprep.subr.mxu0 0.0
    %659 = vmatpush1.msra.mxu0 0.0
    %660 = vmatprep.subr.mxu0 0.0
    %661 = vmatpush1.msra.mxu0 0.0
    %662 = vmatprep.subr.mxu0 0.0
    %663 = vmatpush1.msra.mxu0 0.0
    %664 = vmatprep.subr.mxu0 0.0
    %665 = vmatpush1.msra.mxu0 0.0
    %666 = vmatprep.subr.mxu0 0.0
    %667 = vmatpush1.msra.mxu0 0.0
    %668 = vmatprep.subr.mxu0 0.0
    %669 = vmatpush1.msra.mxu0 0.0
    %670 = vmatprep.subr.mxu0 0.0
    %671 = vmatpush1.msra.mxu0 0.0
    %672 = vmatprep.subr.mxu0 0.0
    %673 = vmatpush1.msra.mxu0 0.0
    %674 = vmatprep.subr.mxu0 0.0
    %675 = vmatpush1.msra.mxu0 0.0
    %676 = vmatprep.subr.mxu0 0.0
    %677 = vmatpush1.msra.mxu0 0.0
    %678 = vmatprep.subr.mxu0 0.0
    %679 = vmatpush1.msra.mxu0 0.0
    %680 = vmatprep.subr.mxu0 0.0
    %681 = vmatpush1.msra.mxu0 0.0
    %682 = vmatprep.subr.mxu0 0.0
    %683 = vmatpush1.msra.mxu0 0.0
    %684 = vmatprep.subr.mxu0 0.0
    %685 = vmatpush1.msra.mxu0 0.0
    %686 = vmatprep.subr.mxu0 0.0
    %687 = vmatpush1.msra.mxu0 0.0
    %688 = vmatprep.subr.mxu0 0.0
    %689 = vmatpush1.msra.mxu0 0.0
    %690 = vmatprep.subr.mxu0 0.0
    %691 = vmatpush1.msra.mxu0 0.0
    %692 = vmatprep.subr.mxu0 0.0
    %693 = vmatpush1.msra.mxu0 0.0
    %694 = vmatprep.subr.mxu0 0.0
    %695 = vmatpush1.msra.mxu0 0.0
    %696 = vmatprep.subr.mxu0 0.0
    %697 = vmatpush1.msra.mxu0 0.0
    %698 = vmatprep.mubr.f32.mxu0 0.0
    %699 = vmatmul.mubr.f32.gmra.mrb[0].mxu0 %v632
    %v700 = vpop.f32.mrb[0].mxu0
    %v701 = vadd.f32 %v600, %v700
    %v702 = vpop.f32.mrb[0].mxu0
    %703 = vdwg.mxu0
    %v704 = vxor.u32 %v701, 2147483648
    %v705 = vmul.f32 %v704, 1.442695
    %v706 = vpow.pop %v705
    %v707 = vadd.f32 %v706, 1.0
    %v708 = vrcp.pop %v707
    %v709 = vmul.f32 1.0, %v708
    %v710 = vtanh.pop %v701
    %v711 = vmul.f32 %v709, %v448
    %713 = vrot.lane.b32.xlu0 %v710, 64
    %v714 = vpop.permute.xlu0 %713
    %v716 = vmul.f32 %v709, %v714
    %718 = vrot.lane.b32.xlu0 %v716, 32
    %v719 = vpop.permute.xlu0 %718
    %v721 = vadd.f32 %v711, %v719
    %v722 = vtanh.pop %v721
    %724 = vrot.lane.b32.xlu0 %v722, 64
    %v725 = vpop.permute.xlu0 %724
    %v727 = vmul.f32 %v709, %v725
    %729 = vrot.lane.b32.xlu0 %v727, 32
    %v730 = vpop.permute.xlu0 %729
    %732 = vst.msk [vmem:[#allocation7 + $0x2] sm:$0x3] %vm459, %v730
    %733 = vmatprep.subr.mxu0 0.0
    %734 = vmatpush1.msra.mxu0 %v56
    %735 = vmatprep.subr.mxu0 0.0
    %736 = vmatpush1.msra.mxu0 %v57
    %737 = vmatprep.subr.mxu0 0.0
    %738 = vmatpush1.msra.mxu0 %v58
    %739 = vmatprep.subr.mxu0 0.0
    %740 = vmatpush1.msra.mxu0 %v59
    %741 = vmatprep.subr.mxu0 0.0
    %742 = vmatpush1.msra.mxu0 0.0
    %743 = vmatprep.subr.mxu0 0.0
    %744 = vmatpush1.msra.mxu0 0.0
    %745 = vmatprep.subr.mxu0 0.0
    %746 = vmatpush1.msra.mxu0 0.0
    %747 = vmatprep.subr.mxu0 0.0
    %748 = vmatpush1.msra.mxu0 0.0
    %749 = vmatprep.subr.mxu0 0.0
    %750 = vmatpush1.msra.mxu0 0.0
    %751 = vmatprep.subr.mxu0 0.0
    %752 = vmatpush1.msra.mxu0 0.0
    %753 = vmatprep.subr.mxu0 0.0
    %754 = vmatpush1.msra.mxu0 0.0
    %755 = vmatprep.subr.mxu0 0.0
    %756 = vmatpush1.msra.mxu0 0.0
    %757 = vmatprep.subr.mxu0 0.0
    %758 = vmatpush1.msra.mxu0 0.0
    %759 = vmatprep.subr.mxu0 0.0
    %760 = vmatpush1.msra.mxu0 0.0
    %761 = vmatprep.subr.mxu0 0.0
    %762 = vmatpush1.msra.mxu0 0.0
    %763 = vmatprep.subr.mxu0 0.0
    %764 = vmatpush1.msra.mxu0 0.0
    %765 = vmatprep.subr.mxu0 0.0
    %766 = vmatpush1.msra.mxu0 0.0
    %767 = vmatprep.subr.mxu0 0.0
    %768 = vmatpush1.msra.mxu0 0.0
    %769 = vmatprep.subr.mxu0 0.0
    %770 = vmatpush1.msra.mxu0 0.0
    %771 = vmatprep.subr.mxu0 0.0
    %772 = vmatpush1.msra.mxu0 0.0
    %773 = vmatprep.subr.mxu0 0.0
    %774 = vmatpush1.msra.mxu0 0.0
    %775 = vmatprep.subr.mxu0 0.0
    %776 = vmatpush1.msra.mxu0 0.0
    %777 = vmatprep.subr.mxu0 0.0
    %778 = vmatpush1.msra.mxu0 0.0
    %779 = vmatprep.subr.mxu0 0.0
    %780 = vmatpush1.msra.mxu0 0.0
    %781 = vmatprep.subr.mxu0 0.0
    %782 = vmatpush1.msra.mxu0 0.0
    %783 = vmatprep.subr.mxu0 0.0
    %784 = vmatpush1.msra.mxu0 0.0
    %785 = vmatprep.subr.mxu0 0.0
    %786 = vmatpush1.msra.mxu0 0.0
    %787 = vmatprep.subr.mxu0 0.0
    %788 = vmatpush1.msra.mxu0 0.0
    %789 = vmatprep.subr.mxu0 0.0
    %790 = vmatpush1.msra.mxu0 0.0
    %791 = vmatprep.subr.mxu0 0.0
    %792 = vmatpush1.msra.mxu0 0.0
    %793 = vmatprep.subr.mxu0 0.0
    %794 = vmatpush1.msra.mxu0 0.0
    %795 = vmatprep.subr.mxu0 0.0
    %796 = vmatpush1.msra.mxu0 0.0
    %797 = vmatprep.mubr.f32.mxu0 0.0
    %798 = vmatmul.mubr.f32.gmra.mrb[0].mxu0 %v632
    %v799 = vpop.f32.mrb[0].mxu0
    %v800 = vadd.f32 0.0, %v799
    %v801 = vpop.f32.mrb[0].mxu0
    %802 = vdwg.mxu0
    %v803 = vsel %vm88, %v730, 0
    %805 = vmatprep.subr.mxu0 0.0
    %806 = vmatpush1.msra.mxu0 %v64
    %807 = vmatprep.subr.mxu0 0.0
    %808 = vmatpush1.msra.mxu0 %v65
    %809 = vmatprep.subr.mxu0 0.0
    %810 = vmatpush1.msra.mxu0 %v66
    %811 = vmatprep.subr.mxu0 0.0
    %812 = vmatpush1.msra.mxu0 %v67
    %813 = vmatprep.subr.mxu0 0.0
    %814 = vmatpush1.msra.mxu0 0.0
    %815 = vmatprep.subr.mxu0 0.0
    %816 = vmatpush1.msra.mxu0 0.0
    %817 = vmatprep.subr.mxu0 0.0
    %818 = vmatpush1.msra.mxu0 0.0
    %819 = vmatprep.subr.mxu0 0.0
    %820 = vmatpush1.msra.mxu0 0.0
    %821 = vmatprep.subr.mxu0 0.0
    %822 = vmatpush1.msra.mxu0 0.0
    %823 = vmatprep.subr.mxu0 0.0
    %824 = vmatpush1.msra.mxu0 0.0
    %825 = vmatprep.subr.mxu0 0.0
    %826 = vmatpush1.msra.mxu0 0.0
    %827 = vmatprep.subr.mxu0 0.0
    %828 = vmatpush1.msra.mxu0 0.0
    %829 = vmatprep.subr.mxu0 0.0
    %830 = vmatpush1.msra.mxu0 0.0
    %831 = vmatprep.subr.mxu0 0.0
    %832 = vmatpush1.msra.mxu0 0.0
    %833 = vmatprep.subr.mxu0 0.0
    %834 = vmatpush1.msra.mxu0 0.0
    %835 = vmatprep.subr.mxu0 0.0
    %836 = vmatpush1.msra.mxu0 0.0
    %837 = vmatprep.subr.mxu0 0.0
    %838 = vmatpush1.msra.mxu0 0.0
    %839 = vmatprep.subr.mxu0 0.0
    %840 = vmatpush1.msra.mxu0 0.0
    %841 = vmatprep.subr.mxu0 0.0
    %842 = vmatpush1.msra.mxu0 0.0
    %843 = vmatprep.subr.mxu0 0.0
    %844 = vmatpush1.msra.mxu0 0.0
    %845 = vmatprep.subr.mxu0 0.0
    %846 = vmatpush1.msra.mxu0 0.0
    %847 = vmatprep.subr.mxu0 0.0
    %848 = vmatpush1.msra.mxu0 0.0
    %849 = vmatprep.subr.mxu0 0.0
    %850 = vmatpush1.msra.mxu0 0.0
    %851 = vmatprep.subr.mxu0 0.0
    %852 = vmatpush1.msra.mxu0 0.0
    %853 = vmatprep.subr.mxu0 0.0
    %854 = vmatpush1.msra.mxu0 0.0
    %855 = vmatprep.subr.mxu0 0.0
    %856 = vmatpush1.msra.mxu0 0.0
    %857 = vmatprep.subr.mxu0 0.0
    %858 = vmatpush1.msra.mxu0 0.0
    %859 = vmatprep.subr.mxu0 0.0
    %860 = vmatpush1.msra.mxu0 0.0
    %861 = vmatprep.subr.mxu0 0.0
    %862 = vmatpush1.msra.mxu0 0.0
    %863 = vmatprep.subr.mxu0 0.0
    %864 = vmatpush1.msra.mxu0 0.0
    %865 = vmatprep.subr.mxu0 0.0
    %866 = vmatpush1.msra.mxu0 0.0
    %867 = vmatprep.subr.mxu0 0.0
    %868 = vmatpush1.msra.mxu0 0.0
    %869 = vmatprep.mubr.f32.mxu0 0.0
    %870 = vmatmul.mubr.f32.gmra.mrb[0].mxu0 %v803
    %v871 = vpop.f32.mrb[0].mxu0
    %v872 = vadd.f32 %v73, %v871
    %v873 = vpop.f32.mrb[0].mxu0
    %874 = vdwg.mxu0
    %v875 = vld [vmem:[#allocation6 + $0x4] sm:$0x3]
    %v876 = vadd.f32 %v875, %v800
    %v877 = vxor.u32 %v876, 2147483648
    %v878 = vmul.f32 %v877, 1.442695
    %v879 = vpow.pop %v878
    %v880 = vadd.f32 %v879, 1.0
    %v881 = vrcp.pop %v880
    %v882 = vmul.f32 1.0, %v881
    %v883 = vtanh.pop %v876
    %v884 = vmul.f32 %v882, %v622
    %886 = vrot.lane.b32.xlu0 %v883, 64
    %v887 = vpop.permute.xlu0 %886
    %v889 = vmul.f32 %v882, %v887
    %891 = vrot.lane.b32.xlu0 %v889, 32
    %v892 = vpop.permute.xlu0 %891
    %v894 = vadd.f32 %v884, %v892
    %v895 = vtanh.pop %v894
    %897 = vrot.lane.b32.xlu0 %v895, 64
    %v898 = vpop.permute.xlu0 %897
    %v900 = vmul.f32 %v882, %v898
    %902 = vrot.lane.b32.xlu0 %v900, 32
    %v903 = vpop.permute.xlu0 %902
    %v904 = vsel %vm88, %v903, 0
    %906 = vmatprep.subr.mxu0 0.0
    %907 = vmatpush1.msra.mxu0 %v60
    %908 = vmatprep.subr.mxu0 0.0
    %909 = vmatpush1.msra.mxu0 %v61
    %910 = vmatprep.subr.mxu0 0.0
    %911 = vmatpush1.msra.mxu0 %v62
    %912 = vmatprep.subr.mxu0 0.0
    %913 = vmatpush1.msra.mxu0 %v63
    %914 = vmatprep.subr.mxu0 0.0
    %915 = vmatpush1.msra.mxu0 0.0
    %916 = vmatprep.subr.mxu0 0.0
    %917 = vmatpush1.msra.mxu0 0.0
    %918 = vmatprep.subr.mxu0 0.0
    %919 = vmatpush1.msra.mxu0 0.0
    %920 = vmatprep.subr.mxu0 0.0
    %921 = vmatpush1.msra.mxu0 0.0
    %922 = vmatprep.subr.mxu0 0.0
    %923 = vmatpush1.msra.mxu0 0.0
    %924 = vmatprep.subr.mxu0 0.0
    %925 = vmatpush1.msra.mxu0 0.0
    %926 = vmatprep.subr.mxu0 0.0
    %927 = vmatpush1.msra.mxu0 0.0
    %928 = vmatprep.subr.mxu0 0.0
    %929 = vmatpush1.msra.mxu0 0.0
    %930 = vmatprep.subr.mxu0 0.0
    %931 = vmatpush1.msra.mxu0 0.0
    %932 = vmatprep.subr.mxu0 0.0
    %933 = vmatpush1.msra.mxu0 0.0
    %934 = vmatprep.subr.mxu0 0.0
    %935 = vmatpush1.msra.mxu0 0.0
    %936 = vmatprep.subr.mxu0 0.0
    %937 = vmatpush1.msra.mxu0 0.0
    %938 = vmatprep.subr.mxu0 0.0
    %939 = vmatpush1.msra.mxu0 0.0
    %940 = vmatprep.subr.mxu0 0.0
    %941 = vmatpush1.msra.mxu0 0.0
    %942 = vmatprep.subr.mxu0 0.0
    %943 = vmatpush1.msra.mxu0 0.0
    %944 = vmatprep.subr.mxu0 0.0
    %945 = vmatpush1.msra.mxu0 0.0
    %946 = vmatprep.subr.mxu0 0.0
    %947 = vmatpush1.msra.mxu0 0.0
    %948 = vmatprep.subr.mxu0 0.0
    %949 = vmatpush1.msra.mxu0 0.0
    %950 = vmatprep.subr.mxu0 0.0
    %951 = vmatpush1.msra.mxu0 0.0
    %952 = vmatprep.subr.mxu0 0.0
    %953 = vmatpush1.msra.mxu0 0.0
    %954 = vmatprep.subr.mxu0 0.0
    %955 = vmatpush1.msra.mxu0 0.0
    %956 = vmatprep.subr.mxu0 0.0
    %957 = vmatpush1.msra.mxu0 0.0
    %958 = vmatprep.subr.mxu0 0.0
    %959 = vmatpush1.msra.mxu0 0.0
    %960 = vmatprep.subr.mxu0 0.0
    %961 = vmatpush1.msra.mxu0 0.0
    %962 = vmatprep.subr.mxu0 0.0
    %963 = vmatpush1.msra.mxu0 0.0
    %964 = vmatprep.subr.mxu0 0.0
    %965 = vmatpush1.msra.mxu0 0.0
    %966 = vmatprep.subr.mxu0 0.0
    %967 = vmatpush1.msra.mxu0 0.0
    %968 = vmatprep.subr.mxu0 0.0
    %969 = vmatpush1.msra.mxu0 0.0
    %970 = vmatprep.mubr.f32.mxu0 0.0
    %971 = vmatmul.mubr.f32.gmra.mrb[0].mxu0 %v904
    %v972 = vpop.f32.mrb[0].mxu0
    %v973 = vadd.f32 %v872, %v972
    %v974 = vpop.f32.mrb[0].mxu0
    %975 = vdwg.mxu0
    %v976 = vxor.u32 %v973, 2147483648
    %v977 = vmul.f32 %v976, 1.442695
    %v978 = vpow.pop %v977
    %v979 = vadd.f32 %v978, 1.0
    %v980 = vrcp.pop %v979
    %v981 = vmul.f32 1.0, %v980
    %v982 = vtanh.pop %v973
    %v983 = vmul.f32 %v981, %v721
    %985 = vrot.lane.b32.xlu0 %v982, 64
    %v986 = vpop.permute.xlu0 %985
    %v988 = vmul.f32 %v981, %v986
    %990 = vrot.lane.b32.xlu0 %v988, 32
    %v991 = vpop.permute.xlu0 %990
    %v993 = vadd.f32 %v983, %v991
    %v994 = vtanh.pop %v993
    %996 = vrot.lane.b32.xlu0 %v994, 64
    %v997 = vpop.permute.xlu0 %996
    %v999 = vmul.f32 %v981, %v997
    %1001 = vrot.lane.b32.xlu0 %v999, 32
    %v1002 = vpop.permute.xlu0 %1001
    %1004 = vst.msk [vmem:[#allocation7 + $0x4] sm:$0x3] %vm459, %v1002
    %1005 = vmatprep.subr.mxu0 0.0
    %1006 = vmatpush1.msra.mxu0 %v56
    %1007 = vmatprep.subr.mxu0 0.0
    %1008 = vmatpush1.msra.mxu0 %v57
    %1009 = vmatprep.subr.mxu0 0.0
    %1010 = vmatpush1.msra.mxu0 %v58
    %1011 = vmatprep.subr.mxu0 0.0
    %1012 = vmatpush1.msra.mxu0 %v59
    %1013 = vmatprep.subr.mxu0 0.0
    %1014 = vmatpush1.msra.mxu0 0.0
    %1015 = vmatprep.subr.mxu0 0.0
    %1016 = vmatpush1.msra.mxu0 0.0
    %1017 = vmatprep.subr.mxu0 0.0
    %1018 = vmatpush1.msra.mxu0 0.0
    %1019 = vmatprep.subr.mxu0 0.0
    %1020 = vmatpush1.msra.mxu0 0.0
    %1021 = vmatprep.subr.mxu0 0.0
    %1022 = vmatpush1.msra.mxu0 0.0
    %1023 = vmatprep.subr.mxu0 0.0
    %1024 = vmatpush1.msra.mxu0 0.0
    %1025 = vmatprep.subr.mxu0 0.0
    %1026 = vmatpush1.msra.mxu0 0.0
    %1027 = vmatprep.subr.mxu0 0.0
    %1028 = vmatpush1.msra.mxu0 0.0
    %1029 = vmatprep.subr.mxu0 0.0
    %1030 = vmatpush1.msra.mxu0 0.0
    %1031 = vmatprep.subr.mxu0 0.0
    %1032 = vmatpush1.msra.mxu0 0.0
    %1033 = vmatprep.subr.mxu0 0.0
    %1034 = vmatpush1.msra.mxu0 0.0
    %1035 = vmatprep.subr.mxu0 0.0
    %1036 = vmatpush1.msra.mxu0 0.0
    %1037 = vmatprep.subr.mxu0 0.0
    %1038 = vmatpush1.msra.mxu0 0.0
    %1039 = vmatprep.subr.mxu0 0.0
    %1040 = vmatpush1.msra.mxu0 0.0
    %1041 = vmatprep.subr.mxu0 0.0
    %1042 = vmatpush1.msra.mxu0 0.0
    %1043 = vmatprep.subr.mxu0 0.0
    %1044 = vmatpush1.msra.mxu0 0.0
    %1045 = vmatprep.subr.mxu0 0.0
    %1046 = vmatpush1.msra.mxu0 0.0
    %1047 = vmatprep.subr.mxu0 0.0
    %1048 = vmatpush1.msra.mxu0 0.0
    %1049 = vmatprep.subr.mxu0 0.0
    %1050 = vmatpush1.msra.mxu0 0.0
    %1051 = vmatprep.subr.mxu0 0.0
    %1052 = vmatpush1.msra.mxu0 0.0
    %1053 = vmatprep.subr.mxu0 0.0
    %1054 = vmatpush1.msra.mxu0 0.0
    %1055 = vmatprep.subr.mxu0 0.0
    %1056 = vmatpush1.msra.mxu0 0.0
    %1057 = vmatprep.subr.mxu0 0.0
    %1058 = vmatpush1.msra.mxu0 0.0
    %1059 = vmatprep.subr.mxu0 0.0
    %1060 = vmatpush1.msra.mxu0 0.0
    %1061 = vmatprep.subr.mxu0 0.0
    %1062 = vmatpush1.msra.mxu0 0.0
    %1063 = vmatprep.subr.mxu0 0.0
    %1064 = vmatpush1.msra.mxu0 0.0
    %1065 = vmatprep.subr.mxu0 0.0
    %1066 = vmatpush1.msra.mxu0 0.0
    %1067 = vmatprep.subr.mxu0 0.0
    %1068 = vmatpush1.msra.mxu0 0.0
    %1069 = vmatprep.mubr.f32.mxu0 0.0
    %1070 = vmatmul.mubr.f32.gmra.mrb[0].mxu0 %v904
    %v1071 = vpop.f32.mrb[0].mxu0
    %v1072 = vadd.f32 0.0, %v1071
    %v1073 = vpop.f32.mrb[0].mxu0
    %1074 = vdwg.mxu0
    %v1075 = vsel %vm88, %v1002, 0
    %1077 = vmatprep.subr.mxu0 0.0
    %1078 = vmatpush1.msra.mxu0 %v64
    %1079 = vmatprep.subr.mxu0 0.0
    %1080 = vmatpush1.msra.mxu0 %v65
    %1081 = vmatprep.subr.mxu0 0.0
    %1082 = vmatpush1.msra.mxu0 %v66
    %1083 = vmatprep.subr.mxu0 0.0
    %1084 = vmatpush1.msra.mxu0 %v67
    %1085 = vmatprep.subr.mxu0 0.0
    %1086 = vmatpush1.msra.mxu0 0.0
    %1087 = vmatprep.subr.mxu0 0.0
    %1088 = vmatpush1.msra.mxu0 0.0
    %1089 = vmatprep.subr.mxu0 0.0
    %1090 = vmatpush1.msra.mxu0 0.0
    %1091 = vmatprep.subr.mxu0 0.0
    %1092 = vmatpush1.msra.mxu0 0.0
    %1093 = vmatprep.subr.mxu0 0.0
    %1094 = vmatpush1.msra.mxu0 0.0
    %1095 = vmatprep.subr.mxu0 0.0
    %1096 = vmatpush1.msra.mxu0 0.0
    %1097 = vmatprep.subr.mxu0 0.0
    %1098 = vmatpush1.msra.mxu0 0.0
    %1099 = vmatprep.subr.mxu0 0.0
    %1100 = vmatpush1.msra.mxu0 0.0
    %1101 = vmatprep.subr.mxu0 0.0
    %1102 = vmatpush1.msra.mxu0 0.0
    %1103 = vmatprep.subr.mxu0 0.0
    %1104 = vmatpush1.msra.mxu0 0.0
    %1105 = vmatprep.subr.mxu0 0.0
    %1106 = vmatpush1.msra.mxu0 0.0
    %1107 = vmatprep.subr.mxu0 0.0
    %1108 = vmatpush1.msra.mxu0 0.0
    %1109 = vmatprep.subr.mxu0 0.0
    %1110 = vmatpush1.msra.mxu0 0.0
    %1111 = vmatprep.subr.mxu0 0.0
    %1112 = vmatpush1.msra.mxu0 0.0
    %1113 = vmatprep.subr.mxu0 0.0
    %1114 = vmatpush1.msra.mxu0 0.0
    %1115 = vmatprep.subr.mxu0 0.0
    %1116 = vmatpush1.msra.mxu0 0.0
    %1117 = vmatprep.subr.mxu0 0.0
    %1118 = vmatpush1.msra.mxu0 0.0
    %1119 = vmatprep.subr.mxu0 0.0
    %1120 = vmatpush1.msra.mxu0 0.0
    %1121 = vmatprep.subr.mxu0 0.0
    %1122 = vmatpush1.msra.mxu0 0.0
    %1123 = vmatprep.subr.mxu0 0.0
    %1124 = vmatpush1.msra.mxu0 0.0
    %1125 = vmatprep.subr.mxu0 0.0
    %1126 = vmatpush1.msra.mxu0 0.0
    %1127 = vmatprep.subr.mxu0 0.0
    %1128 = vmatpush1.msra.mxu0 0.0
    %1129 = vmatprep.subr.mxu0 0.0
    %1130 = vmatpush1.msra.mxu0 0.0
    %1131 = vmatprep.subr.mxu0 0.0
    %1132 = vmatpush1.msra.mxu0 0.0
    %1133 = vmatprep.subr.mxu0 0.0
    %1134 = vmatpush1.msra.mxu0 0.0
    %1135 = vmatprep.subr.mxu0 0.0
    %1136 = vmatpush1.msra.mxu0 0.0
    %1137 = vmatprep.subr.mxu0 0.0
    %1138 = vmatpush1.msra.mxu0 0.0
    %1139 = vmatprep.subr.mxu0 0.0
    %1140 = vmatpush1.msra.mxu0 0.0
    %1141 = vmatprep.mubr.f32.mxu0 0.0
    %1142 = vmatmul.mubr.f32.gmra.mrb[0].mxu0 %v1075
    %v1143 = vpop.f32.mrb[0].mxu0
    %v1144 = vadd.f32 %v73, %v1143
    %v1145 = vpop.f32.mrb[0].mxu0
    %1146 = vdwg.mxu0
    %v1147 = vld [vmem:[#allocation6 + $0x6] sm:$0x3]
    %v1148 = vadd.f32 %v1147, %v1072
    %v1149 = vxor.u32 %v1148, 2147483648
    %v1150 = vmul.f32 %v1149, 1.442695
    %v1151 = vpow.pop %v1150
    %v1152 = vadd.f32 %v1151, 1.0
    %v1153 = vrcp.pop %v1152
    %v1154 = vmul.f32 1.0, %v1153
    %v1155 = vtanh.pop %v1148
    %v1156 = vmul.f32 %v1154, %v894
    %1158 = vrot.lane.b32.xlu0 %v1155, 64
    %v1159 = vpop.permute.xlu0 %1158
    %v1161 = vmul.f32 %v1154, %v1159
    %1163 = vrot.lane.b32.xlu0 %v1161, 32
    %v1164 = vpop.permute.xlu0 %1163
    %v1166 = vadd.f32 %v1156, %v1164
    %v1167 = vtanh.pop %v1166
    %1169 = vrot.lane.b32.xlu0 %v1167, 64
    %v1170 = vpop.permute.xlu0 %1169
    %v1172 = vmul.f32 %v1154, %v1170
    %1174 = vrot.lane.b32.xlu0 %v1172, 32
    %v1175 = vpop.permute.xlu0 %1174
    %v1176 = vsel %vm88, %v1175, 0
    %1178 = vmatprep.subr.mxu0 0.0
    %1179 = vmatpush1.msra.mxu0 %v60
    %1180 = vmatprep.subr.mxu0 0.0
    %1181 = vmatpush1.msra.mxu0 %v61
    %1182 = vmatprep.subr.mxu0 0.0
    %1183 = vmatpush1.msra.mxu0 %v62
    %1184 = vmatprep.subr.mxu0 0.0
    %1185 = vmatpush1.msra.mxu0 %v63
    %1186 = vmatprep.subr.mxu0 0.0
    %1187 = vmatpush1.msra.mxu0 0.0
    %1188 = vmatprep.subr.mxu0 0.0
    %1189 = vmatpush1.msra.mxu0 0.0
    %1190 = vmatprep.subr.mxu0 0.0
    %1191 = vmatpush1.msra.mxu0 0.0
    %1192 = vmatprep.subr.mxu0 0.0
    %1193 = vmatpush1.msra.mxu0 0.0
    %1194 = vmatprep.subr.mxu0 0.0
    %1195 = vmatpush1.msra.mxu0 0.0
    %1196 = vmatprep.subr.mxu0 0.0
    %1197 = vmatpush1.msra.mxu0 0.0
    %1198 = vmatprep.subr.mxu0 0.0
    %1199 = vmatpush1.msra.mxu0 0.0
    %1200 = vmatprep.subr.mxu0 0.0
    %1201 = vmatpush1.msra.mxu0 0.0
    %1202 = vmatprep.subr.mxu0 0.0
    %1203 = vmatpush1.msra.mxu0 0.0
    %1204 = vmatprep.subr.mxu0 0.0
    %1205 = vmatpush1.msra.mxu0 0.0
    %1206 = vmatprep.subr.mxu0 0.0
    %1207 = vmatpush1.msra.mxu0 0.0
    %1208 = vmatprep.subr.mxu0 0.0
    %1209 = vmatpush1.msra.mxu0 0.0
    %1210 = vmatprep.subr.mxu0 0.0
    %1211 = vmatpush1.msra.mxu0 0.0
    %1212 = vmatprep.subr.mxu0 0.0
    %1213 = vmatpush1.msra.mxu0 0.0
    %1214 = vmatprep.subr.mxu0 0.0
    %1215 = vmatpush1.msra.mxu0 0.0
    %1216 = vmatprep.subr.mxu0 0.0
    %1217 = vmatpush1.msra.mxu0 0.0
    %1218 = vmatprep.subr.mxu0 0.0
    %1219 = vmatpush1.msra.mxu0 0.0
    %1220 = vmatprep.subr.mxu0 0.0
    %1221 = vmatpush1.msra.mxu0 0.0
    %1222 = vmatprep.subr.mxu0 0.0
    %1223 = vmatpush1.msra.mxu0 0.0
    %1224 = vmatprep.subr.mxu0 0.0
    %1225 = vmatpush1.msra.mxu0 0.0
    %1226 = vmatprep.subr.mxu0 0.0
    %1227 = vmatpush1.msra.mxu0 0.0
    %1228 = vmatprep.subr.mxu0 0.0
    %1229 = vmatpush1.msra.mxu0 0.0
    %1230 = vmatprep.subr.mxu0 0.0
    %1231 = vmatpush1.msra.mxu0 0.0
    %1232 = vmatprep.subr.mxu0 0.0
    %1233 = vmatpush1.msra.mxu0 0.0
    %1234 = vmatprep.subr.mxu0 0.0
    %1235 = vmatpush1.msra.mxu0 0.0
    %1236 = vmatprep.subr.mxu0 0.0
    %1237 = vmatpush1.msra.mxu0 0.0
    %1238 = vmatprep.subr.mxu0 0.0
    %1239 = vmatpush1.msra.mxu0 0.0
    %1240 = vmatprep.subr.mxu0 0.0
    %1241 = vmatpush1.msra.mxu0 0.0
    %1242 = vmatprep.mubr.f32.mxu0 0.0
    %1243 = vmatmul.mubr.f32.gmra.mrb[0].mxu0 %v1176
    %v1244 = vpop.f32.mrb[0].mxu0
    %v1245 = vadd.f32 %v1144, %v1244
    %v1246 = vpop.f32.mrb[0].mxu0
    %1247 = vdwg.mxu0
    %v1248 = vxor.u32 %v1245, 2147483648
    %v1249 = vmul.f32 %v1248, 1.442695
    %v1250 = vpow.pop %v1249
    %v1251 = vadd.f32 %v1250, 1.0
    %v1252 = vrcp.pop %v1251
    %v1253 = vmul.f32 1.0, %v1252
    %v1254 = vtanh.pop %v1245
    %v1255 = vmul.f32 %v1253, %v993
    %1257 = vrot.lane.b32.xlu0 %v1254, 64
    %v1258 = vpop.permute.xlu0 %1257
    %v1260 = vmul.f32 %v1253, %v1258
    %1262 = vrot.lane.b32.xlu0 %v1260, 32
    %v1263 = vpop.permute.xlu0 %1262
    %v1265 = vadd.f32 %v1255, %v1263
    %v1266 = vtanh.pop %v1265
    %1268 = vrot.lane.b32.xlu0 %v1266, 64
    %v1269 = vpop.permute.xlu0 %1268
    %v1271 = vmul.f32 %v1253, %v1269
    %1273 = vrot.lane.b32.xlu0 %v1271, 32
    %v1274 = vpop.permute.xlu0 %1273
    %1276 = vst.msk [vmem:[#allocation7 + $0x6] sm:$0x3] %vm459, %v1274
    %1277 = vmatprep.subr.mxu0 0.0
    %1278 = vmatpush1.msra.mxu0 %v56
    %1279 = vmatprep.subr.mxu0 0.0
    %1280 = vmatpush1.msra.mxu0 %v57
    %1281 = vmatprep.subr.mxu0 0.0
    %1282 = vmatpush1.msra.mxu0 %v58
    %1283 = vmatprep.subr.mxu0 0.0
    %1284 = vmatpush1.msra.mxu0 %v59
    %1285 = vmatprep.subr.mxu0 0.0
    %1286 = vmatpush1.msra.mxu0 0.0
    %1287 = vmatprep.subr.mxu0 0.0
    %1288 = vmatpush1.msra.mxu0 0.0
    %1289 = vmatprep.subr.mxu0 0.0
    %1290 = vmatpush1.msra.mxu0 0.0
    %1291 = vmatprep.subr.mxu0 0.0
    %1292 = vmatpush1.msra.mxu0 0.0
    %1293 = vmatprep.subr.mxu0 0.0
    %1294 = vmatpush1.msra.mxu0 0.0
    %1295 = vmatprep.subr.mxu0 0.0
    %1296 = vmatpush1.msra.mxu0 0.0
    %1297 = vmatprep.subr.mxu0 0.0
    %1298 = vmatpush1.msra.mxu0 0.0
    %1299 = vmatprep.subr.mxu0 0.0
    %1300 = vmatpush1.msra.mxu0 0.0
    %1301 = vmatprep.subr.mxu0 0.0
    %1302 = vmatpush1.msra.mxu0 0.0
    %1303 = vmatprep.subr.mxu0 0.0
    %1304 = vmatpush1.msra.mxu0 0.0
    %1305 = vmatprep.subr.mxu0 0.0
    %1306 = vmatpush1.msra.mxu0 0.0
    %1307 = vmatprep.subr.mxu0 0.0
    %1308 = vmatpush1.msra.mxu0 0.0
    %1309 = vmatprep.subr.mxu0 0.0
    %1310 = vmatpush1.msra.mxu0 0.0
    %1311 = vmatprep.subr.mxu0 0.0
    %1312 = vmatpush1.msra.mxu0 0.0
    %1313 = vmatprep.subr.mxu0 0.0
    %1314 = vmatpush1.msra.mxu0 0.0
    %1315 = vmatprep.subr.mxu0 0.0
    %1316 = vmatpush1.msra.mxu0 0.0
    %1317 = vmatprep.subr.mxu0 0.0
    %1318 = vmatpush1.msra.mxu0 0.0
    %1319 = vmatprep.subr.mxu0 0.0
    %1320 = vmatpush1.msra.mxu0 0.0
    %1321 = vmatprep.subr.mxu0 0.0
    %1322 = vmatpush1.msra.mxu0 0.0
    %1323 = vmatprep.subr.mxu0 0.0
    %1324 = vmatpush1.msra.mxu0 0.0
    %1325 = vmatprep.subr.mxu0 0.0
    %1326 = vmatpush1.msra.mxu0 0.0
    %1327 = vmatprep.subr.mxu0 0.0
    %1328 = vmatpush1.msra.mxu0 0.0
    %1329 = vmatprep.subr.mxu0 0.0
    %1330 = vmatpush1.msra.mxu0 0.0
    %1331 = vmatprep.subr.mxu0 0.0
    %1332 = vmatpush1.msra.mxu0 0.0
    %1333 = vmatprep.subr.mxu0 0.0
    %1334 = vmatpush1.msra.mxu0 0.0
    %1335 = vmatprep.subr.mxu0 0.0
    %1336 = vmatpush1.msra.mxu0 0.0
    %1337 = vmatprep.subr.mxu0 0.0
    %1338 = vmatpush1.msra.mxu0 0.0
    %1339 = vmatprep.subr.mxu0 0.0
    %1340 = vmatpush1.msra.mxu0 0.0
    %1341 = vmatprep.mubr.f32.mxu0 0.0
    %1342 = vmatmul.mubr.f32.gmra.mrb[0].mxu0 %v1176
    %v1343 = vpop.f32.mrb[0].mxu0
    %v1344 = vadd.f32 0.0, %v1343
    %v1345 = vpop.f32.mrb[0].mxu0
    %1346 = vdwg.mxu0
    %v1347 = vsel %vm88, %v1274, 0
    %1349 = vmatprep.subr.mxu0 0.0
    %1350 = vmatpush1.msra.mxu0 %v64
    %1351 = vmatprep.subr.mxu0 0.0
    %1352 = vmatpush1.msra.mxu0 %v65
    %1353 = vmatprep.subr.mxu0 0.0
    %1354 = vmatpush1.msra.mxu0 %v66
    %1355 = vmatprep.subr.mxu0 0.0
    %1356 = vmatpush1.msra.mxu0 %v67
    %1357 = vmatprep.subr.mxu0 0.0
    %1358 = vmatpush1.msra.mxu0 0.0
    %1359 = vmatprep.subr.mxu0 0.0
    %1360 = vmatpush1.msra.mxu0 0.0
    %1361 = vmatprep.subr.mxu0 0.0
    %1362 = vmatpush1.msra.mxu0 0.0
    %1363 = vmatprep.subr.mxu0 0.0
    %1364 = vmatpush1.msra.mxu0 0.0
    %1365 = vmatprep.subr.mxu0 0.0
    %1366 = vmatpush1.msra.mxu0 0.0
    %1367 = vmatprep.subr.mxu0 0.0
    %1368 = vmatpush1.msra.mxu0 0.0
    %1369 = vmatprep.subr.mxu0 0.0
    %1370 = vmatpush1.msra.mxu0 0.0
    %1371 = vmatprep.subr.mxu0 0.0
    %1372 = vmatpush1.msra.mxu0 0.0
    %1373 = vmatprep.subr.mxu0 0.0
    %1374 = vmatpush1.msra.mxu0 0.0
    %1375 = vmatprep.subr.mxu0 0.0
    %1376 = vmatpush1.msra.mxu0 0.0
    %1377 = vmatprep.subr.mxu0 0.0
    %1378 = vmatpush1.msra.mxu0 0.0
    %1379 = vmatprep.subr.mxu0 0.0
    %1380 = vmatpush1.msra.mxu0 0.0
    %1381 = vmatprep.subr.mxu0 0.0
    %1382 = vmatpush1.msra.mxu0 0.0
    %1383 = vmatprep.subr.mxu0 0.0
    %1384 = vmatpush1.msra.mxu0 0.0
    %1385 = vmatprep.subr.mxu0 0.0
    %1386 = vmatpush1.msra.mxu0 0.0
    %1387 = vmatprep.subr.mxu0 0.0
    %1388 = vmatpush1.msra.mxu0 0.0
    %1389 = vmatprep.subr.mxu0 0.0
    %1390 = vmatpush1.msra.mxu0 0.0
    %1391 = vmatprep.subr.mxu0 0.0
    %1392 = vmatpush1.msra.mxu0 0.0
    %1393 = vmatprep.subr.mxu0 0.0
    %1394 = vmatpush1.msra.mxu0 0.0
    %1395 = vmatprep.subr.mxu0 0.0
    %1396 = vmatpush1.msra.mxu0 0.0
    %1397 = vmatprep.subr.mxu0 0.0
    %1398 = vmatpush1.msra.mxu0 0.0
    %1399 = vmatprep.subr.mxu0 0.0
    %1400 = vmatpush1.msra.mxu0 0.0
    %1401 = vmatprep.subr.mxu0 0.0
    %1402 = vmatpush1.msra.mxu0 0.0
    %1403 = vmatprep.subr.mxu0 0.0
    %1404 = vmatpush1.msra.mxu0 0.0
    %1405 = vmatprep.subr.mxu0 0.0
    %1406 = vmatpush1.msra.mxu0 0.0
    %1407 = vmatprep.subr.mxu0 0.0
    %1408 = vmatpush1.msra.mxu0 0.0
    %1409 = vmatprep.subr.mxu0 0.0
    %1410 = vmatpush1.msra.mxu0 0.0
    %1411 = vmatprep.subr.mxu0 0.0
    %1412 = vmatpush1.msra.mxu0 0.0
    %1413 = vmatprep.mubr.f32.mxu0 0.0
    %1414 = vmatmul.mubr.f32.gmra.mrb[0].mxu0 %v1347
    %v1415 = vpop.f32.mrb[0].mxu0
    %v1416 = vadd.f32 %v73, %v1415
    %v1417 = vpop.f32.mrb[0].mxu0
    %1418 = vdwg.mxu0
    %v1419 = vld [vmem:[#allocation6 + $0x8] sm:$0x3]
    %v1420 = vadd.f32 %v1419, %v1344
    %v1421 = vxor.u32 %v1420, 2147483648
    %v1422 = vmul.f32 %v1421, 1.442695
    %v1423 = vpow.pop %v1422
    %v1424 = vadd.f32 %v1423, 1.0
    %v1425 = vrcp.pop %v1424
    %v1426 = vmul.f32 1.0, %v1425
    %v1427 = vtanh.pop %v1420
    %v1428 = vmul.f32 %v1426, %v1166
    %1430 = vrot.lane.b32.xlu0 %v1427, 64
    %v1431 = vpop.permute.xlu0 %1430
    %v1433 = vmul.f32 %v1426, %v1431
    %1435 = vrot.lane.b32.xlu0 %v1433, 32
    %v1436 = vpop.permute.xlu0 %1435
    %v1438 = vadd.f32 %v1428, %v1436
    %v1439 = vtanh.pop %v1438
    %1441 = vrot.lane.b32.xlu0 %v1439, 64
    %v1442 = vpop.permute.xlu0 %1441
    %v1444 = vmul.f32 %v1426, %v1442
    %1446 = vrot.lane.b32.xlu0 %v1444, 32
    %v1447 = vpop.permute.xlu0 %1446
    %v1448 = vsel %vm88, %v1447, 0
    %1450 = vmatprep.subr.mxu0 0.0
    %1451 = vmatpush1.msra.mxu0 %v60
    %1452 = vmatprep.subr.mxu0 0.0
    %1453 = vmatpush1.msra.mxu0 %v61
    %1454 = vmatprep.subr.mxu0 0.0
    %1455 = vmatpush1.msra.mxu0 %v62
    %1456 = vmatprep.subr.mxu0 0.0
    %1457 = vmatpush1.msra.mxu0 %v63
    %1458 = vmatprep.subr.mxu0 0.0
    %1459 = vmatpush1.msra.mxu0 0.0
    %1460 = vmatprep.subr.mxu0 0.0
    %1461 = vmatpush1.msra.mxu0 0.0
    %1462 = vmatprep.subr.mxu0 0.0
    %1463 = vmatpush1.msra.mxu0 0.0
    %1464 = vmatprep.subr.mxu0 0.0
    %1465 = vmatpush1.msra.mxu0 0.0
    %1466 = vmatprep.subr.mxu0 0.0
    %1467 = vmatpush1.msra.mxu0 0.0
    %1468 = vmatprep.subr.mxu0 0.0
    %1469 = vmatpush1.msra.mxu0 0.0
    %1470 = vmatprep.subr.mxu0 0.0
    %1471 = vmatpush1.msra.mxu0 0.0
    %1472 = vmatprep.subr.mxu0 0.0
    %1473 = vmatpush1.msra.mxu0 0.0
    %1474 = vmatprep.subr.mxu0 0.0
    %1475 = vmatpush1.msra.mxu0 0.0
    %1476 = vmatprep.subr.mxu0 0.0
    %1477 = vmatpush1.msra.mxu0 0.0
    %1478 = vmatprep.subr.mxu0 0.0
    %1479 = vmatpush1.msra.mxu0 0.0
    %1480 = vmatprep.subr.mxu0 0.0
    %1481 = vmatpush1.msra.mxu0 0.0
    %1482 = vmatprep.subr.mxu0 0.0
    %1483 = vmatpush1.msra.mxu0 0.0
    %1484 = vmatprep.subr.mxu0 0.0
    %1485 = vmatpush1.msra.mxu0 0.0
    %1486 = vmatprep.subr.mxu0 0.0
    %1487 = vmatpush1.msra.mxu0 0.0
    %1488 = vmatprep.subr.mxu0 0.0
    %1489 = vmatpush1.msra.mxu0 0.0
    %1490 = vmatprep.subr.mxu0 0.0
    %1491 = vmatpush1.msra.mxu0 0.0
    %1492 = vmatprep.subr.mxu0 0.0
    %1493 = vmatpush1.msra.mxu0 0.0
    %1494 = vmatprep.subr.mxu0 0.0
    %1495 = vmatpush1.msra.mxu0 0.0
    %1496 = vmatprep.subr.mxu0 0.0
    %1497 = vmatpush1.msra.mxu0 0.0
    %1498 = vmatprep.subr.mxu0 0.0
    %1499 = vmatpush1.msra.mxu0 0.0
    %1500 = vmatprep.subr.mxu0 0.0
    %1501 = vmatpush1.msra.mxu0 0.0
    %1502 = vmatprep.subr.mxu0 0.0
    %1503 = vmatpush1.msra.mxu0 0.0
    %1504 = vmatprep.subr.mxu0 0.0
    %1505 = vmatpush1.msra.mxu0 0.0
    %1506 = vmatprep.subr.mxu0 0.0
    %1507 = vmatpush1.msra.mxu0 0.0
    %1508 = vmatprep.subr.mxu0 0.0
    %1509 = vmatpush1.msra.mxu0 0.0
    %1510 = vmatprep.subr.mxu0 0.0
    %1511 = vmatpush1.msra.mxu0 0.0
    %1512 = vmatprep.subr.mxu0 0.0
    %1513 = vmatpush1.msra.mxu0 0.0
    %1514 = vmatprep.mubr.f32.mxu0 0.0
    %1515 = vmatmul.mubr.f32.gmra.mrb[0].mxu0 %v1448
    %v1516 = vpop.f32.mrb[0].mxu0
    %v1517 = vadd.f32 %v1416, %v1516
    %v1518 = vpop.f32.mrb[0].mxu0
    %1519 = vdwg.mxu0
    %v1520 = vxor.u32 %v1517, 2147483648
    %v1521 = vmul.f32 %v1520, 1.442695
    %v1522 = vpow.pop %v1521
    %v1523 = vadd.f32 %v1522, 1.0
    %v1524 = vrcp.pop %v1523
    %v1525 = vmul.f32 1.0, %v1524
    %v1526 = vtanh.pop %v1517
    %v1527 = vmul.f32 %v1525, %v1265
    %1529 = vrot.lane.b32.xlu0 %v1526, 64
    %v1530 = vpop.permute.xlu0 %1529
    %v1532 = vmul.f32 %v1525, %v1530
    %1534 = vrot.lane.b32.xlu0 %v1532, 32
    %v1535 = vpop.permute.xlu0 %1534
    %v1537 = vadd.f32 %v1527, %v1535
    %v1538 = vtanh.pop %v1537
    %1540 = vrot.lane.b32.xlu0 %v1538, 64
    %v1541 = vpop.permute.xlu0 %1540
    %v1543 = vmul.f32 %v1525, %v1541
    %1545 = vrot.lane.b32.xlu0 %v1543, 32
    %v1546 = vpop.permute.xlu0 %1545
    %1548 = vst.msk [vmem:[#allocation7 + $0x8] sm:$0x3] %vm459, %v1546
    %1549 = vmatprep.subr.mxu0 0.0
    %1550 = vmatpush1.msra.mxu0 %v56
    %1551 = vmatprep.subr.mxu0 0.0
    %1552 = vmatpush1.msra.mxu0 %v57
    %1553 = vmatprep.subr.mxu0 0.0
    %1554 = vmatpush1.msra.mxu0 %v58
    %1555 = vmatprep.subr.mxu0 0.0
    %1556 = vmatpush1.msra.mxu0 %v59
    %1557 = vmatprep.subr.mxu0 0.0
    %1558 = vmatpush1.msra.mxu0 0.0
    %1559 = vmatprep.subr.mxu0 0.0
    %1560 = vmatpush1.msra.mxu0 0.0
    %1561 = vmatprep.subr.mxu0 0.0
    %1562 = vmatpush1.msra.mxu0 0.0
    %1563 = vmatprep.subr.mxu0 0.0
    %1564 = vmatpush1.msra.mxu0 0.0
    %1565 = vmatprep.subr.mxu0 0.0
    %1566 = vmatpush1.msra.mxu0 0.0
    %1567 = vmatprep.subr.mxu0 0.0
    %1568 = vmatpush1.msra.mxu0 0.0
    %1569 = vmatprep.subr.mxu0 0.0
    %1570 = vmatpush1.msra.mxu0 0.0
    %1571 = vmatprep.subr.mxu0 0.0
    %1572 = vmatpush1.msra.mxu0 0.0
    %1573 = vmatprep.subr.mxu0 0.0
    %1574 = vmatpush1.msra.mxu0 0.0
    %1575 = vmatprep.subr.mxu0 0.0
    %1576 = vmatpush1.msra.mxu0 0.0
    %1577 = vmatprep.subr.mxu0 0.0
    %1578 = vmatpush1.msra.mxu0 0.0
    %1579 = vmatprep.subr.mxu0 0.0
    %1580 = vmatpush1.msra.mxu0 0.0
    %1581 = vmatprep.subr.mxu0 0.0
    %1582 = vmatpush1.msra.mxu0 0.0
    %1583 = vmatprep.subr.mxu0 0.0
    %1584 = vmatpush1.msra.mxu0 0.0
    %1585 = vmatprep.subr.mxu0 0.0
    %1586 = vmatpush1.msra.mxu0 0.0
    %1587 = vmatprep.subr.mxu0 0.0
    %1588 = vmatpush1.msra.mxu0 0.0
    %1589 = vmatprep.subr.mxu0 0.0
    %1590 = vmatpush1.msra.mxu0 0.0
    %1591 = vmatprep.subr.mxu0 0.0
    %1592 = vmatpush1.msra.mxu0 0.0
    %1593 = vmatprep.subr.mxu0 0.0
    %1594 = vmatpush1.msra.mxu0 0.0
    %1595 = vmatprep.subr.mxu0 0.0
    %1596 = vmatpush1.msra.mxu0 0.0
    %1597 = vmatprep.subr.mxu0 0.0
    %1598 = vmatpush1.msra.mxu0 0.0
    %1599 = vmatprep.subr.mxu0 0.0
    %1600 = vmatpush1.msra.mxu0 0.0
    %1601 = vmatprep.subr.mxu0 0.0
    %1602 = vmatpush1.msra.mxu0 0.0
    %1603 = vmatprep.subr.mxu0 0.0
    %1604 = vmatpush1.msra.mxu0 0.0
    %1605 = vmatprep.subr.mxu0 0.0
    %1606 = vmatpush1.msra.mxu0 0.0
    %1607 = vmatprep.subr.mxu0 0.0
    %1608 = vmatpush1.msra.mxu0 0.0
    %1609 = vmatprep.subr.mxu0 0.0
    %1610 = vmatpush1.msra.mxu0 0.0
    %1611 = vmatprep.subr.mxu0 0.0
    %1612 = vmatpush1.msra.mxu0 0.0
    %1613 = vmatprep.mubr.f32.mxu0 0.0
    %1614 = vmatmul.mubr.f32.gmra.mrb[0].mxu0 %v1448
    %v1615 = vpop.f32.mrb[0].mxu0
    %v1616 = vadd.f32 0.0, %v1615
    %v1617 = vpop.f32.mrb[0].mxu0
    %1618 = vdwg.mxu0
    %v1619 = vsel %vm88, %v1546, 0
    %1621 = vmatprep.subr.mxu0 0.0
    %1622 = vmatpush1.msra.mxu0 %v64
    %1623 = vmatprep.subr.mxu0 0.0
    %1624 = vmatpush1.msra.mxu0 %v65
    %1625 = vmatprep.subr.mxu0 0.0
    %1626 = vmatpush1.msra.mxu0 %v66
    %1627 = vmatprep.subr.mxu0 0.0
    %1628 = vmatpush1.msra.mxu0 %v67
    %1629 = vmatprep.subr.mxu0 0.0
    %1630 = vmatpush1.msra.mxu0 0.0
    %1631 = vmatprep.subr.mxu0 0.0
    %1632 = vmatpush1.msra.mxu0 0.0
    %1633 = vmatprep.subr.mxu0 0.0
    %1634 = vmatpush1.msra.mxu0 0.0
    %1635 = vmatprep.subr.mxu0 0.0
    %1636 = vmatpush1.msra.mxu0 0.0
    %1637 = vmatprep.subr.mxu0 0.0
    %1638 = vmatpush1.msra.mxu0 0.0
    %1639 = vmatprep.subr.mxu0 0.0
    %1640 = vmatpush1.msra.mxu0 0.0
    %1641 = vmatprep.subr.mxu0 0.0
    %1642 = vmatpush1.msra.mxu0 0.0
    %1643 = vmatprep.subr.mxu0 0.0
    %1644 = vmatpush1.msra.mxu0 0.0
    %1645 = vmatprep.subr.mxu0 0.0
    %1646 = vmatpush1.msra.mxu0 0.0
    %1647 = vmatprep.subr.mxu0 0.0
    %1648 = vmatpush1.msra.mxu0 0.0
    %1649 = vmatprep.subr.mxu0 0.0
    %1650 = vmatpush1.msra.mxu0 0.0
    %1651 = vmatprep.subr.mxu0 0.0
    %1652 = vmatpush1.msra.mxu0 0.0
    %1653 = vmatprep.subr.mxu0 0.0
    %1654 = vmatpush1.msra.mxu0 0.0
    %1655 = vmatprep.subr.mxu0 0.0
    %1656 = vmatpush1.msra.mxu0 0.0
    %1657 = vmatprep.subr.mxu0 0.0
    %1658 = vmatpush1.msra.mxu0 0.0
    %1659 = vmatprep.subr.mxu0 0.0
    %1660 = vmatpush1.msra.mxu0 0.0
    %1661 = vmatprep.subr.mxu0 0.0
    %1662 = vmatpush1.msra.mxu0 0.0
    %1663 = vmatprep.subr.mxu0 0.0
    %1664 = vmatpush1.msra.mxu0 0.0
    %1665 = vmatprep.subr.mxu0 0.0
    %1666 = vmatpush1.msra.mxu0 0.0
    %1667 = vmatprep.subr.mxu0 0.0
    %1668 = vmatpush1.msra.mxu0 0.0
    %1669 = vmatprep.subr.mxu0 0.0
    %1670 = vmatpush1.msra.mxu0 0.0
    %1671 = vmatprep.subr.mxu0 0.0
    %1672 = vmatpush1.msra.mxu0 0.0
    %1673 = vmatprep.subr.mxu0 0.0
    %1674 = vmatpush1.msra.mxu0 0.0
    %1675 = vmatprep.subr.mxu0 0.0
    %1676 = vmatpush1.msra.mxu0 0.0
    %1677 = vmatprep.subr.mxu0 0.0
    %1678 = vmatpush1.msra.mxu0 0.0
    %1679 = vmatprep.subr.mxu0 0.0
    %1680 = vmatpush1.msra.mxu0 0.0
    %1681 = vmatprep.subr.mxu0 0.0
    %1682 = vmatpush1.msra.mxu0 0.0
    %1683 = vmatprep.subr.mxu0 0.0
    %1684 = vmatpush1.msra.mxu0 0.0
    %1685 = vmatprep.mubr.f32.mxu0 0.0
    %1686 = vmatmul.mubr.f32.gmra.mrb[0].mxu0 %v1619
    %v1687 = vpop.f32.mrb[0].mxu0
    %v1688 = vadd.f32 %v73, %v1687
    %v1689 = vpop.f32.mrb[0].mxu0
    %1690 = vdwg.mxu0
    %v1691 = vld [vmem:[#allocation6 + $0xa] sm:$0x3]
    %v1692 = vadd.f32 %v1691, %v1616
    %v1693 = vxor.u32 %v1692, 2147483648
    %v1694 = vmul.f32 %v1693, 1.442695
    %v1695 = vpow.pop %v1694
    %v1696 = vadd.f32 %v1695, 1.0
    %v1697 = vrcp.pop %v1696
    %v1698 = vmul.f32 1.0, %v1697
    %v1699 = vtanh.pop %v1692
    %v1700 = vmul.f32 %v1698, %v1438
    %1702 = vrot.lane.b32.xlu0 %v1699, 64
    %v1703 = vpop.permute.xlu0 %1702
    %v1705 = vmul.f32 %v1698, %v1703
    %1707 = vrot.lane.b32.xlu0 %v1705, 32
    %v1708 = vpop.permute.xlu0 %1707
    %v1710 = vadd.f32 %v1700, %v1708
    %v1711 = vtanh.pop %v1710
    %1713 = vrot.lane.b32.xlu0 %v1711, 64
    %v1714 = vpop.permute.xlu0 %1713
    %v1716 = vmul.f32 %v1698, %v1714
    %1718 = vrot.lane.b32.xlu0 %v1716, 32
    %v1719 = vpop.permute.xlu0 %1718
    %v1720 = vsel %vm88, %v1719, 0
    %1722 = vmatprep.subr.mxu0 0.0
    %1723 = vmatpush1.msra.mxu0 %v60
    %1724 = vmatprep.subr.mxu0 0.0
    %1725 = vmatpush1.msra.mxu0 %v61
    %1726 = vmatprep.subr.mxu0 0.0
    %1727 = vmatpush1.msra.mxu0 %v62
    %1728 = vmatprep.subr.mxu0 0.0
    %1729 = vmatpush1.msra.mxu0 %v63
    %1730 = vmatprep.subr.mxu0 0.0
    %1731 = vmatpush1.msra.mxu0 0.0
    %1732 = vmatprep.subr.mxu0 0.0
    %1733 = vmatpush1.msra.mxu0 0.0
    %1734 = vmatprep.subr.mxu0 0.0
    %1735 = vmatpush1.msra.mxu0 0.0
    %1736 = vmatprep.subr.mxu0 0.0
    %1737 = vmatpush1.msra.mxu0 0.0
    %1738 = vmatprep.subr.mxu0 0.0
    %1739 = vmatpush1.msra.mxu0 0.0
    %1740 = vmatprep.subr.mxu0 0.0
    %1741 = vmatpush1.msra.mxu0 0.0
    %1742 = vmatprep.subr.mxu0 0.0
    %1743 = vmatpush1.msra.mxu0 0.0
    %1744 = vmatprep.subr.mxu0 0.0
    %1745 = vmatpush1.msra.mxu0 0.0
    %1746 = vmatprep.subr.mxu0 0.0
    %1747 = vmatpush1.msra.mxu0 0.0
    %1748 = vmatprep.subr.mxu0 0.0
    %1749 = vmatpush1.msra.mxu0 0.0
    %1750 = vmatprep.subr.mxu0 0.0
    %1751 = vmatpush1.msra.mxu0 0.0
    %1752 = vmatprep.subr.mxu0 0.0
    %1753 = vmatpush1.msra.mxu0 0.0
    %1754 = vmatprep.subr.mxu0 0.0
    %1755 = vmatpush1.msra.mxu0 0.0
    %1756 = vmatprep.subr.mxu0 0.0
    %1757 = vmatpush1.msra.mxu0 0.0
    %1758 = vmatprep.subr.mxu0 0.0
    %1759 = vmatpush1.msra.mxu0 0.0
    %1760 = vmatprep.subr.mxu0 0.0
    %1761 = vmatpush1.msra.mxu0 0.0
    %1762 = vmatprep.subr.mxu0 0.0
    %1763 = vmatpush1.msra.mxu0 0.0
    %1764 = vmatprep.subr.mxu0 0.0
    %1765 = vmatpush1.msra.mxu0 0.0
    %1766 = vmatprep.subr.mxu0 0.0
    %1767 = vmatpush1.msra.mxu0 0.0
    %1768 = vmatprep.subr.mxu0 0.0
    %1769 = vmatpush1.msra.mxu0 0.0
    %1770 = vmatprep.subr.mxu0 0.0
    %1771 = vmatpush1.msra.mxu0 0.0
    %1772 = vmatprep.subr.mxu0 0.0
    %1773 = vmatpush1.msra.mxu0 0.0
    %1774 = vmatprep.subr.mxu0 0.0
    %1775 = vmatpush1.msra.mxu0 0.0
    %1776 = vmatprep.subr.mxu0 0.0
    %1777 = vmatpush1.msra.mxu0 0.0
    %1778 = vmatprep.subr.mxu0 0.0
    %1779 = vmatpush1.msra.mxu0 0.0
    %1780 = vmatprep.subr.mxu0 0.0
    %1781 = vmatpush1.msra.mxu0 0.0
    %1782 = vmatprep.subr.mxu0 0.0
    %1783 = vmatpush1.msra.mxu0 0.0
    %1784 = vmatprep.subr.mxu0 0.0
    %1785 = vmatpush1.msra.mxu0 0.0
    %1786 = vmatprep.mubr.f32.mxu0 0.0
    %1787 = vmatmul.mubr.f32.gmra.mrb[0].mxu0 %v1720
    %v1788 = vpop.f32.mrb[0].mxu0
    %v1789 = vadd.f32 %v1688, %v1788
    %v1790 = vpop.f32.mrb[0].mxu0
    %1791 = vdwg.mxu0
    %v1792 = vxor.u32 %v1789, 2147483648
    %v1793 = vmul.f32 %v1792, 1.442695
    %v1794 = vpow.pop %v1793
    %v1795 = vadd.f32 %v1794, 1.0
    %v1796 = vrcp.pop %v1795
    %v1797 = vmul.f32 1.0, %v1796
    %v1798 = vtanh.pop %v1789
    %v1799 = vmul.f32 %v1797, %v1537
    %1801 = vrot.lane.b32.xlu0 %v1798, 64
    %v1802 = vpop.permute.xlu0 %1801
    %v1804 = vmul.f32 %v1797, %v1802
    %1806 = vrot.lane.b32.xlu0 %v1804, 32
    %v1807 = vpop.permute.xlu0 %1806
    %v1809 = vadd.f32 %v1799, %v1807
    %v1810 = vtanh.pop %v1809
    %1812 = vrot.lane.b32.xlu0 %v1810, 64
    %v1813 = vpop.permute.xlu0 %1812
    %v1815 = vmul.f32 %v1797, %v1813
    %1817 = vrot.lane.b32.xlu0 %v1815, 32
    %v1818 = vpop.permute.xlu0 %1817
    %1820 = vst.msk [vmem:[#allocation7 + $0xa] sm:$0x3] %vm459, %v1818
    %1821 = vmatprep.subr.mxu0 0.0
    %1822 = vmatpush1.msra.mxu0 %v56
    %1823 = vmatprep.subr.mxu0 0.0
    %1824 = vmatpush1.msra.mxu0 %v57
    %1825 = vmatprep.subr.mxu0 0.0
    %1826 = vmatpush1.msra.mxu0 %v58
    %1827 = vmatprep.subr.mxu0 0.0
    %1828 = vmatpush1.msra.mxu0 %v59
    %1829 = vmatprep.subr.mxu0 0.0
    %1830 = vmatpush1.msra.mxu0 0.0
    %1831 = vmatprep.subr.mxu0 0.0
    %1832 = vmatpush1.msra.mxu0 0.0
    %1833 = vmatprep.subr.mxu0 0.0
    %1834 = vmatpush1.msra.mxu0 0.0
    %1835 = vmatprep.subr.mxu0 0.0
    %1836 = vmatpush1.msra.mxu0 0.0
    %1837 = vmatprep.subr.mxu0 0.0
    %1838 = vmatpush1.msra.mxu0 0.0
    %1839 = vmatprep.subr.mxu0 0.0
    %1840 = vmatpush1.msra.mxu0 0.0
    %1841 = vmatprep.subr.mxu0 0.0
    %1842 = vmatpush1.msra.mxu0 0.0
    %1843 = vmatprep.subr.mxu0 0.0
    %1844 = vmatpush1.msra.mxu0 0.0
    %1845 = vmatprep.subr.mxu0 0.0
    %1846 = vmatpush1.msra.mxu0 0.0
    %1847 = vmatprep.subr.mxu0 0.0
    %1848 = vmatpush1.msra.mxu0 0.0
    %1849 = vmatprep.subr.mxu0 0.0
    %1850 = vmatpush1.msra.mxu0 0.0
    %1851 = vmatprep.subr.mxu0 0.0
    %1852 = vmatpush1.msra.mxu0 0.0
    %1853 = vmatprep.subr.mxu0 0.0
    %1854 = vmatpush1.msra.mxu0 0.0
    %1855 = vmatprep.subr.mxu0 0.0
    %1856 = vmatpush1.msra.mxu0 0.0
    %1857 = vmatprep.subr.mxu0 0.0
    %1858 = vmatpush1.msra.mxu0 0.0
    %1859 = vmatprep.subr.mxu0 0.0
    %1860 = vmatpush1.msra.mxu0 0.0
    %1861 = vmatprep.subr.mxu0 0.0
    %1862 = vmatpush1.msra.mxu0 0.0
    %1863 = vmatprep.subr.mxu0 0.0
    %1864 = vmatpush1.msra.mxu0 0.0
    %1865 = vmatprep.subr.mxu0 0.0
    %1866 = vmatpush1.msra.mxu0 0.0
    %1867 = vmatprep.subr.mxu0 0.0
    %1868 = vmatpush1.msra.mxu0 0.0
    %1869 = vmatprep.subr.mxu0 0.0
    %1870 = vmatpush1.msra.mxu0 0.0
    %1871 = vmatprep.subr.mxu0 0.0
    %1872 = vmatpush1.msra.mxu0 0.0
    %1873 = vmatprep.subr.mxu0 0.0
    %1874 = vmatpush1.msra.mxu0 0.0
    %1875 = vmatprep.subr.mxu0 0.0
    %1876 = vmatpush1.msra.mxu0 0.0
    %1877 = vmatprep.subr.mxu0 0.0
    %1878 = vmatpush1.msra.mxu0 0.0
    %1879 = vmatprep.subr.mxu0 0.0
    %1880 = vmatpush1.msra.mxu0 0.0
    %1881 = vmatprep.subr.mxu0 0.0
    %1882 = vmatpush1.msra.mxu0 0.0
    %1883 = vmatprep.subr.mxu0 0.0
    %1884 = vmatpush1.msra.mxu0 0.0
    %1885 = vmatprep.mubr.f32.mxu0 0.0
    %1886 = vmatmul.mubr.f32.gmra.mrb[0].mxu0 %v1720
    %v1887 = vpop.f32.mrb[0].mxu0
    %v1888 = vadd.f32 0.0, %v1887
    %v1889 = vpop.f32.mrb[0].mxu0
    %1890 = vdwg.mxu0
    %v1891 = vsel %vm88, %v1818, 0
    %1893 = vmatprep.subr.mxu0 0.0
    %1894 = vmatpush1.msra.mxu0 %v64
    %1895 = vmatprep.subr.mxu0 0.0
    %1896 = vmatpush1.msra.mxu0 %v65
    %1897 = vmatprep.subr.mxu0 0.0
    %1898 = vmatpush1.msra.mxu0 %v66
    %1899 = vmatprep.subr.mxu0 0.0
    %1900 = vmatpush1.msra.mxu0 %v67
    %1901 = vmatprep.subr.mxu0 0.0
    %1902 = vmatpush1.msra.mxu0 0.0
    %1903 = vmatprep.subr.mxu0 0.0
    %1904 = vmatpush1.msra.mxu0 0.0
    %1905 = vmatprep.subr.mxu0 0.0
    %1906 = vmatpush1.msra.mxu0 0.0
    %1907 = vmatprep.subr.mxu0 0.0
    %1908 = vmatpush1.msra.mxu0 0.0
    %1909 = vmatprep.subr.mxu0 0.0
    %1910 = vmatpush1.msra.mxu0 0.0
    %1911 = vmatprep.subr.mxu0 0.0
    %1912 = vmatpush1.msra.mxu0 0.0
    %1913 = vmatprep.subr.mxu0 0.0
    %1914 = vmatpush1.msra.mxu0 0.0
    %1915 = vmatprep.subr.mxu0 0.0
    %1916 = vmatpush1.msra.mxu0 0.0
    %1917 = vmatprep.subr.mxu0 0.0
    %1918 = vmatpush1.msra.mxu0 0.0
    %1919 = vmatprep.subr.mxu0 0.0
    %1920 = vmatpush1.msra.mxu0 0.0
    %1921 = vmatprep.subr.mxu0 0.0
    %1922 = vmatpush1.msra.mxu0 0.0
    %1923 = vmatprep.subr.mxu0 0.0
    %1924 = vmatpush1.msra.mxu0 0.0
    %1925 = vmatprep.subr.mxu0 0.0
    %1926 = vmatpush1.msra.mxu0 0.0
    %1927 = vmatprep.subr.mxu0 0.0
    %1928 = vmatpush1.msra.mxu0 0.0
    %1929 = vmatprep.subr.mxu0 0.0
    %1930 = vmatpush1.msra.mxu0 0.0
    %1931 = vmatprep.subr.mxu0 0.0
    %1932 = vmatpush1.msra.mxu0 0.0
    %1933 = vmatprep.subr.mxu0 0.0
    %1934 = vmatpush1.msra.mxu0 0.0
    %1935 = vmatprep.subr.mxu0 0.0
    %1936 = vmatpush1.msra.mxu0 0.0
    %1937 = vmatprep.subr.mxu0 0.0
    %1938 = vmatpush1.msra.mxu0 0.0
    %1939 = vmatprep.subr.mxu0 0.0
    %1940 = vmatpush1.msra.mxu0 0.0
    %1941 = vmatprep.subr.mxu0 0.0
    %1942 = vmatpush1.msra.mxu0 0.0
    %1943 = vmatprep.subr.mxu0 0.0
    %1944 = vmatpush1.msra.mxu0 0.0
    %1945 = vmatprep.subr.mxu0 0.0
    %1946 = vmatpush1.msra.mxu0 0.0
    %1947 = vmatprep.subr.mxu0 0.0
    %1948 = vmatpush1.msra.mxu0 0.0
    %1949 = vmatprep.subr.mxu0 0.0
    %1950 = vmatpush1.msra.mxu0 0.0
    %1951 = vmatprep.subr.mxu0 0.0
    %1952 = vmatpush1.msra.mxu0 0.0
    %1953 = vmatprep.subr.mxu0 0.0
    %1954 = vmatpush1.msra.mxu0 0.0
    %1955 = vmatprep.subr.mxu0 0.0
    %1956 = vmatpush1.msra.mxu0 0.0
    %1957 = vmatprep.mubr.f32.mxu0 0.0
    %1958 = vmatmul.mubr.f32.gmra.mrb[0].mxu0 %v1891
    %v1959 = vpop.f32.mrb[0].mxu0
    %v1960 = vadd.f32 %v73, %v1959
    %v1961 = vpop.f32.mrb[0].mxu0
    %1962 = vdwg.mxu0
    %v1963 = vld [vmem:[#allocation6 + $0xc] sm:$0x3]
    %v1964 = vadd.f32 %v1963, %v1888
    %v1965 = vxor.u32 %v1964, 2147483648
    %v1966 = vmul.f32 %v1965, 1.442695
    %v1967 = vpow.pop %v1966
    %v1968 = vadd.f32 %v1967, 1.0
    %v1969 = vrcp.pop %v1968
    %v1970 = vmul.f32 1.0, %v1969
    %v1971 = vtanh.pop %v1964
    %v1972 = vmul.f32 %v1970, %v1710
    %1974 = vrot.lane.b32.xlu0 %v1971, 64
    %v1975 = vpop.permute.xlu0 %1974
    %v1977 = vmul.f32 %v1970, %v1975
    %1979 = vrot.lane.b32.xlu0 %v1977, 32
    %v1980 = vpop.permute.xlu0 %1979
    %v1982 = vadd.f32 %v1972, %v1980
    %v1983 = vtanh.pop %v1982
    %1985 = vrot.lane.b32.xlu0 %v1983, 64
    %v1986 = vpop.permute.xlu0 %1985
    %v1988 = vmul.f32 %v1970, %v1986
    %1990 = vrot.lane.b32.xlu0 %v1988, 32
    %v1991 = vpop.permute.xlu0 %1990
    %v1992 = vsel %vm88, %v1991, 0
    %1994 = vmatprep.subr.mxu0 0.0
    %1995 = vmatpush1.msra.mxu0 %v60
    %1996 = vmatprep.subr.mxu0 0.0
    %1997 = vmatpush1.msra.mxu0 %v61
    %1998 = vmatprep.subr.mxu0 0.0
    %1999 = vmatpush1.msra.mxu0 %v62
    %2000 = vmatprep.subr.mxu0 0.0
    %2001 = vmatpush1.msra.mxu0 %v63
    %2002 = vmatprep.subr.mxu0 0.0
    %2003 = vmatpush1.msra.mxu0 0.0
    %2004 = vmatprep.subr.mxu0 0.0
    %2005 = vmatpush1.msra.mxu0 0.0
    %2006 = vmatprep.subr.mxu0 0.0
    %2007 = vmatpush1.msra.mxu0 0.0
    %2008 = vmatprep.subr.mxu0 0.0
    %2009 = vmatpush1.msra.mxu0 0.0
    %2010 = vmatprep.subr.mxu0 0.0
    %2011 = vmatpush1.msra.mxu0 0.0
    %2012 = vmatprep.subr.mxu0 0.0
    %2013 = vmatpush1.msra.mxu0 0.0
    %2014 = vmatprep.subr.mxu0 0.0
    %2015 = vmatpush1.msra.mxu0 0.0
    %2016 = vmatprep.subr.mxu0 0.0
    %2017 = vmatpush1.msra.mxu0 0.0
    %2018 = vmatprep.subr.mxu0 0.0
    %2019 = vmatpush1.msra.mxu0 0.0
    %2020 = vmatprep.subr.mxu0 0.0
    %2021 = vmatpush1.msra.mxu0 0.0
    %2022 = vmatprep.subr.mxu0 0.0
    %2023 = vmatpush1.msra.mxu0 0.0
    %2024 = vmatprep.subr.mxu0 0.0
    %2025 = vmatpush1.msra.mxu0 0.0
    %2026 = vmatprep.subr.mxu0 0.0
    %2027 = vmatpush1.msra.mxu0 0.0
    %2028 = vmatprep.subr.mxu0 0.0
    %2029 = vmatpush1.msra.mxu0 0.0
    %2030 = vmatprep.subr.mxu0 0.0
    %2031 = vmatpush1.msra.mxu0 0.0
    %2032 = vmatprep.subr.mxu0 0.0
    %2033 = vmatpush1.msra.mxu0 0.0
    %2034 = vmatprep.subr.mxu0 0.0
    %2035 = vmatpush1.msra.mxu0 0.0
    %2036 = vmatprep.subr.mxu0 0.0
    %2037 = vmatpush1.msra.mxu0 0.0
    %2038 = vmatprep.subr.mxu0 0.0
    %2039 = vmatpush1.msra.mxu0 0.0
    %2040 = vmatprep.subr.mxu0 0.0
    %2041 = vmatpush1.msra.mxu0 0.0
    %2042 = vmatprep.subr.mxu0 0.0
    %2043 = vmatpush1.msra.mxu0 0.0
    %2044 = vmatprep.subr.mxu0 0.0
    %2045 = vmatpush1.msra.mxu0 0.0
    %2046 = vmatprep.subr.mxu0 0.0
    %2047 = vmatpush1.msra.mxu0 0.0
    %2048 = vmatprep.subr.mxu0 0.0
    %2049 = vmatpush1.msra.mxu0 0.0
    %2050 = vmatprep.subr.mxu0 0.0
    %2051 = vmatpush1.msra.mxu0 0.0
    %2052 = vmatprep.subr.mxu0 0.0
    %2053 = vmatpush1.msra.mxu0 0.0
    %2054 = vmatprep.subr.mxu0 0.0
    %2055 = vmatpush1.msra.mxu0 0.0
    %2056 = vmatprep.subr.mxu0 0.0
    %2057 = vmatpush1.msra.mxu0 0.0
    %2058 = vmatprep.mubr.f32.mxu0 0.0
    %2059 = vmatmul.mubr.f32.gmra.mrb[0].mxu0 %v1992
    %v2060 = vpop.f32.mrb[0].mxu0
    %v2061 = vadd.f32 %v1960, %v2060
    %v2062 = vpop.f32.mrb[0].mxu0
    %2063 = vdwg.mxu0
    %v2064 = vxor.u32 %v2061, 2147483648
    %v2065 = vmul.f32 %v2064, 1.442695
    %v2066 = vpow.pop %v2065
    %v2067 = vadd.f32 %v2066, 1.0
    %v2068 = vrcp.pop %v2067
    %v2069 = vmul.f32 1.0, %v2068
    %v2070 = vtanh.pop %v2061
    %v2071 = vmul.f32 %v2069, %v1809
    %2073 = vrot.lane.b32.xlu0 %v2070, 64
    %v2074 = vpop.permute.xlu0 %2073
    %v2076 = vmul.f32 %v2069, %v2074
    %2078 = vrot.lane.b32.xlu0 %v2076, 32
    %v2079 = vpop.permute.xlu0 %2078
    %v2081 = vadd.f32 %v2071, %v2079
    %v2082 = vtanh.pop %v2081
    %2084 = vrot.lane.b32.xlu0 %v2082, 64
    %v2085 = vpop.permute.xlu0 %2084
    %v2087 = vmul.f32 %v2069, %v2085
    %2089 = vrot.lane.b32.xlu0 %v2087, 32
    %v2090 = vpop.permute.xlu0 %2089
    %2092 = vst.msk [vmem:[#allocation7 + $0xc] sm:$0x3] %vm459, %v2090
    %2093 = vmatprep.subr.mxu0 0.0
    %2094 = vmatpush1.msra.mxu0 %v56
    %2095 = vmatprep.subr.mxu0 0.0
    %2096 = vmatpush1.msra.mxu0 %v57
    %2097 = vmatprep.subr.mxu0 0.0
    %2098 = vmatpush1.msra.mxu0 %v58
    %2099 = vmatprep.subr.mxu0 0.0
    %2100 = vmatpush1.msra.mxu0 %v59
    %2101 = vmatprep.subr.mxu0 0.0
    %2102 = vmatpush1.msra.mxu0 0.0
    %2103 = vmatprep.subr.mxu0 0.0
    %2104 = vmatpush1.msra.mxu0 0.0
    %2105 = vmatprep.subr.mxu0 0.0
    %2106 = vmatpush1.msra.mxu0 0.0
    %2107 = vmatprep.subr.mxu0 0.0
    %2108 = vmatpush1.msra.mxu0 0.0
    %2109 = vmatprep.subr.mxu0 0.0
    %2110 = vmatpush1.msra.mxu0 0.0
    %2111 = vmatprep.subr.mxu0 0.0
    %2112 = vmatpush1.msra.mxu0 0.0
    %2113 = vmatprep.subr.mxu0 0.0
    %2114 = vmatpush1.msra.mxu0 0.0
    %2115 = vmatprep.subr.mxu0 0.0
    %2116 = vmatpush1.msra.mxu0 0.0
    %2117 = vmatprep.subr.mxu0 0.0
    %2118 = vmatpush1.msra.mxu0 0.0
    %2119 = vmatprep.subr.mxu0 0.0
    %2120 = vmatpush1.msra.mxu0 0.0
    %2121 = vmatprep.subr.mxu0 0.0
    %2122 = vmatpush1.msra.mxu0 0.0
    %2123 = vmatprep.subr.mxu0 0.0
    %2124 = vmatpush1.msra.mxu0 0.0
    %2125 = vmatprep.subr.mxu0 0.0
    %2126 = vmatpush1.msra.mxu0 0.0
    %2127 = vmatprep.subr.mxu0 0.0
    %2128 = vmatpush1.msra.mxu0 0.0
    %2129 = vmatprep.subr.mxu0 0.0
    %2130 = vmatpush1.msra.mxu0 0.0
    %2131 = vmatprep.subr.mxu0 0.0
    %2132 = vmatpush1.msra.mxu0 0.0
    %2133 = vmatprep.subr.mxu0 0.0
    %2134 = vmatpush1.msra.mxu0 0.0
    %2135 = vmatprep.subr.mxu0 0.0
    %2136 = vmatpush1.msra.mxu0 0.0
    %2137 = vmatprep.subr.mxu0 0.0
    %2138 = vmatpush1.msra.mxu0 0.0
    %2139 = vmatprep.subr.mxu0 0.0
    %2140 = vmatpush1.msra.mxu0 0.0
    %2141 = vmatprep.subr.mxu0 0.0
    %2142 = vmatpush1.msra.mxu0 0.0
    %2143 = vmatprep.subr.mxu0 0.0
    %2144 = vmatpush1.msra.mxu0 0.0
    %2145 = vmatprep.subr.mxu0 0.0
    %2146 = vmatpush1.msra.mxu0 0.0
    %2147 = vmatprep.subr.mxu0 0.0
    %2148 = vmatpush1.msra.mxu0 0.0
    %2149 = vmatprep.subr.mxu0 0.0
    %2150 = vmatpush1.msra.mxu0 0.0
    %2151 = vmatprep.subr.mxu0 0.0
    %2152 = vmatpush1.msra.mxu0 0.0
    %2153 = vmatprep.subr.mxu0 0.0
    %2154 = vmatpush1.msra.mxu0 0.0
    %2155 = vmatprep.subr.mxu0 0.0
    %2156 = vmatpush1.msra.mxu0 0.0
    %2157 = vmatprep.mubr.f32.mxu0 0.0
    %2158 = vmatmul.mubr.f32.gmra.mrb[0].mxu0 %v1992
    %v2159 = vpop.f32.mrb[0].mxu0
    %v2160 = vadd.f32 0.0, %v2159
    %v2161 = vpop.f32.mrb[0].mxu0
    %2162 = vdwg.mxu0
    %v2163 = vsel %vm88, %v2090, 0
    %2165 = vmatprep.subr.mxu0 0.0
    %2166 = vmatpush1.msra.mxu0 %v64
    %2167 = vmatprep.subr.mxu0 0.0
    %2168 = vmatpush1.msra.mxu0 %v65
    %2169 = vmatprep.subr.mxu0 0.0
    %2170 = vmatpush1.msra.mxu0 %v66
    %2171 = vmatprep.subr.mxu0 0.0
    %2172 = vmatpush1.msra.mxu0 %v67
    %2173 = vmatprep.subr.mxu0 0.0
    %2174 = vmatpush1.msra.mxu0 0.0
    %2175 = vmatprep.subr.mxu0 0.0
    %2176 = vmatpush1.msra.mxu0 0.0
    %2177 = vmatprep.subr.mxu0 0.0
    %2178 = vmatpush1.msra.mxu0 0.0
    %2179 = vmatprep.subr.mxu0 0.0
    %2180 = vmatpush1.msra.mxu0 0.0
    %2181 = vmatprep.subr.mxu0 0.0
    %2182 = vmatpush1.msra.mxu0 0.0
    %2183 = vmatprep.subr.mxu0 0.0
    %2184 = vmatpush1.msra.mxu0 0.0
    %2185 = vmatprep.subr.mxu0 0.0
    %2186 = vmatpush1.msra.mxu0 0.0
    %2187 = vmatprep.subr.mxu0 0.0
    %2188 = vmatpush1.msra.mxu0 0.0
    %2189 = vmatprep.subr.mxu0 0.0
    %2190 = vmatpush1.msra.mxu0 0.0
    %2191 = vmatprep.subr.mxu0 0.0
    %2192 = vmatpush1.msra.mxu0 0.0
    %2193 = vmatprep.subr.mxu0 0.0
    %2194 = vmatpush1.msra.mxu0 0.0
    %2195 = vmatprep.subr.mxu0 0.0
    %2196 = vmatpush1.msra.mxu0 0.0
    %2197 = vmatprep.subr.mxu0 0.0
    %2198 = vmatpush1.msra.mxu0 0.0
    %2199 = vmatprep.subr.mxu0 0.0
    %2200 = vmatpush1.msra.mxu0 0.0
    %2201 = vmatprep.subr.mxu0 0.0
    %2202 = vmatpush1.msra.mxu0 0.0
    %2203 = vmatprep.subr.mxu0 0.0
    %2204 = vmatpush1.msra.mxu0 0.0
    %2205 = vmatprep.subr.mxu0 0.0
    %2206 = vmatpush1.msra.mxu0 0.0
    %2207 = vmatprep.subr.mxu0 0.0
    %2208 = vmatpush1.msra.mxu0 0.0
    %2209 = vmatprep.subr.mxu0 0.0
    %2210 = vmatpush1.msra.mxu0 0.0
    %2211 = vmatprep.subr.mxu0 0.0
    %2212 = vmatpush1.msra.mxu0 0.0
    %2213 = vmatprep.subr.mxu0 0.0
    %2214 = vmatpush1.msra.mxu0 0.0
    %2215 = vmatprep.subr.mxu0 0.0
    %2216 = vmatpush1.msra.mxu0 0.0
    %2217 = vmatprep.subr.mxu0 0.0
    %2218 = vmatpush1.msra.mxu0 0.0
    %2219 = vmatprep.subr.mxu0 0.0
    %2220 = vmatpush1.msra.mxu0 0.0
    %2221 = vmatprep.subr.mxu0 0.0
    %2222 = vmatpush1.msra.mxu0 0.0
    %2223 = vmatprep.subr.mxu0 0.0
    %2224 = vmatpush1.msra.mxu0 0.0
    %2225 = vmatprep.subr.mxu0 0.0
    %2226 = vmatpush1.msra.mxu0 0.0
    %2227 = vmatprep.subr.mxu0 0.0
    %2228 = vmatpush1.msra.mxu0 0.0
    %2229 = vmatprep.mubr.f32.mxu0 0.0
    %2230 = vmatmul.mubr.f32.gmra.mrb[0].mxu0 %v2163
    %v2231 = vpop.f32.mrb[0].mxu0
    %v2232 = vadd.f32 %v73, %v2231
    %v2233 = vpop.f32.mrb[0].mxu0
    %2234 = vdwg.mxu0
    %v2235 = vld [vmem:[#allocation6 + $0xe] sm:$0x3]
    %v2236 = vadd.f32 %v2235, %v2160
    %v2237 = vxor.u32 %v2236, 2147483648
    %v2238 = vmul.f32 %v2237, 1.442695
    %v2239 = vpow.pop %v2238
    %v2240 = vadd.f32 %v2239, 1.0
    %v2241 = vrcp.pop %v2240
    %v2242 = vmul.f32 1.0, %v2241
    %v2243 = vtanh.pop %v2236
    %v2244 = vmul.f32 %v2242, %v1982
    %2246 = vrot.lane.b32.xlu0 %v2243, 64
    %v2247 = vpop.permute.xlu0 %2246
    %v2249 = vmul.f32 %v2242, %v2247
    %2251 = vrot.lane.b32.xlu0 %v2249, 32
    %v2252 = vpop.permute.xlu0 %2251
    %v2254 = vadd.f32 %v2244, %v2252
    %v2255 = vtanh.pop %v2254
    %2257 = vrot.lane.b32.xlu0 %v2255, 64
    %v2258 = vpop.permute.xlu0 %2257
    %v2260 = vmul.f32 %v2242, %v2258
    %2262 = vrot.lane.b32.xlu0 %v2260, 32
    %v2263 = vpop.permute.xlu0 %2262
    %v2264 = vsel %vm88, %v2263, 0
    %2266 = vmatprep.subr.mxu0 0.0
    %2267 = vmatpush1.msra.mxu0 %v60
    %2268 = vmatprep.subr.mxu0 0.0
    %2269 = vmatpush1.msra.mxu0 %v61
    %2270 = vmatprep.subr.mxu0 0.0
    %2271 = vmatpush1.msra.mxu0 %v62
    %2272 = vmatprep.subr.mxu0 0.0
    %2273 = vmatpush1.msra.mxu0 %v63
    %2274 = vmatprep.subr.mxu0 0.0
    %2275 = vmatpush1.msra.mxu0 0.0
    %2276 = vmatprep.subr.mxu0 0.0
    %2277 = vmatpush1.msra.mxu0 0.0
    %2278 = vmatprep.subr.mxu0 0.0
    %2279 = vmatpush1.msra.mxu0 0.0
    %2280 = vmatprep.subr.mxu0 0.0
    %2281 = vmatpush1.msra.mxu0 0.0
    %2282 = vmatprep.subr.mxu0 0.0
    %2283 = vmatpush1.msra.mxu0 0.0
    %2284 = vmatprep.subr.mxu0 0.0
    %2285 = vmatpush1.msra.mxu0 0.0
    %2286 = vmatprep.subr.mxu0 0.0
    %2287 = vmatpush1.msra.mxu0 0.0
    %2288 = vmatprep.subr.mxu0 0.0
    %2289 = vmatpush1.msra.mxu0 0.0
    %2290 = vmatprep.subr.mxu0 0.0
    %2291 = vmatpush1.msra.mxu0 0.0
    %2292 = vmatprep.subr.mxu0 0.0
    %2293 = vmatpush1.msra.mxu0 0.0
    %2294 = vmatprep.subr.mxu0 0.0
    %2295 = vmatpush1.msra.mxu0 0.0
    %2296 = vmatprep.subr.mxu0 0.0
    %2297 = vmatpush1.msra.mxu0 0.0
    %2298 = vmatprep.subr.mxu0 0.0
    %2299 = vmatpush1.msra.mxu0 0.0
    %2300 = vmatprep.subr.mxu0 0.0
    %2301 = vmatpush1.msra.mxu0 0.0
    %2302 = vmatprep.subr.mxu0 0.0
    %2303 = vmatpush1.msra.mxu0 0.0
    %2304 = vmatprep.subr.mxu0 0.0
    %2305 = vmatpush1.msra.mxu0 0.0
    %2306 = vmatprep.subr.mxu0 0.0
    %2307 = vmatpush1.msra.mxu0 0.0
    %2308 = vmatprep.subr.mxu0 0.0
    %2309 = vmatpush1.msra.mxu0 0.0
    %2310 = vmatprep.subr.mxu0 0.0
    %2311 = vmatpush1.msra.mxu0 0.0
    %2312 = vmatprep.subr.mxu0 0.0
    %2313 = vmatpush1.msra.mxu0 0.0
    %2314 = vmatprep.subr.mxu0 0.0
    %2315 = vmatpush1.msra.mxu0 0.0
    %2316 = vmatprep.subr.mxu0 0.0
    %2317 = vmatpush1.msra.mxu0 0.0
    %2318 = vmatprep.subr.mxu0 0.0
    %2319 = vmatpush1.msra.mxu0 0.0
    %2320 = vmatprep.subr.mxu0 0.0
    %2321 = vmatpush1.msra.mxu0 0.0
    %2322 = vmatprep.subr.mxu0 0.0
    %2323 = vmatpush1.msra.mxu0 0.0
    %2324 = vmatprep.subr.mxu0 0.0
    %2325 = vmatpush1.msra.mxu0 0.0
    %2326 = vmatprep.subr.mxu0 0.0
    %2327 = vmatpush1.msra.mxu0 0.0
    %2328 = vmatprep.subr.mxu0 0.0
    %2329 = vmatpush1.msra.mxu0 0.0
    %2330 = vmatprep.mubr.f32.mxu0 0.0
    %2331 = vmatmul.mubr.f32.gmra.mrb[0].mxu0 %v2264
    %v2332 = vpop.f32.mrb[0].mxu0
    %v2333 = vadd.f32 %v2232, %v2332
    %v2334 = vpop.f32.mrb[0].mxu0
    %2335 = vdwg.mxu0
    %v2336 = vxor.u32 %v2333, 2147483648
    %v2337 = vmul.f32 %v2336, 1.442695
    %v2338 = vpow.pop %v2337
    %v2339 = vadd.f32 %v2338, 1.0
    %v2340 = vrcp.pop %v2339
    %v2341 = vmul.f32 1.0, %v2340
    %v2342 = vtanh.pop %v2333
    %v2343 = vmul.f32 %v2341, %v2081
    %2345 = vrot.lane.b32.xlu0 %v2342, 64
    %v2346 = vpop.permute.xlu0 %2345
    %v2348 = vmul.f32 %v2341, %v2346
    %2350 = vrot.lane.b32.xlu0 %v2348, 32
    %v2351 = vpop.permute.xlu0 %2350
    %v2353 = vadd.f32 %v2343, %v2351
    %v2354 = vtanh.pop %v2353
    %2356 = vrot.lane.b32.xlu0 %v2354, 64
    %v2357 = vpop.permute.xlu0 %2356
    %v2359 = vmul.f32 %v2341, %v2357
    %2361 = vrot.lane.b32.xlu0 %v2359, 32
    %v2362 = vpop.permute.xlu0 %2361
    %2364 = vst.msk [vmem:[#allocation7 + $0xe] sm:$0x3] %vm459, %v2362
    %2366 = vst.msk [vmem:[#allocation2] sm:$0x3] %vm459, %v2263
    %2368 = vrot.lane.b32.xlu0 %v2254, 96
    %v2369 = vpop.permute.xlu0 %2368
    %2371 = vst.msk [vmem:[#allocation3] sm:$0x3] %vm459, %v2369
    %2372 = vst.msk [vmem:[#allocation4] sm:$0x3] %vm459, %v2362
    %2374 = vrot.lane.b32.xlu0 %v2353, 96
    %v2375 = vpop.permute.xlu0 %2374
    %2377 = vst.msk [vmem:[#allocation5] sm:$0x3] %vm459, %v2375
    %v2378 = vld [vmem:[#allocation7] sm:$0xff]
    %v2379 = vld [vmem:[#allocation7 + $0x8] sm:$0xff]
    %v2380 = vld [vmem:[%s7] sm:$0xff]
    %v2381 = vld [vmem:[%s7 + $0x8] sm:$0xff]
    %v2382 = vld [vmem:[%s7 + $0x10] sm:$0xff]
    %v2383 = vld [vmem:[%s7 + $0x18] sm:$0xff]
    %v2384 = vld [vmem:[%s8] sm:$0x1]
    %v2386 = vlaneseq
    %v2387 = vshrl.u32 %v2386, 7
    %v2388 = vsub.s32 0, %v2387
    %v2389 = vrot.slane %v2384, %v2388
    %v2392 = vsel %vm88, %v2378, 0
    %v2395 = vsel %vm88, %v2379, 0
    %2397 = vmatprep.subr.mxu0 0.0
    %2398 = vmatpush1.msra.mxu0 %v2380
    %2399 = vmatprep.subr.mxu0 0.0
    %2400 = vmatpush1.msra.mxu0 %v2381
    %2401 = vmatprep.subr.mxu0 0.0
    %2402 = vmatpush1.msra.mxu0 %v2382
    %2403 = vmatprep.subr.mxu0 0.0
    %2404 = vmatpush1.msra.mxu0 %v2383
    %2405 = vmatprep.subr.mxu0 0.0
    %2406 = vmatpush1.msra.mxu0 0.0
    %2407 = vmatprep.subr.mxu0 0.0
    %2408 = vmatpush1.msra.mxu0 0.0
    %2409 = vmatprep.subr.mxu0 0.0
    %2410 = vmatpush1.msra.mxu0 0.0
    %2411 = vmatprep.subr.mxu0 0.0
    %2412 = vmatpush1.msra.mxu0 0.0
    %2413 = vmatprep.subr.mxu0 0.0
    %2414 = vmatpush1.msra.mxu0 0.0
    %2415 = vmatprep.subr.mxu0 0.0
    %2416 = vmatpush1.msra.mxu0 0.0
    %2417 = vmatprep.subr.mxu0 0.0
    %2418 = vmatpush1.msra.mxu0 0.0
    %2419 = vmatprep.subr.mxu0 0.0
    %2420 = vmatpush1.msra.mxu0 0.0
    %2421 = vmatprep.subr.mxu0 0.0
    %2422 = vmatpush1.msra.mxu0 0.0
    %2423 = vmatprep.subr.mxu0 0.0
    %2424 = vmatpush1.msra.mxu0 0.0
    %2425 = vmatprep.subr.mxu0 0.0
    %2426 = vmatpush1.msra.mxu0 0.0
    %2427 = vmatprep.subr.mxu0 0.0
    %2428 = vmatpush1.msra.mxu0 0.0
    %2429 = vmatprep.subr.mxu0 0.0
    %2430 = vmatpush1.msra.mxu0 0.0
    %2431 = vmatprep.subr.mxu0 0.0
    %2432 = vmatpush1.msra.mxu0 0.0
    %2433 = vmatprep.subr.mxu0 0.0
    %2434 = vmatpush1.msra.mxu0 0.0
    %2435 = vmatprep.subr.mxu0 0.0
    %2436 = vmatpush1.msra.mxu0 0.0
    %2437 = vmatprep.subr.mxu0 0.0
    %2438 = vmatpush1.msra.mxu0 0.0
    %2439 = vmatprep.subr.mxu0 0.0
    %2440 = vmatpush1.msra.mxu0 0.0
    %2441 = vmatprep.subr.mxu0 0.0
    %2442 = vmatpush1.msra.mxu0 0.0
    %2443 = vmatprep.subr.mxu0 0.0
    %2444 = vmatpush1.msra.mxu0 0.0
    %2445 = vmatprep.subr.mxu0 0.0
    %2446 = vmatpush1.msra.mxu0 0.0
    %2447 = vmatprep.subr.mxu0 0.0
    %2448 = vmatpush1.msra.mxu0 0.0
    %2449 = vmatprep.subr.mxu0 0.0
    %2450 = vmatpush1.msra.mxu0 0.0
    %2451 = vmatprep.subr.mxu0 0.0
    %2452 = vmatpush1.msra.mxu0 0.0
    %2453 = vmatprep.subr.mxu0 0.0
    %2454 = vmatpush1.msra.mxu0 0.0
    %2455 = vmatprep.subr.mxu0 0.0
    %2456 = vmatpush1.msra.mxu0 0.0
    %2457 = vmatprep.subr.mxu0 0.0
    %2458 = vmatpush1.msra.mxu0 0.0
    %2459 = vmatprep.subr.mxu0 0.0
    %2460 = vmatpush1.msra.mxu0 0.0
    %2461 = vmatprep.mubr.f32.mxu0 0.0
    %2462 = vmatmul.mubr.f32.gmra.mrb[0].mxu0 %v2392
    %v2463 = vpop.f32.mrb[0].mxu0
    %v2464 = vadd.f32 %v2389, %v2463
    %v2465 = vpop.f32.mrb[0].mxu0
    %2466 = vmatprep.mubr.f32.mxu0 0.0
    %2467 = vmatmul.mubr.f32.gmra.mrb[0].mxu0 %v2395
    %v2468 = vpop.f32.mrb[0].mxu0
    %v2469 = vadd.f32 %v2389, %v2468
    %v2470 = vpop.f32.mrb[0].mxu0
    %2471 = vdwg.mxu0
    %2472 = vmax.xlane.f32.xlu0 %v2464
    %v2473 = vpop.xlane.xlu0 %2472
    %2474 = vmax.xlane.f32.xlu0 %v2469
    %v2475 = vpop.xlane.xlu0 %2474
    %v2476 = vsub.f32 %v2464, %v2473
    %v2477 = vsub.f32 %v2469, %v2475
    %v2478 = vmul.f32 %v2476, 1.442695
    %v2479 = vpow.pop %v2478
    %v2480 = vmul.f32 %v2477, 1.442695
    %v2481 = vpow.pop %v2480
    %2482 = vadd.xlane.f32.xlu0 %v2479
    %v2483 = vpop.xlane.xlu0 %2482
    %2484 = vadd.xlane.f32.xlu0 %v2481
    %v2485 = vpop.xlane.xlu0 %2484
    %v2486 = vrcp.pop %v2483
    %v2487 = vmul.f32 %v2479, %v2486
    %v2488 = vrcp.pop %v2485
    %v2489 = vmul.f32 %v2481, %v2488
    %2490 = vst [vmem:[#allocation11] sm:$0xff] %v2487
    %2491 = vst [vmem:[#allocation11 + $0x8] sm:$0xff] %v2489
    // Predicated region
    $region46: #{seq_classifier_forward.1} parent=1 // pred_check
      _
    $region47: #{seq_classifier_forward.1} parent=1 // pred_check_branch
      %2493 = sbr.rel (0) target = $region49
    $region48: #{seq_classifier_forward.1} parent=1 // pred_region
      %s2495 = ssub.s32 256, 256
      %2496 = vsyncadd [#allocation10], %s2495
      %s2497 = sshll.u32 [#allocation11], 4
      %s2498 = int_to_ptr.vmem [resolvable:$true] %s2497
      %2503 = dma.vmem_to_hbm [thread:$0]  %s2498, 256, %s9, [#allocation10], 128, 128, 8
    $region49: #{seq_classifier_forward.1} parent=1 // pred_fallthru
      _
    // Predicated region
    $region50: #{seq_classifier_forward.1} parent=1 // pred_check
      _
    $region51: #{seq_classifier_forward.1} parent=1 // pred_check_branch
      %2505 = sbr.rel (0) target = $region53
    $region52: #{seq_classifier_forward.1} parent=1 // pred_region
      %2506 = dma.done [#allocation10], 256
    $region53: #{seq_classifier_forward.1} parent=1 // pred_fallthru
      _
    %2507 = vsyncpa [#allocation9], 1
    %2508 = vsyncpa [#allocation10], 1

</llo_original>
